<compile_context>
chip_gen: v5e
topology: v5e:2x2
jax: 0.10.0
libtpu: 0.0.40
codegen_flags: <defaults>
</compile_context>

<pallas_src>
import math

import jax
import jax.numpy as jnp
from jax.experimental import pallas as pl
from jax.experimental.pallas import tpu as pltpu

# ---------------- small-shape config (consistent with the module's forward) ----------
BATCH = 2
SEQ = 8
HIDDEN_DIM = 32      # input/output feature dim (PyTorch `hidden_dim`)
LATENT_DIM = 32      # d_model of the transformers
COND_DIM = 4
NUM_HEADS = 4
NUM_LAYERS = 2
FFN_DIM = 64         # dim_feedforward of the transformer layers (small synthetic value)

D, H, F, C = LATENT_DIM, HIDDEN_DIM, FFN_DIM, COND_DIM
LANES = 128

# ---------------- matrix-slab row layout (all blocks in cols [0:width), zero padded) --
LAYER_MAT_ROWS = 3 * D + F                     # wqkv(D) | wo(D) | w1(D) | w2(F)
OFF_WQKV, OFF_WO, OFF_W1, OFF_W2 = 0, D, 2 * D, 3 * D
N_TLAYERS = 2 * NUM_LAYERS                     # encoder layers then decoder layers
MISC_BASE = N_TLAYERS * LAYER_MAT_ROWS
R_ENC_IN = MISC_BASE                           # (H, D)   composed fc1/2/3_input_to_latent
R_HEAD_WH = R_ENC_IN + H                       # (D, 2D)  fused [fc_mu|fc_logvar], h block
R_HEAD_WC = R_HEAD_WH + D                      # (C, 2D)  fused head, condition block
R_DEC_IN_WZ = R_HEAD_WC + 8                    # (D, D)   composed latent_to_input∘decoder_input
R_DEC_IN_WC = R_DEC_IN_WZ + D                  # (C, D)   condition block of the above
R_DEC_OUT = R_DEC_IN_WC + 8                    # (D, H)   composed fc1/2/3_output
MAT_ROWS = R_DEC_OUT + D                       # = 784

# ---------------- vector-slab row layout (one vector per row, zero padded to 128) -----
LAYER_VEC_ROWS = 8
VO_BQKV, VO_BO, VO_LN1W, VO_LN1B, VO_B1, VO_B2, VO_LN2W, VO_LN2B = range(8)
V_MISC = N_TLAYERS * LAYER_VEC_ROWS
V_ENC_IN_B = V_MISC
V_HEAD_B = V_MISC + 1
V_DEC_IN_B = V_MISC + 2
V_DEC_OUT_B = V_MISC + 3
V_PE = V_MISC + 4                              # SEQ rows of positional encoding
VEC_ROWS = ((V_PE + SEQ + 7) // 8) * 8         # = 48

_VMEM = pl.BlockSpec(memory_space=pltpu.MemorySpace.VMEM)

_LAYER_KEYS = ('wqkv', 'bqkv', 'wo', 'bo', 'ln1w', 'ln1b',
               'w1', 'b1', 'w2', 'b2', 'ln2w', 'ln2b')


# ----------------------------- the single fused kernel -------------------------------
def _vae_kernel(x_ref, c_ref, eps_ref, mat_ref, vec_ref, out_ref):
    B, S, _ = x_ref.shape
    nh = NUM_HEADS
    dh = D // nh
    scale = 1.0 / math.sqrt(dh)

    def vrow(row, width=D):
        # one bias / LN-param row of the vector slab, shaped (1, width) for broadcast
        return vec_ref[row:row + 1, 0:width]

    def layernorm(y, wrow, brow, eps=1e-5):
        # single-pass variance: E[x^2] - E[x]^2  (PyTorch uses biased variance)
        m = jnp.mean(y, axis=-1, keepdims=True)
        ms = jnp.mean(y * y, axis=-1, keepdims=True)
        var = ms - m * m
        return (y - m) * jax.lax.rsqrt(var + eps) * vrow(wrow) + vrow(brow)

    def transformer_layer(x2, mb, vb):
        # x2: (B*S, D) fp32; post-norm residual blocks (PyTorch TransformerEncoderLayer).
        wqkv = mat_ref[mb + OFF_WQKV: mb + OFF_WQKV + D, :]              # (D,128), cols 96: zero
        qkv = jnp.dot(x2, wqkv, preferred_element_type=jnp.float32) + vrow(vb + VO_BQKV, LANES)
        qkv3 = qkv.reshape(B, S, LANES)
        heads = []
        for hd in range(nh):                                             # static unroll
            q = qkv3[:, :, hd * dh:(hd + 1) * dh]
            k = qkv3[:, :, D + hd * dh: D + (hd + 1) * dh]
            v = qkv3[:, :, 2 * D + hd * dh: 2 * D + (hd + 1) * dh]
            s = jnp.einsum('bqd,bkd->bqk', q, k,
                           preferred_element_type=jnp.float32) * scale
            s = s - jnp.max(s, axis=-1, keepdims=True)
            p = jnp.exp(s)
            p = p * pl.reciprocal(jnp.sum(p, axis=-1, keepdims=True), approx=True)
            heads.append(jnp.einsum('bqk,bkd->bqd', p, v,
                                    preferred_element_type=jnp.float32))
        # single full-width output projection (no serial per-head accumulate chain)
        ho = jnp.concatenate(heads, axis=-1).reshape(B * S, D)
        wo = mat_ref[mb + OFF_WO: mb + OFF_WO + D, 0:D]
        attn = jnp.dot(ho, wo, preferred_element_type=jnp.float32) + vrow(vb + VO_BO)
        y = layernorm(x2 + attn, vb + VO_LN1W, vb + VO_LN1B)
        w1 = mat_ref[mb + OFF_W1: mb + OFF_W1 + D, 0:F]
        f = jnp.maximum(jnp.dot(y, w1, preferred_element_type=jnp.float32)
                        + vrow(vb + VO_B1, F), 0.0)
        w2 = mat_ref[mb + OFF_W2: mb + OFF_W2 + F, 0:D]
        f = jnp.dot(f, w2, preferred_element_type=jnp.float32) + vrow(vb + VO_B2)
        return layernorm(y + f, vb + VO_LN2W, vb + VO_LN2B)

    x2 = x_ref[...].reshape(B * S, H).astype(jnp.float32)
    c2 = c_ref[...].astype(jnp.float32)                                   # (B, C)
    pe = vec_ref[V_PE: V_PE + S, 0:D]                                     # (S, D)

    # ---- encode: pre-composed input MLP + positional encoding ----
    hcur = (jnp.dot(x2, mat_ref[R_ENC_IN: R_ENC_IN + H, 0:D],
                    preferred_element_type=jnp.float32) + vrow(V_ENC_IN_B))
    hcur = (hcur.reshape(B, S, D) + pe[None, :, :]).reshape(B * S, D)

    for l in range(NUM_LAYERS):                                           # static unroll
        hcur = transformer_layer(hcur, l * LAYER_MAT_ROWS, l * LAYER_VEC_ROWS)

    # ---- fused mu|logvar head (split h / c weight blocks) + reparameterize ----
    head = (jnp.dot(hcur, mat_ref[R_HEAD_WH: R_HEAD_WH + D, 0:2 * D],
                    preferred_element_type=jnp.float32)
            + vrow(V_HEAD_B, 2 * D)).reshape(B, S, 2 * D)
    head = head + jnp.dot(c2, mat_ref[R_HEAD_WC: R_HEAD_WC + C, 0:2 * D],
                          preferred_element_type=jnp.float32)[:, None, :]
    out_ref[:, :, H:H + 2 * D] = head.astype(out_ref.dtype)              # [mu | logvar]
    mu3 = head[:, :, 0:D]
    lv3 = head[:, :, D:2 * D]
    z2 = (mu3 + eps_ref[...].astype(jnp.float32) * jnp.exp(0.5 * lv3)).reshape(B * S, D)

    # ---- decode: pre-composed latent->input chain + positional encoding ----
    dz = (jnp.dot(z2, mat_ref[R_DEC_IN_WZ: R_DEC_IN_WZ + D, 0:D],
                  preferred_element_type=jnp.float32) + vrow(V_DEC_IN_B))
    dz = dz.reshape(B, S, D) + jnp.dot(c2, mat_ref[R_DEC_IN_WC: R_DEC_IN_WC + C, 0:D],
                                       preferred_element_type=jnp.float32)[:, None, :]
    dz = (dz + pe[None, :, :]).reshape(B * S, D)

    for l in range(NUM_LAYERS):
        dz = transformer_layer(dz, (NUM_LAYERS + l) * LAYER_MAT_ROWS,
                               (NUM_LAYERS + l) * LAYER_VEC_ROWS)

    xr = (jnp.dot(dz, mat_ref[R_DEC_OUT: R_DEC_OUT + D, 0:H],
                  preferred_element_type=jnp.float32) + vrow(V_DEC_OUT_B, H))
    out_ref[:, :, 0:H] = xr.reshape(B, S, H).astype(out_ref.dtype)


# ----------------------------- parameter setup (plain JAX glue) ----------------------
def _dense(key, in_dim, out_dim, scale=0.05):
    kw, kb = jax.random.split(key)
    w = scale * jax.random.normal(kw, (in_dim, out_dim), jnp.float32)
    b = scale * jax.random.normal(kb, (1, out_dim), jnp.float32)
    return w, b


def _layer_params(key, d_model, ffn_dim, scale=0.05):
    ks = jax.random.split(key, 4)
    wqkv, bqkv = _dense(ks[0], d_model, 3 * d_model, scale)
    wo, bo = _dense(ks[1], d_model, d_model, scale)
    w1, b1 = _dense(ks[2], d_model, ffn_dim, scale)
    w2, b2 = _dense(ks[3], ffn_dim, d_model, scale)
    ones = jnp.ones((1, d_model), jnp.float32)
    zeros = jnp.zeros((1, d_model), jnp.float32)
    return dict(wqkv=wqkv, bqkv=bqkv, wo=wo, bo=bo,
                ln1w=ones, ln1b=zeros, w1=w1, b1=b1, w2=w2, b2=b2,
                ln2w=ones, ln2b=zeros)


def init_params(key):
    ks = jax.random.split(key, 12 + 2 * NUM_LAYERS)
    i = iter(range(len(ks)))
    p = {}
    p['enc_mlp'] = [_dense(ks[next(i)], H, 4 * D),
                    _dense(ks[next(i)], 4 * D, 2 * D),
                    _dense(ks[next(i)], 2 * D, D)]
    p['encoder_layers'] = [_layer_params(ks[next(i)], D, F) for _ in range(NUM_LAYERS)]
    p['fc_mu'] = _dense(ks[next(i)], D + C, D)
    p['fc_logvar'] = _dense(ks[next(i)], D + C, D)
    p['fc_latent_to_input'] = _dense(ks[next(i)], D + C, D)
    p['fc_decoder_input'] = _dense(ks[next(i)], D, D)
    p['decoder_layers'] = [_layer_params(ks[next(i)], D, F) for _ in range(NUM_LAYERS)]
    p['dec_mlp'] = [_dense(ks[next(i)], D, 2 * D),
                    _dense(ks[next(i)], 2 * D, 4 * D),
                    _dense(ks[next(i)], 4 * D, H)]
    return p


def _compose_affine(chain):
    """Collapse a list of biased Linears with no activation between them (exact math)."""
    W, b = chain[0]
    for (w2, b2) in chain[1:]:
        W = W @ w2
        b = b @ w2 + b2
    return W, b


def positional_encoding(seq_len, d_model):
    pos = jnp.arange(seq_len, dtype=jnp.float32)[:, None]
    div = jnp.exp(jnp.arange(0, d_model, 2, dtype=jnp.float32)
                  * (-math.log(10000.0) / d_model))
    ang = pos * div
    pe = jnp.zeros((seq_len, d_model), jnp.float32)
    pe = pe.at[:, 0::2].set(jnp.sin(ang))
    pe = pe.at[:, 1::2].set(jnp.cos(ang))
    return pe


def build_fused_params(raw):
    """Pre-compose affine chains, fuse/split heads, and pack everything into 2 slabs."""
    mat = jnp.zeros((MAT_ROWS, LANES), jnp.float32)
    vec = jnp.zeros((VEC_ROWS, LANES), jnp.float32)

    def putm(m, row, w):
        r, c = w.shape
        return m.at[row:row + r, 0:c].set(w)

    def putv(v, row, b):
        b = b.reshape(1, -1) if b.ndim == 1 else b
        return v.at[row:row + b.shape[0], 0:b.shape[1]].set(b)

    # transformer layers: encoder layers first, then decoder layers
    all_layers = raw['encoder_layers'] + raw['decoder_layers']
    for li, lp in enumerate(all_layers):
        mb, vb = li * LAYER_MAT_ROWS, li * LAYER_VEC_ROWS
        mat = putm(mat, mb + OFF_WQKV, lp['wqkv'])
        mat = putm(mat, mb + OFF_WO, lp['wo'])
        mat = putm(mat, mb + OFF_W1, lp['w1'])
        mat = putm(mat, mb + OFF_W2, lp['w2'])
        vec = putv(vec, vb + VO_BQKV, lp['bqkv'])
        vec = putv(vec, vb + VO_BO, lp['bo'])
        vec = putv(vec, vb + VO_LN1W, lp['ln1w'])
        vec = putv(vec, vb + VO_LN1B, lp['ln1b'])
        vec = putv(vec, vb + VO_B1, lp['b1'])
        vec = putv(vec, vb + VO_B2, lp['b2'])
        vec = putv(vec, vb + VO_LN2W, lp['ln2w'])
        vec = putv(vec, vb + VO_LN2B, lp['ln2b'])

    # composed affine chains (no nonlinearity between them in the source model)
    enc_in_w, enc_in_b = _compose_affine(raw['enc_mlp'])
    dec_out_w, dec_out_b = _compose_affine(raw['dec_mlp'])

    # fused mu|logvar head, split into h-block and condition-block
    (wmu, bmu), (wlv, blv) = raw['fc_mu'], raw['fc_logvar']
    w_head = jnp.concatenate([wmu, wlv], axis=1)              # (D+C, 2D)
    head_b = jnp.concatenate([bmu, blv], axis=1)              # (1, 2D)

    # fc_latent_to_input ∘ fc_decoder_input, split into z-block and condition-block
    (wlat, blat), (wdec, bdec) = raw['fc_latent_to_input'], raw['fc_decoder_input']
    w_comp = wlat @ wdec                                      # (D+C, D)
    dec_in_b = blat @ wdec + bdec

    mat = putm(mat, R_ENC_IN, enc_in_w)
    mat = putm(mat, R_HEAD_WH, w_head[:D])
    mat = putm(mat, R_HEAD_WC, w_head[D:])
    mat = putm(mat, R_DEC_IN_WZ, w_comp[:D])
    mat = putm(mat, R_DEC_IN_WC, w_comp[D:])
    mat = putm(mat, R_DEC_OUT, dec_out_w)

    vec = putv(vec, V_ENC_IN_B, enc_in_b)
    vec = putv(vec, V_HEAD_B, head_b)
    vec = putv(vec, V_DEC_IN_B, dec_in_b)
    vec = putv(vec, V_DEC_OUT_B, dec_out_b)
    vec = putv(vec, V_PE, positional_encoding(SEQ, D))

    return {'mat': mat, 'vec': vec}


# ----------------------------- full forward pass (one pallas_call) -------------------
def vae_forward(fp, x, c, eps):
    B, S, Hdim = x.shape
    assert S == SEQ and Hdim == H

    out = pl.pallas_call(
        _vae_kernel,
        out_shape=jax.ShapeDtypeStruct((B, S, H + 2 * D), jnp.float32),
        in_specs=[_VMEM] * 5,
        out_specs=_VMEM,
    )(x, c, eps, fp['mat'], fp['vec'])

    x_recon = out[..., 0:H]
    mu = out[..., H:H + D]
    log_var = out[..., H + D:H + 2 * D]
    # .squeeze(1): only removes the seq dim when S == 1 (static shape decision)
    if S == 1:
        x_recon = x_recon.reshape(B, H)
    return x_recon, mu, log_var


# ----------------------------- pure-JAX reference (for a loose sanity check) ---------
def vae_reference(raw, x, c, eps):
    pe = positional_encoding(SEQ, D)
    lin = lambda t, wb: t @ wb[0] + wb[1]
    nh, dh = NUM_HEADS, D // NUM_HEADS

    def layer(t, lp):
        B, S, _ = t.shape
        qkv = t @ lp['wqkv'] + lp['bqkv']
        q, k, v = qkv[..., :D], qkv[..., D:2 * D], qkv[..., 2 * D:]
        q = q.reshape(B, S, nh, dh).transpose(0, 2, 1, 3)
        k = k.reshape(B, S, nh, dh).transpose(0, 2, 1, 3)
        v = v.reshape(B, S, nh, dh).transpose(0, 2, 1, 3)
        s = jnp.einsum('bhqd,bhkd->bhqk', q, k) / math.sqrt(dh)
        p = jax.nn.softmax(s, axis=-1)
        o = jnp.einsum('bhqk,bhkd->bhqd', p, v).transpose(0, 2, 1, 3).reshape(B, S, D)
        o = o @ lp['wo'] + lp['bo']

        def ln(u, w, b):
            m = u.mean(-1, keepdims=True)
            var = ((u - m) ** 2).mean(-1, keepdims=True)
            return (u - m) / jnp.sqrt(var + 1e-5) * w + b

        t = ln(t + o, lp['ln1w'], lp['ln1b'])
        f = jnp.maximum(t @ lp['w1'] + lp['b1'], 0.0) @ lp['w2'] + lp['b2']
        return ln(t + f, lp['ln2w'], lp['ln2b'])

    h = lin(lin(lin(x, raw['enc_mlp'][0]), raw['enc_mlp'][1]), raw['enc_mlp'][2])
    h = h + pe[None]
    for lp in raw['encoder_layers']:
        h = layer(h, lp)
    ce = jnp.broadcast_to(c[:, None, :], (h.shape[0], h.shape[1], C))
    hc = jnp.concatenate([h, ce], axis=-1)
    mu, lv = lin(hc, raw['fc_mu']), lin(hc, raw['fc_logvar'])
    z = mu + eps * jnp.exp(0.5 * lv)
    zc = jnp.concatenate([z, ce], axis=-1)
    dz = lin(lin(zc, raw['fc_latent_to_input']), raw['fc_decoder_input'])
    dz = dz + pe[None]
    for lp in raw['decoder_layers']:
        dz = layer(dz, lp)
    xr = lin(lin(lin(dz, raw['dec_mlp'][0]), raw['dec_mlp'][1]), raw['dec_mlp'][2])
    return xr, mu, lv


if __name__ == "__main__":
    key = jax.random.PRNGKey(0)
    k_par, k_x, k_c, k_eps = jax.random.split(key, 4)

    raw_params = init_params(k_par)
    fused_params = build_fused_params(raw_params)

    x = jax.random.normal(k_x, (BATCH, SEQ, HIDDEN_DIM), jnp.float32)
    c = jax.random.normal(k_c, (BATCH, COND_DIM), jnp.float32)
    eps = jax.random.normal(k_eps, (BATCH, SEQ, LATENT_DIM), jnp.float32)

    fwd = jax.jit(lambda x, c, eps: vae_forward(fused_params, x, c, eps))
    x_recon, mu, log_var = fwd(x, c, eps)
    jax.block_until_ready((x_recon, mu, log_var))

    assert x_recon.shape == (BATCH, SEQ, HIDDEN_DIM)
    assert mu.shape == (BATCH, SEQ, LATENT_DIM)
    assert log_var.shape == (BATCH, SEQ, LATENT_DIM)

    # loose sanity check vs a pure-JAX reference (approx-reciprocal softmax and the
    # composed affines introduce only small numeric drift; slab-offset bugs would blow
    # way past this tolerance)
    xr_r, mu_r, lv_r = vae_reference(raw_params, x, c, eps)
    assert float(jnp.max(jnp.abs(x_recon - xr_r))) < 0.15
    assert float(jnp.max(jnp.abs(mu - mu_r))) < 0.15
    assert float(jnp.max(jnp.abs(log_var - lv_r))) < 0.15
    assert bool(jnp.all(jnp.isfinite(x_recon)))

    print("KERNEL_OK")
</pallas_src>

<mosaic_0001>
module attributes {stable_mosaic.version = 11 : i64} {
  func.func @_vae_kernel(%arg0: memref<2x8x32xf32, #tpu.memory_space<vmem>>, %arg1: memref<2x4xf32, #tpu.memory_space<vmem>>, %arg2: memref<2x8x32xf32, #tpu.memory_space<vmem>>, %arg3: memref<784x128xf32, #tpu.memory_space<vmem>>, %arg4: memref<48x128xf32, #tpu.memory_space<vmem>>, %arg5: memref<2x8x96xf32, #tpu.memory_space<vmem>>) attributes {dimension_semantics = [], scalar_prefetch = 0 : i64, scratch_operands = 0 : i64, tpu.core_type = #tpu.core_type<tc>} {
    %c0 = arith.constant 0 : index
    %c0_0 = arith.constant 0 : index
    %c0_1 = arith.constant 0 : index
    %0 = vector.load %arg0[%c0, %c0_0, %c0_1] : memref<2x8x32xf32, #tpu.memory_space<vmem>>, vector<2x8x32xf32>
    %1 = vector.shape_cast %0 : vector<2x8x32xf32> to vector<16x32xf32>
    %c0_2 = arith.constant 0 : index
    %c0_3 = arith.constant 0 : index
    %2 = vector.load %arg1[%c0_2, %c0_3] : memref<2x4xf32, #tpu.memory_space<vmem>>, vector<2x4xf32>
    %c36 = arith.constant 36 : index
    %c0_4 = arith.constant 0 : index
    %3 = vector.load %arg4[%c36, %c0_4] : memref<48x128xf32, #tpu.memory_space<vmem>>, vector<8x32xf32>
    %c640 = arith.constant 640 : index
    %c0_5 = arith.constant 0 : index
    %4 = vector.load %arg3[%c640, %c0_5] : memref<784x128xf32, #tpu.memory_space<vmem>>, vector<32x32xf32>
    %cst = arith.constant dense<0.000000e+00> : vector<16x32xf32>
    %5 = tpu.matmul %1, %4, %cst {dimension_numbers = #tpu.dot_dimension_numbers<[1], [0], [0], [1], [0, 0, 1, 1], [], []>} : vector<16x32xf32>, vector<32x32xf32>, vector<16x32xf32> -> vector<16x32xf32>
    %c32 = arith.constant 32 : index
    %c0_6 = arith.constant 0 : index
    %6 = vector.load %arg4[%c32, %c0_6] : memref<48x128xf32, #tpu.memory_space<vmem>>, vector<1x32xf32>
    %7 = vector.broadcast %6 : vector<1x32xf32> to vector<16x32xf32>
    %8 = arith.addf %5, %7 : vector<16x32xf32>
    %9 = vector.shape_cast %8 : vector<16x32xf32> to vector<2x8x32xf32>
    %10 = vector.shape_cast %3 : vector<8x32xf32> to vector<1x8x32xf32>
    %11 = vector.broadcast %10 : vector<1x8x32xf32> to vector<2x8x32xf32>
    %12 = arith.addf %9, %11 : vector<2x8x32xf32>
    %13 = vector.shape_cast %12 : vector<2x8x32xf32> to vector<16x32xf32>
    %c0_7 = arith.constant 0 : index
    %c0_8 = arith.constant 0 : index
    %14 = vector.load %arg3[%c0_7, %c0_8] : memref<784x128xf32, #tpu.memory_space<vmem>>, vector<32x128xf32>
    %cst_9 = arith.constant dense<0.000000e+00> : vector<16x128xf32>
    %15 = tpu.matmul %13, %14, %cst_9 {dimension_numbers = #tpu.dot_dimension_numbers<[1], [0], [0], [1], [0, 0, 1, 1], [], []>} : vector<16x32xf32>, vector<32x128xf32>, vector<16x128xf32> -> vector<16x128xf32>
    %c0_10 = arith.constant 0 : index
    %c0_11 = arith.constant 0 : index
    %16 = vector.load %arg4[%c0_10, %c0_11] : memref<48x128xf32, #tpu.memory_space<vmem>>, vector<1x128xf32>
    %17 = vector.broadcast %16 : vector<1x128xf32> to vector<16x128xf32>
    %18 = arith.addf %15, %17 : vector<16x128xf32>
    %19 = vector.shape_cast %18 : vector<16x128xf32> to vector<2x8x128xf32>
    %20 = vector.extract_strided_slice %19 {offsets = [0, 0, 0], sizes = [2, 8, 8], strides = [1, 1, 1]} : vector<2x8x128xf32> to vector<2x8x8xf32>
    %21 = vector.extract_strided_slice %19 {offsets = [0, 0, 32], sizes = [2, 8, 8], strides = [1, 1, 1]} : vector<2x8x128xf32> to vector<2x8x8xf32>
    %22 = vector.extract_strided_slice %19 {offsets = [0, 0, 64], sizes = [2, 8, 8], strides = [1, 1, 1]} : vector<2x8x128xf32> to vector<2x8x8xf32>
    "tpu.trace_start"() <{level = 10 : i32, message = "bqd,bkd->bqk"}> : () -> ()
    %cst_12 = arith.constant dense<0.000000e+00> : vector<2x8x8xf32>
    %23 = tpu.matmul %20, %21, %cst_12 {dimension_numbers = #tpu.dot_dimension_numbers<[2], [2], [1], [1], [0, 0, 0, 1, 1, 1], [0], [0]>} : vector<2x8x8xf32>, vector<2x8x8xf32>, vector<2x8x8xf32> -> vector<2x8x8xf32>
    "tpu.trace_stop"() : () -> ()
    %cst_13 = arith.constant 0.353553385 : f32
    %24 = vector.broadcast %cst_13 : f32 to vector<2x8x8xf32>
    %25 = arith.mulf %23, %24 : vector<2x8x8xf32>
    %cst_14 = arith.constant dense<0xFF800000> : vector<2x8xf32>
    %26 = vector.multi_reduction <maximumf>, %25, %cst_14 [2] : vector<2x8x8xf32> to vector<2x8xf32>
    %27 = vector.shape_cast %26 : vector<2x8xf32> to vector<2x8x1xf32>
    %28 = vector.broadcast %27 : vector<2x8x1xf32> to vector<2x8x8xf32>
    %29 = arith.subf %25, %28 : vector<2x8x8xf32>
    %30 = math.exp %29 : vector<2x8x8xf32>
    %cst_15 = arith.constant dense<0.000000e+00> : vector<2x8xf32>
    %31 = vector.multi_reduction <add>, %30, %cst_15 [2] : vector<2x8x8xf32> to vector<2x8xf32>
    %32 = vector.shape_cast %31 : vector<2x8xf32> to vector<2x8x1xf32>
    %33 = tpu.reciprocal %32 {approx = true} : vector<2x8x1xf32> -> vector<2x8x1xf32>
    %34 = vector.broadcast %33 : vector<2x8x1xf32> to vector<2x8x8xf32>
    %35 = arith.mulf %30, %34 : vector<2x8x8xf32>
    "tpu.trace_start"() <{level = 10 : i32, message = "bqk,bkd->bqd"}> : () -> ()
    %cst_16 = arith.constant dense<0.000000e+00> : vector<2x8x8xf32>
    %36 = tpu.matmul %35, %22, %cst_16 {dimension_numbers = #tpu.dot_dimension_numbers<[2], [1], [1], [2], [0, 0, 0, 1, 1, 2], [0], [0]>} : vector<2x8x8xf32>, vector<2x8x8xf32>, vector<2x8x8xf32> -> vector<2x8x8xf32>
    "tpu.trace_stop"() : () -> ()
    %37 = vector.extract_strided_slice %19 {offsets = [0, 0, 8], sizes = [2, 8, 8], strides = [1, 1, 1]} : vector<2x8x128xf32> to vector<2x8x8xf32>
    %38 = vector.extract_strided_slice %19 {offsets = [0, 0, 40], sizes = [2, 8, 8], strides = [1, 1, 1]} : vector<2x8x128xf32> to vector<2x8x8xf32>
    %39 = vector.extract_strided_slice %19 {offsets = [0, 0, 72], sizes = [2, 8, 8], strides = [1, 1, 1]} : vector<2x8x128xf32> to vector<2x8x8xf32>
    "tpu.trace_start"() <{level = 10 : i32, message = "bqd,bkd->bqk"}> : () -> ()
    %cst_17 = arith.constant dense<0.000000e+00> : vector<2x8x8xf32>
    %40 = tpu.matmul %37, %38, %cst_17 {dimension_numbers = #tpu.dot_dimension_numbers<[2], [2], [1], [1], [0, 0, 0, 1, 1, 1], [0], [0]>} : vector<2x8x8xf32>, vector<2x8x8xf32>, vector<2x8x8xf32> -> vector<2x8x8xf32>
    "tpu.trace_stop"() : () -> ()
    %cst_18 = arith.constant 0.353553385 : f32
    %41 = vector.broadcast %cst_18 : f32 to vector<2x8x8xf32>
    %42 = arith.mulf %40, %41 : vector<2x8x8xf32>
    %cst_19 = arith.constant dense<0xFF800000> : vector<2x8xf32>
    %43 = vector.multi_reduction <maximumf>, %42, %cst_19 [2] : vector<2x8x8xf32> to vector<2x8xf32>
    %44 = vector.shape_cast %43 : vector<2x8xf32> to vector<2x8x1xf32>
    %45 = vector.broadcast %44 : vector<2x8x1xf32> to vector<2x8x8xf32>
    %46 = arith.subf %42, %45 : vector<2x8x8xf32>
    %47 = math.exp %46 : vector<2x8x8xf32>
    %cst_20 = arith.constant dense<0.000000e+00> : vector<2x8xf32>
    %48 = vector.multi_reduction <add>, %47, %cst_20 [2] : vector<2x8x8xf32> to vector<2x8xf32>
    %49 = vector.shape_cast %48 : vector<2x8xf32> to vector<2x8x1xf32>
    %50 = tpu.reciprocal %49 {approx = true} : vector<2x8x1xf32> -> vector<2x8x1xf32>
    %51 = vector.broadcast %50 : vector<2x8x1xf32> to vector<2x8x8xf32>
    %52 = arith.mulf %47, %51 : vector<2x8x8xf32>
    "tpu.trace_start"() <{level = 10 : i32, message = "bqk,bkd->bqd"}> : () -> ()
    %cst_21 = arith.constant dense<0.000000e+00> : vector<2x8x8xf32>
    %53 = tpu.matmul %52, %39, %cst_21 {dimension_numbers = #tpu.dot_dimension_numbers<[2], [1], [1], [2], [0, 0, 0, 1, 1, 2], [0], [0]>} : vector<2x8x8xf32>, vector<2x8x8xf32>, vector<2x8x8xf32> -> vector<2x8x8xf32>
    "tpu.trace_stop"() : () -> ()
    %54 = vector.extract_strided_slice %19 {offsets = [0, 0, 16], sizes = [2, 8, 8], strides = [1, 1, 1]} : vector<2x8x128xf32> to vector<2x8x8xf32>
    %55 = vector.extract_strided_slice %19 {offsets = [0, 0, 48], sizes = [2, 8, 8], strides = [1, 1, 1]} : vector<2x8x128xf32> to vector<2x8x8xf32>
    %56 = vector.extract_strided_slice %19 {offsets = [0, 0, 80], sizes = [2, 8, 8], strides = [1, 1, 1]} : vector<2x8x128xf32> to vector<2x8x8xf32>
    "tpu.trace_start"() <{level = 10 : i32, message = "bqd,bkd->bqk"}> : () -> ()
    %cst_22 = arith.constant dense<0.000000e+00> : vector<2x8x8xf32>
    %57 = tpu.matmul %54, %55, %cst_22 {dimension_numbers = #tpu.dot_dimension_numbers<[2], [2], [1], [1], [0, 0, 0, 1, 1, 1], [0], [0]>} : vector<2x8x8xf32>, vector<2x8x8xf32>, vector<2x8x8xf32> -> vector<2x8x8xf32>
    "tpu.trace_stop"() : () -> ()
    %cst_23 = arith.constant 0.353553385 : f32
    %58 = vector.broadcast %cst_23 : f32 to vector<2x8x8xf32>
    %59 = arith.mulf %57, %58 : vector<2x8x8xf32>
    %cst_24 = arith.constant dense<0xFF800000> : vector<2x8xf32>
    %60 = vector.multi_reduction <maximumf>, %59, %cst_24 [2] : vector<2x8x8xf32> to vector<2x8xf32>
    %61 = vector.shape_cast %60 : vector<2x8xf32> to vector<2x8x1xf32>
    %62 = vector.broadcast %61 : vector<2x8x1xf32> to vector<2x8x8xf32>
    %63 = arith.subf %59, %62 : vector<2x8x8xf32>
    %64 = math.exp %63 : vector<2x8x8xf32>
    %cst_25 = arith.constant dense<0.000000e+00> : vector<2x8xf32>
    %65 = vector.multi_reduction <add>, %64, %cst_25 [2] : vector<2x8x8xf32> to vector<2x8xf32>
    %66 = vector.shape_cast %65 : vector<2x8xf32> to vector<2x8x1xf32>
    %67 = tpu.reciprocal %66 {approx = true} : vector<2x8x1xf32> -> vector<2x8x1xf32>
    %68 = vector.broadcast %67 : vector<2x8x1xf32> to vector<2x8x8xf32>
    %69 = arith.mulf %64, %68 : vector<2x8x8xf32>
    "tpu.trace_start"() <{level = 10 : i32, message = "bqk,bkd->bqd"}> : () -> ()
    %cst_26 = arith.constant dense<0.000000e+00> : vector<2x8x8xf32>
    %70 = tpu.matmul %69, %56, %cst_26 {dimension_numbers = #tpu.dot_dimension_numbers<[2], [1], [1], [2], [0, 0, 0, 1, 1, 2], [0], [0]>} : vector<2x8x8xf32>, vector<2x8x8xf32>, vector<2x8x8xf32> -> vector<2x8x8xf32>
    "tpu.trace_stop"() : () -> ()
    %71 = vector.extract_strided_slice %19 {offsets = [0, 0, 24], sizes = [2, 8, 8], strides = [1, 1, 1]} : vector<2x8x128xf32> to vector<2x8x8xf32>
    %72 = vector.extract_strided_slice %19 {offsets = [0, 0, 56], sizes = [2, 8, 8], strides = [1, 1, 1]} : vector<2x8x128xf32> to vector<2x8x8xf32>
    %73 = vector.extract_strided_slice %19 {offsets = [0, 0, 88], sizes = [2, 8, 8], strides = [1, 1, 1]} : vector<2x8x128xf32> to vector<2x8x8xf32>
    "tpu.trace_start"() <{level = 10 : i32, message = "bqd,bkd->bqk"}> : () -> ()
    %cst_27 = arith.constant dense<0.000000e+00> : vector<2x8x8xf32>
    %74 = tpu.matmul %71, %72, %cst_27 {dimension_numbers = #tpu.dot_dimension_numbers<[2], [2], [1], [1], [0, 0, 0, 1, 1, 1], [0], [0]>} : vector<2x8x8xf32>, vector<2x8x8xf32>, vector<2x8x8xf32> -> vector<2x8x8xf32>
    "tpu.trace_stop"() : () -> ()
    %cst_28 = arith.constant 0.353553385 : f32
    %75 = vector.broadcast %cst_28 : f32 to vector<2x8x8xf32>
    %76 = arith.mulf %74, %75 : vector<2x8x8xf32>
    %cst_29 = arith.constant dense<0xFF800000> : vector<2x8xf32>
    %77 = vector.multi_reduction <maximumf>, %76, %cst_29 [2] : vector<2x8x8xf32> to vector<2x8xf32>
    %78 = vector.shape_cast %77 : vector<2x8xf32> to vector<2x8x1xf32>
    %79 = vector.broadcast %78 : vector<2x8x1xf32> to vector<2x8x8xf32>
    %80 = arith.subf %76, %79 : vector<2x8x8xf32>
    %81 = math.exp %80 : vector<2x8x8xf32>
    %cst_30 = arith.constant dense<0.000000e+00> : vector<2x8xf32>
    %82 = vector.multi_reduction <add>, %81, %cst_30 [2] : vector<2x8x8xf32> to vector<2x8xf32>
    %83 = vector.shape_cast %82 : vector<2x8xf32> to vector<2x8x1xf32>
    %84 = tpu.reciprocal %83 {approx = true} : vector<2x8x1xf32> -> vector<2x8x1xf32>
    %85 = vector.broadcast %84 : vector<2x8x1xf32> to vector<2x8x8xf32>
    %86 = arith.mulf %81, %85 : vector<2x8x8xf32>
    "tpu.trace_start"() <{level = 10 : i32, message = "bqk,bkd->bqd"}> : () -> ()
    %cst_31 = arith.constant dense<0.000000e+00> : vector<2x8x8xf32>
    %87 = tpu.matmul %86, %73, %cst_31 {dimension_numbers = #tpu.dot_dimension_numbers<[2], [1], [1], [2], [0, 0, 0, 1, 1, 2], [0], [0]>} : vector<2x8x8xf32>, vector<2x8x8xf32>, vector<2x8x8xf32> -> vector<2x8x8xf32>
    "tpu.trace_stop"() : () -> ()
    %88 = tpu.concatenate %36, %53, %70, %87 in 2 : vector<2x8x8xf32>, vector<2x8x8xf32>, vector<2x8x8xf32>, vector<2x8x8xf32> -> vector<2x8x32xf32>
    %89 = vector.shape_cast %88 : vector<2x8x32xf32> to vector<16x32xf32>
    %c32_32 = arith.constant 32 : index
    %c0_33 = arith.constant 0 : index
    %90 = vector.load %arg3[%c32_32, %c0_33] : memref<784x128xf32, #tpu.memory_space<vmem>>, vector<32x32xf32>
    %cst_34 = arith.constant dense<0.000000e+00> : vector<16x32xf32>
    %91 = tpu.matmul %89, %90, %cst_34 {dimension_numbers = #tpu.dot_dimension_numbers<[1], [0], [0], [1], [0, 0, 1, 1], [], []>} : vector<16x32xf32>, vector<32x32xf32>, vector<16x32xf32> -> vector<16x32xf32>
    %c1 = arith.constant 1 : index
    %c0_35 = arith.constant 0 : index
    %92 = vector.load %arg4[%c1, %c0_35] : memref<48x128xf32, #tpu.memory_space<vmem>>, vector<1x32xf32>
    %93 = vector.broadcast %92 : vector<1x32xf32> to vector<16x32xf32>
    %94 = arith.addf %91, %93 : vector<16x32xf32>
    %95 = arith.addf %13, %94 : vector<16x32xf32>
    %cst_36 = arith.constant dense<0.000000e+00> : vector<16xf32>
    %96 = vector.multi_reduction <add>, %95, %cst_36 [1] : vector<16x32xf32> to vector<16xf32>
    %97 = vector.shape_cast %96 : vector<16xf32> to vector<16x1xf32>
    %cst_37 = arith.constant 3.200000e+01 : f32
    %98 = vector.broadcast %cst_37 : f32 to vector<16x1xf32>
    %99 = arith.divf %97, %98 : vector<16x1xf32>
    %100 = arith.mulf %95, %95 : vector<16x32xf32>
    %cst_38 = arith.constant dense<0.000000e+00> : vector<16xf32>
    %101 = vector.multi_reduction <add>, %100, %cst_38 [1] : vector<16x32xf32> to vector<16xf32>
    %102 = vector.shape_cast %101 : vector<16xf32> to vector<16x1xf32>
    %cst_39 = arith.constant 3.200000e+01 : f32
    %103 = vector.broadcast %cst_39 : f32 to vector<16x1xf32>
    %104 = arith.divf %102, %103 : vector<16x1xf32>
    %105 = arith.mulf %99, %99 : vector<16x1xf32>
    %106 = arith.subf %104, %105 : vector<16x1xf32>
    %107 = vector.broadcast %99 : vector<16x1xf32> to vector<16x32xf32>
    %108 = arith.subf %95, %107 : vector<16x32xf32>
    %cst_40 = arith.constant 9.99999974E-6 : f32
    %109 = vector.broadcast %cst_40 : f32 to vector<16x1xf32>
    %110 = arith.addf %106, %109 : vector<16x1xf32>
    %111 = math.rsqrt %110 : vector<16x1xf32>
    %112 = vector.broadcast %111 : vector<16x1xf32> to vector<16x32xf32>
    %113 = arith.mulf %108, %112 : vector<16x32xf32>
    %c2 = arith.constant 2 : index
    %c0_41 = arith.constant 0 : index
    %114 = vector.load %arg4[%c2, %c0_41] : memref<48x128xf32, #tpu.memory_space<vmem>>, vector<1x32xf32>
    %115 = vector.broadcast %114 : vector<1x32xf32> to vector<16x32xf32>
    %116 = arith.mulf %113, %115 : vector<16x32xf32>
    %c3 = arith.constant 3 : index
    %c0_42 = arith.constant 0 : index
    %117 = vector.load %arg4[%c3, %c0_42] : memref<48x128xf32, #tpu.memory_space<vmem>>, vector<1x32xf32>
    %118 = vector.broadcast %117 : vector<1x32xf32> to vector<16x32xf32>
    %119 = arith.addf %116, %118 : vector<16x32xf32>
    %c64 = arith.constant 64 : index
    %c0_43 = arith.constant 0 : index
    %120 = vector.load %arg3[%c64, %c0_43] : memref<784x128xf32, #tpu.memory_space<vmem>>, vector<32x64xf32>
    %cst_44 = arith.constant dense<0.000000e+00> : vector<16x64xf32>
    %121 = tpu.matmul %119, %120, %cst_44 {dimension_numbers = #tpu.dot_dimension_numbers<[1], [0], [0], [1], [0, 0, 1, 1], [], []>} : vector<16x32xf32>, vector<32x64xf32>, vector<16x64xf32> -> vector<16x64xf32>
    %c4 = arith.constant 4 : index
    %c0_45 = arith.constant 0 : index
    %122 = vector.load %arg4[%c4, %c0_45] : memref<48x128xf32, #tpu.memory_space<vmem>>, vector<1x64xf32>
    %123 = vector.broadcast %122 : vector<1x64xf32> to vector<16x64xf32>
    %124 = arith.addf %121, %123 : vector<16x64xf32>
    %cst_46 = arith.constant 0.000000e+00 : f32
    %125 = vector.broadcast %cst_46 : f32 to vector<16x64xf32>
    %126 = arith.maximumf %124, %125 : vector<16x64xf32>
    %c96 = arith.constant 96 : index
    %c0_47 = arith.constant 0 : index
    %127 = vector.load %arg3[%c96, %c0_47] : memref<784x128xf32, #tpu.memory_space<vmem>>, vector<64x32xf32>
    %cst_48 = arith.constant dense<0.000000e+00> : vector<16x32xf32>
    %128 = tpu.matmul %126, %127, %cst_48 {dimension_numbers = #tpu.dot_dimension_numbers<[1], [0], [0], [1], [0, 0, 1, 1], [], []>} : vector<16x64xf32>, vector<64x32xf32>, vector<16x32xf32> -> vector<16x32xf32>
    %c5 = arith.constant 5 : index
    %c0_49 = arith.constant 0 : index
    %129 = vector.load %arg4[%c5, %c0_49] : memref<48x128xf32, #tpu.memory_space<vmem>>, vector<1x32xf32>
    %130 = vector.broadcast %129 : vector<1x32xf32> to vector<16x32xf32>
    %131 = arith.addf %128, %130 : vector<16x32xf32>
    %132 = arith.addf %119, %131 : vector<16x32xf32>
    %cst_50 = arith.constant dense<0.000000e+00> : vector<16xf32>
    %133 = vector.multi_reduction <add>, %132, %cst_50 [1] : vector<16x32xf32> to vector<16xf32>
    %134 = vector.shape_cast %133 : vector<16xf32> to vector<16x1xf32>
    %cst_51 = arith.constant 3.200000e+01 : f32
    %135 = vector.broadcast %cst_51 : f32 to vector<16x1xf32>
    %136 = arith.divf %134, %135 : vector<16x1xf32>
    %137 = arith.mulf %132, %132 : vector<16x32xf32>
    %cst_52 = arith.constant dense<0.000000e+00> : vector<16xf32>
    %138 = vector.multi_reduction <add>, %137, %cst_52 [1] : vector<16x32xf32> to vector<16xf32>
    %139 = vector.shape_cast %138 : vector<16xf32> to vector<16x1xf32>
    %cst_53 = arith.constant 3.200000e+01 : f32
    %140 = vector.broadcast %cst_53 : f32 to vector<16x1xf32>
    %141 = arith.divf %139, %140 : vector<16x1xf32>
    %142 = arith.mulf %136, %136 : vector<16x1xf32>
    %143 = arith.subf %141, %142 : vector<16x1xf32>
    %144 = vector.broadcast %136 : vector<16x1xf32> to vector<16x32xf32>
    %145 = arith.subf %132, %144 : vector<16x32xf32>
    %cst_54 = arith.constant 9.99999974E-6 : f32
    %146 = vector.broadcast %cst_54 : f32 to vector<16x1xf32>
    %147 = arith.addf %143, %146 : vector<16x1xf32>
    %148 = math.rsqrt %147 : vector<16x1xf32>
    %149 = vector.broadcast %148 : vector<16x1xf32> to vector<16x32xf32>
    %150 = arith.mulf %145, %149 : vector<16x32xf32>
    %c6 = arith.constant 6 : index
    %c0_55 = arith.constant 0 : index
    %151 = vector.load %arg4[%c6, %c0_55] : memref<48x128xf32, #tpu.memory_space<vmem>>, vector<1x32xf32>
    %152 = vector.broadcast %151 : vector<1x32xf32> to vector<16x32xf32>
    %153 = arith.mulf %150, %152 : vector<16x32xf32>
    %c7 = arith.constant 7 : index
    %c0_56 = arith.constant 0 : index
    %154 = vector.load %arg4[%c7, %c0_56] : memref<48x128xf32, #tpu.memory_space<vmem>>, vector<1x32xf32>
    %155 = vector.broadcast %154 : vector<1x32xf32> to vector<16x32xf32>
    %156 = arith.addf %153, %155 : vector<16x32xf32>
    %c160 = arith.constant 160 : index
    %c0_57 = arith.constant 0 : index
    %157 = vector.load %arg3[%c160, %c0_57] : memref<784x128xf32, #tpu.memory_space<vmem>>, vector<32x128xf32>
    %cst_58 = arith.constant dense<0.000000e+00> : vector<16x128xf32>
    %158 = tpu.matmul %156, %157, %cst_58 {dimension_numbers = #tpu.dot_dimension_numbers<[1], [0], [0], [1], [0, 0, 1, 1], [], []>} : vector<16x32xf32>, vector<32x128xf32>, vector<16x128xf32> -> vector<16x128xf32>
    %c8 = arith.constant 8 : index
    %c0_59 = arith.constant 0 : index
    %159 = vector.load %arg4[%c8, %c0_59] : memref<48x128xf32, #tpu.memory_space<vmem>>, vector<1x128xf32>
    %160 = vector.broadcast %159 : vector<1x128xf32> to vector<16x128xf32>
    %161 = arith.addf %158, %160 : vector<16x128xf32>
    %162 = vector.shape_cast %161 : vector<16x128xf32> to vector<2x8x128xf32>
    %163 = vector.extract_strided_slice %162 {offsets = [0, 0, 0], sizes = [2, 8, 8], strides = [1, 1, 1]} : vector<2x8x128xf32> to vector<2x8x8xf32>
    %164 = vector.extract_strided_slice %162 {offsets = [0, 0, 32], sizes = [2, 8, 8], strides = [1, 1, 1]} : vector<2x8x128xf32> to vector<2x8x8xf32>
    %165 = vector.extract_strided_slice %162 {offsets = [0, 0, 64], sizes = [2, 8, 8], strides = [1, 1, 1]} : vector<2x8x128xf32> to vector<2x8x8xf32>
    "tpu.trace_start"() <{level = 10 : i32, message = "bqd,bkd->bqk"}> : () -> ()
    %cst_60 = arith.constant dense<0.000000e+00> : vector<2x8x8xf32>
    %166 = tpu.matmul %163, %164, %cst_60 {dimension_numbers = #tpu.dot_dimension_numbers<[2], [2], [1], [1], [0, 0, 0, 1, 1, 1], [0], [0]>} : vector<2x8x8xf32>, vector<2x8x8xf32>, vector<2x8x8xf32> -> vector<2x8x8xf32>
    "tpu.trace_stop"() : () -> ()
    %cst_61 = arith.constant 0.353553385 : f32
    %167 = vector.broadcast %cst_61 : f32 to vector<2x8x8xf32>
    %168 = arith.mulf %166, %167 : vector<2x8x8xf32>
    %cst_62 = arith.constant dense<0xFF800000> : vector<2x8xf32>
    %169 = vector.multi_reduction <maximumf>, %168, %cst_62 [2] : vector<2x8x8xf32> to vector<2x8xf32>
    %170 = vector.shape_cast %169 : vector<2x8xf32> to vector<2x8x1xf32>
    %171 = vector.broadcast %170 : vector<2x8x1xf32> to vector<2x8x8xf32>
    %172 = arith.subf %168, %171 : vector<2x8x8xf32>
    %173 = math.exp %172 : vector<2x8x8xf32>
    %cst_63 = arith.constant dense<0.000000e+00> : vector<2x8xf32>
    %174 = vector.multi_reduction <add>, %173, %cst_63 [2] : vector<2x8x8xf32> to vector<2x8xf32>
    %175 = vector.shape_cast %174 : vector<2x8xf32> to vector<2x8x1xf32>
    %176 = tpu.reciprocal %175 {approx = true} : vector<2x8x1xf32> -> vector<2x8x1xf32>
    %177 = vector.broadcast %176 : vector<2x8x1xf32> to vector<2x8x8xf32>
    %178 = arith.mulf %173, %177 : vector<2x8x8xf32>
    "tpu.trace_start"() <{level = 10 : i32, message = "bqk,bkd->bqd"}> : () -> ()
    %cst_64 = arith.constant dense<0.000000e+00> : vector<2x8x8xf32>
    %179 = tpu.matmul %178, %165, %cst_64 {dimension_numbers = #tpu.dot_dimension_numbers<[2], [1], [1], [2], [0, 0, 0, 1, 1, 2], [0], [0]>} : vector<2x8x8xf32>, vector<2x8x8xf32>, vector<2x8x8xf32> -> vector<2x8x8xf32>
    "tpu.trace_stop"() : () -> ()
    %180 = vector.extract_strided_slice %162 {offsets = [0, 0, 8], sizes = [2, 8, 8], strides = [1, 1, 1]} : vector<2x8x128xf32> to vector<2x8x8xf32>
    %181 = vector.extract_strided_slice %162 {offsets = [0, 0, 40], sizes = [2, 8, 8], strides = [1, 1, 1]} : vector<2x8x128xf32> to vector<2x8x8xf32>
    %182 = vector.extract_strided_slice %162 {offsets = [0, 0, 72], sizes = [2, 8, 8], strides = [1, 1, 1]} : vector<2x8x128xf32> to vector<2x8x8xf32>
    "tpu.trace_start"() <{level = 10 : i32, message = "bqd,bkd->bqk"}> : () -> ()
    %cst_65 = arith.constant dense<0.000000e+00> : vector<2x8x8xf32>
    %183 = tpu.matmul %180, %181, %cst_65 {dimension_numbers = #tpu.dot_dimension_numbers<[2], [2], [1], [1], [0, 0, 0, 1, 1, 1], [0], [0]>} : vector<2x8x8xf32>, vector<2x8x8xf32>, vector<2x8x8xf32> -> vector<2x8x8xf32>
    "tpu.trace_stop"() : () -> ()
    %cst_66 = arith.constant 0.353553385 : f32
    %184 = vector.broadcast %cst_66 : f32 to vector<2x8x8xf32>
    %185 = arith.mulf %183, %184 : vector<2x8x8xf32>
    %cst_67 = arith.constant dense<0xFF800000> : vector<2x8xf32>
    %186 = vector.multi_reduction <maximumf>, %185, %cst_67 [2] : vector<2x8x8xf32> to vector<2x8xf32>
    %187 = vector.shape_cast %186 : vector<2x8xf32> to vector<2x8x1xf32>
    %188 = vector.broadcast %187 : vector<2x8x1xf32> to vector<2x8x8xf32>
    %189 = arith.subf %185, %188 : vector<2x8x8xf32>
    %190 = math.exp %189 : vector<2x8x8xf32>
    %cst_68 = arith.constant dense<0.000000e+00> : vector<2x8xf32>
    %191 = vector.multi_reduction <add>, %190, %cst_68 [2] : vector<2x8x8xf32> to vector<2x8xf32>
    %192 = vector.shape_cast %191 : vector<2x8xf32> to vector<2x8x1xf32>
    %193 = tpu.reciprocal %192 {approx = true} : vector<2x8x1xf32> -> vector<2x8x1xf32>
    %194 = vector.broadcast %193 : vector<2x8x1xf32> to vector<2x8x8xf32>
    %195 = arith.mulf %190, %194 : vector<2x8x8xf32>
    "tpu.trace_start"() <{level = 10 : i32, message = "bqk,bkd->bqd"}> : () -> ()
    %cst_69 = arith.constant dense<0.000000e+00> : vector<2x8x8xf32>
    %196 = tpu.matmul %195, %182, %cst_69 {dimension_numbers = #tpu.dot_dimension_numbers<[2], [1], [1], [2], [0, 0, 0, 1, 1, 2], [0], [0]>} : vector<2x8x8xf32>, vector<2x8x8xf32>, vector<2x8x8xf32> -> vector<2x8x8xf32>
    "tpu.trace_stop"() : () -> ()
    %197 = vector.extract_strided_slice %162 {offsets = [0, 0, 16], sizes = [2, 8, 8], strides = [1, 1, 1]} : vector<2x8x128xf32> to vector<2x8x8xf32>
    %198 = vector.extract_strided_slice %162 {offsets = [0, 0, 48], sizes = [2, 8, 8], strides = [1, 1, 1]} : vector<2x8x128xf32> to vector<2x8x8xf32>
    %199 = vector.extract_strided_slice %162 {offsets = [0, 0, 80], sizes = [2, 8, 8], strides = [1, 1, 1]} : vector<2x8x128xf32> to vector<2x8x8xf32>
    "tpu.trace_start"() <{level = 10 : i32, message = "bqd,bkd->bqk"}> : () -> ()
    %cst_70 = arith.constant dense<0.000000e+00> : vector<2x8x8xf32>
    %200 = tpu.matmul %197, %198, %cst_70 {dimension_numbers = #tpu.dot_dimension_numbers<[2], [2], [1], [1], [0, 0, 0, 1, 1, 1], [0], [0]>} : vector<2x8x8xf32>, vector<2x8x8xf32>, vector<2x8x8xf32> -> vector<2x8x8xf32>
    "tpu.trace_stop"() : () -> ()
    %cst_71 = arith.constant 0.353553385 : f32
    %201 = vector.broadcast %cst_71 : f32 to vector<2x8x8xf32>
    %202 = arith.mulf %200, %201 : vector<2x8x8xf32>
    %cst_72 = arith.constant dense<0xFF800000> : vector<2x8xf32>
    %203 = vector.multi_reduction <maximumf>, %202, %cst_72 [2] : vector<2x8x8xf32> to vector<2x8xf32>
    %204 = vector.shape_cast %203 : vector<2x8xf32> to vector<2x8x1xf32>
    %205 = vector.broadcast %204 : vector<2x8x1xf32> to vector<2x8x8xf32>
    %206 = arith.subf %202, %205 : vector<2x8x8xf32>
    %207 = math.exp %206 : vector<2x8x8xf32>
    %cst_73 = arith.constant dense<0.000000e+00> : vector<2x8xf32>
    %208 = vector.multi_reduction <add>, %207, %cst_73 [2] : vector<2x8x8xf32> to vector<2x8xf32>
    %209 = vector.shape_cast %208 : vector<2x8xf32> to vector<2x8x1xf32>
    %210 = tpu.reciprocal %209 {approx = true} : vector<2x8x1xf32> -> vector<2x8x1xf32>
    %211 = vector.broadcast %210 : vector<2x8x1xf32> to vector<2x8x8xf32>
    %212 = arith.mulf %207, %211 : vector<2x8x8xf32>
    "tpu.trace_start"() <{level = 10 : i32, message = "bqk,bkd->bqd"}> : () -> ()
    %cst_74 = arith.constant dense<0.000000e+00> : vector<2x8x8xf32>
    %213 = tpu.matmul %212, %199, %cst_74 {dimension_numbers = #tpu.dot_dimension_numbers<[2], [1], [1], [2], [0, 0, 0, 1, 1, 2], [0], [0]>} : vector<2x8x8xf32>, vector<2x8x8xf32>, vector<2x8x8xf32> -> vector<2x8x8xf32>
    "tpu.trace_stop"() : () -> ()
    %214 = vector.extract_strided_slice %162 {offsets = [0, 0, 24], sizes = [2, 8, 8], strides = [1, 1, 1]} : vector<2x8x128xf32> to vector<2x8x8xf32>
    %215 = vector.extract_strided_slice %162 {offsets = [0, 0, 56], sizes = [2, 8, 8], strides = [1, 1, 1]} : vector<2x8x128xf32> to vector<2x8x8xf32>
    %216 = vector.extract_strided_slice %162 {offsets = [0, 0, 88], sizes = [2, 8, 8], strides = [1, 1, 1]} : vector<2x8x128xf32> to vector<2x8x8xf32>
    "tpu.trace_start"() <{level = 10 : i32, message = "bqd,bkd->bqk"}> : () -> ()
    %cst_75 = arith.constant dense<0.000000e+00> : vector<2x8x8xf32>
    %217 = tpu.matmul %214, %215, %cst_75 {dimension_numbers = #tpu.dot_dimension_numbers<[2], [2], [1], [1], [0, 0, 0, 1, 1, 1], [0], [0]>} : vector<2x8x8xf32>, vector<2x8x8xf32>, vector<2x8x8xf32> -> vector<2x8x8xf32>
    "tpu.trace_stop"() : () -> ()
    %cst_76 = arith.constant 0.353553385 : f32
    %218 = vector.broadcast %cst_76 : f32 to vector<2x8x8xf32>
    %219 = arith.mulf %217, %218 : vector<2x8x8xf32>
    %cst_77 = arith.constant dense<0xFF800000> : vector<2x8xf32>
    %220 = vector.multi_reduction <maximumf>, %219, %cst_77 [2] : vector<2x8x8xf32> to vector<2x8xf32>
    %221 = vector.shape_cast %220 : vector<2x8xf32> to vector<2x8x1xf32>
    %222 = vector.broadcast %221 : vector<2x8x1xf32> to vector<2x8x8xf32>
    %223 = arith.subf %219, %222 : vector<2x8x8xf32>
    %224 = math.exp %223 : vector<2x8x8xf32>
    %cst_78 = arith.constant dense<0.000000e+00> : vector<2x8xf32>
    %225 = vector.multi_reduction <add>, %224, %cst_78 [2] : vector<2x8x8xf32> to vector<2x8xf32>
    %226 = vector.shape_cast %225 : vector<2x8xf32> to vector<2x8x1xf32>
    %227 = tpu.reciprocal %226 {approx = true} : vector<2x8x1xf32> -> vector<2x8x1xf32>
    %228 = vector.broadcast %227 : vector<2x8x1xf32> to vector<2x8x8xf32>
    %229 = arith.mulf %224, %228 : vector<2x8x8xf32>
    "tpu.trace_start"() <{level = 10 : i32, message = "bqk,bkd->bqd"}> : () -> ()
    %cst_79 = arith.constant dense<0.000000e+00> : vector<2x8x8xf32>
    %230 = tpu.matmul %229, %216, %cst_79 {dimension_numbers = #tpu.dot_dimension_numbers<[2], [1], [1], [2], [0, 0, 0, 1, 1, 2], [0], [0]>} : vector<2x8x8xf32>, vector<2x8x8xf32>, vector<2x8x8xf32> -> vector<2x8x8xf32>
    "tpu.trace_stop"() : () -> ()
    %231 = tpu.concatenate %179, %196, %213, %230 in 2 : vector<2x8x8xf32>, vector<2x8x8xf32>, vector<2x8x8xf32>, vector<2x8x8xf32> -> vector<2x8x32xf32>
    %232 = vector.shape_cast %231 : vector<2x8x32xf32> to vector<16x32xf32>
    %c192 = arith.constant 192 : index
    %c0_80 = arith.constant 0 : index
    %233 = vector.load %arg3[%c192, %c0_80] : memref<784x128xf32, #tpu.memory_space<vmem>>, vector<32x32xf32>
    %cst_81 = arith.constant dense<0.000000e+00> : vector<16x32xf32>
    %234 = tpu.matmul %232, %233, %cst_81 {dimension_numbers = #tpu.dot_dimension_numbers<[1], [0], [0], [1], [0, 0, 1, 1], [], []>} : vector<16x32xf32>, vector<32x32xf32>, vector<16x32xf32> -> vector<16x32xf32>
    %c9 = arith.constant 9 : index
    %c0_82 = arith.constant 0 : index
    %235 = vector.load %arg4[%c9, %c0_82] : memref<48x128xf32, #tpu.memory_space<vmem>>, vector<1x32xf32>
    %236 = vector.broadcast %235 : vector<1x32xf32> to vector<16x32xf32>
    %237 = arith.addf %234, %236 : vector<16x32xf32>
    %238 = arith.addf %156, %237 : vector<16x32xf32>
    %cst_83 = arith.constant dense<0.000000e+00> : vector<16xf32>
    %239 = vector.multi_reduction <add>, %238, %cst_83 [1] : vector<16x32xf32> to vector<16xf32>
    %240 = vector.shape_cast %239 : vector<16xf32> to vector<16x1xf32>
    %cst_84 = arith.constant 3.200000e+01 : f32
    %241 = vector.broadcast %cst_84 : f32 to vector<16x1xf32>
    %242 = arith.divf %240, %241 : vector<16x1xf32>
    %243 = arith.mulf %238, %238 : vector<16x32xf32>
    %cst_85 = arith.constant dense<0.000000e+00> : vector<16xf32>
    %244 = vector.multi_reduction <add>, %243, %cst_85 [1] : vector<16x32xf32> to vector<16xf32>
    %245 = vector.shape_cast %244 : vector<16xf32> to vector<16x1xf32>
    %cst_86 = arith.constant 3.200000e+01 : f32
    %246 = vector.broadcast %cst_86 : f32 to vector<16x1xf32>
    %247 = arith.divf %245, %246 : vector<16x1xf32>
    %248 = arith.mulf %242, %242 : vector<16x1xf32>
    %249 = arith.subf %247, %248 : vector<16x1xf32>
    %250 = vector.broadcast %242 : vector<16x1xf32> to vector<16x32xf32>
    %251 = arith.subf %238, %250 : vector<16x32xf32>
    %cst_87 = arith.constant 9.99999974E-6 : f32
    %252 = vector.broadcast %cst_87 : f32 to vector<16x1xf32>
    %253 = arith.addf %249, %252 : vector<16x1xf32>
    %254 = math.rsqrt %253 : vector<16x1xf32>
    %255 = vector.broadcast %254 : vector<16x1xf32> to vector<16x32xf32>
    %256 = arith.mulf %251, %255 : vector<16x32xf32>
    %c10 = arith.constant 10 : index
    %c0_88 = arith.constant 0 : index
    %257 = vector.load %arg4[%c10, %c0_88] : memref<48x128xf32, #tpu.memory_space<vmem>>, vector<1x32xf32>
    %258 = vector.broadcast %257 : vector<1x32xf32> to vector<16x32xf32>
    %259 = arith.mulf %256, %258 : vector<16x32xf32>
    %c11 = arith.constant 11 : index
    %c0_89 = arith.constant 0 : index
    %260 = vector.load %arg4[%c11, %c0_89] : memref<48x128xf32, #tpu.memory_space<vmem>>, vector<1x32xf32>
    %261 = vector.broadcast %260 : vector<1x32xf32> to vector<16x32xf32>
    %262 = arith.addf %259, %261 : vector<16x32xf32>
    %c224 = arith.constant 224 : index
    %c0_90 = arith.constant 0 : index
    %263 = vector.load %arg3[%c224, %c0_90] : memref<784x128xf32, #tpu.memory_space<vmem>>, vector<32x64xf32>
    %cst_91 = arith.constant dense<0.000000e+00> : vector<16x64xf32>
    %264 = tpu.matmul %262, %263, %cst_91 {dimension_numbers = #tpu.dot_dimension_numbers<[1], [0], [0], [1], [0, 0, 1, 1], [], []>} : vector<16x32xf32>, vector<32x64xf32>, vector<16x64xf32> -> vector<16x64xf32>
    %c12 = arith.constant 12 : index
    %c0_92 = arith.constant 0 : index
    %265 = vector.load %arg4[%c12, %c0_92] : memref<48x128xf32, #tpu.memory_space<vmem>>, vector<1x64xf32>
    %266 = vector.broadcast %265 : vector<1x64xf32> to vector<16x64xf32>
    %267 = arith.addf %264, %266 : vector<16x64xf32>
    %cst_93 = arith.constant 0.000000e+00 : f32
    %268 = vector.broadcast %cst_93 : f32 to vector<16x64xf32>
    %269 = arith.maximumf %267, %268 : vector<16x64xf32>
    %c256 = arith.constant 256 : index
    %c0_94 = arith.constant 0 : index
    %270 = vector.load %arg3[%c256, %c0_94] : memref<784x128xf32, #tpu.memory_space<vmem>>, vector<64x32xf32>
    %cst_95 = arith.constant dense<0.000000e+00> : vector<16x32xf32>
    %271 = tpu.matmul %269, %270, %cst_95 {dimension_numbers = #tpu.dot_dimension_numbers<[1], [0], [0], [1], [0, 0, 1, 1], [], []>} : vector<16x64xf32>, vector<64x32xf32>, vector<16x32xf32> -> vector<16x32xf32>
    %c13 = arith.constant 13 : index
    %c0_96 = arith.constant 0 : index
    %272 = vector.load %arg4[%c13, %c0_96] : memref<48x128xf32, #tpu.memory_space<vmem>>, vector<1x32xf32>
    %273 = vector.broadcast %272 : vector<1x32xf32> to vector<16x32xf32>
    %274 = arith.addf %271, %273 : vector<16x32xf32>
    %275 = arith.addf %262, %274 : vector<16x32xf32>
    %cst_97 = arith.constant dense<0.000000e+00> : vector<16xf32>
    %276 = vector.multi_reduction <add>, %275, %cst_97 [1] : vector<16x32xf32> to vector<16xf32>
    %277 = vector.shape_cast %276 : vector<16xf32> to vector<16x1xf32>
    %cst_98 = arith.constant 3.200000e+01 : f32
    %278 = vector.broadcast %cst_98 : f32 to vector<16x1xf32>
    %279 = arith.divf %277, %278 : vector<16x1xf32>
    %280 = arith.mulf %275, %275 : vector<16x32xf32>
    %cst_99 = arith.constant dense<0.000000e+00> : vector<16xf32>
    %281 = vector.multi_reduction <add>, %280, %cst_99 [1] : vector<16x32xf32> to vector<16xf32>
    %282 = vector.shape_cast %281 : vector<16xf32> to vector<16x1xf32>
    %cst_100 = arith.constant 3.200000e+01 : f32
    %283 = vector.broadcast %cst_100 : f32 to vector<16x1xf32>
    %284 = arith.divf %282, %283 : vector<16x1xf32>
    %285 = arith.mulf %279, %279 : vector<16x1xf32>
    %286 = arith.subf %284, %285 : vector<16x1xf32>
    %287 = vector.broadcast %279 : vector<16x1xf32> to vector<16x32xf32>
    %288 = arith.subf %275, %287 : vector<16x32xf32>
    %cst_101 = arith.constant 9.99999974E-6 : f32
    %289 = vector.broadcast %cst_101 : f32 to vector<16x1xf32>
    %290 = arith.addf %286, %289 : vector<16x1xf32>
    %291 = math.rsqrt %290 : vector<16x1xf32>
    %292 = vector.broadcast %291 : vector<16x1xf32> to vector<16x32xf32>
    %293 = arith.mulf %288, %292 : vector<16x32xf32>
    %c14 = arith.constant 14 : index
    %c0_102 = arith.constant 0 : index
    %294 = vector.load %arg4[%c14, %c0_102] : memref<48x128xf32, #tpu.memory_space<vmem>>, vector<1x32xf32>
    %295 = vector.broadcast %294 : vector<1x32xf32> to vector<16x32xf32>
    %296 = arith.mulf %293, %295 : vector<16x32xf32>
    %c15 = arith.constant 15 : index
    %c0_103 = arith.constant 0 : index
    %297 = vector.load %arg4[%c15, %c0_103] : memref<48x128xf32, #tpu.memory_space<vmem>>, vector<1x32xf32>
    %298 = vector.broadcast %297 : vector<1x32xf32> to vector<16x32xf32>
    %299 = arith.addf %296, %298 : vector<16x32xf32>
    %c672 = arith.constant 672 : index
    %c0_104 = arith.constant 0 : index
    %300 = vector.load %arg3[%c672, %c0_104] : memref<784x128xf32, #tpu.memory_space<vmem>>, vector<32x64xf32>
    %cst_105 = arith.constant dense<0.000000e+00> : vector<16x64xf32>
    %301 = tpu.matmul %299, %300, %cst_105 {dimension_numbers = #tpu.dot_dimension_numbers<[1], [0], [0], [1], [0, 0, 1, 1], [], []>} : vector<16x32xf32>, vector<32x64xf32>, vector<16x64xf32> -> vector<16x64xf32>
    %c33 = arith.constant 33 : index
    %c0_106 = arith.constant 0 : index
    %302 = vector.load %arg4[%c33, %c0_106] : memref<48x128xf32, #tpu.memory_space<vmem>>, vector<1x64xf32>
    %303 = vector.broadcast %302 : vector<1x64xf32> to vector<16x64xf32>
    %304 = arith.addf %301, %303 : vector<16x64xf32>
    %305 = vector.shape_cast %304 : vector<16x64xf32> to vector<2x8x64xf32>
    %c704 = arith.constant 704 : index
    %c0_107 = arith.constant 0 : index
    %306 = vector.load %arg3[%c704, %c0_107] : memref<784x128xf32, #tpu.memory_space<vmem>>, vector<4x64xf32>
    %cst_108 = arith.constant dense<0.000000e+00> : vector<2x64xf32>
    %307 = tpu.matmul %2, %306, %cst_108 {dimension_numbers = #tpu.dot_dimension_numbers<[1], [0], [0], [1], [0, 0, 1, 1], [], []>} : vector<2x4xf32>, vector<4x64xf32>, vector<2x64xf32> -> vector<2x64xf32>
    %308 = vector.shape_cast %307 : vector<2x64xf32> to vector<2x1x64xf32>
    %309 = vector.broadcast %308 : vector<2x1x64xf32> to vector<2x8x64xf32>
    %310 = arith.addf %305, %309 : vector<2x8x64xf32>
    %c0_109 = arith.constant 0 : index
    %c0_110 = arith.constant 0 : index
    %c32_111 = arith.constant 32 : index
    %311 = vector.load %arg5[%c0_109, %c0_110, %c32_111] : memref<2x8x96xf32, #tpu.memory_space<vmem>>, vector<2x8x64xf32>
    tpu.vector_store %arg5[%c0_109, %c0_110, %c32_111], %310 {strides = array<i32>} : memref<2x8x96xf32, #tpu.memory_space<vmem>>, vector<2x8x64xf32>,
    %312 = vector.extract_strided_slice %310 {offsets = [0, 0, 0], sizes = [2, 8, 32], strides = [1, 1, 1]} : vector<2x8x64xf32> to vector<2x8x32xf32>
    %313 = vector.extract_strided_slice %310 {offsets = [0, 0, 32], sizes = [2, 8, 32], strides = [1, 1, 1]} : vector<2x8x64xf32> to vector<2x8x32xf32>
    %c0_112 = arith.constant 0 : index
    %c0_113 = arith.constant 0 : index
    %c0_114 = arith.constant 0 : index
    %314 = vector.load %arg2[%c0_112, %c0_113, %c0_114] : memref<2x8x32xf32, #tpu.memory_space<vmem>>, vector<2x8x32xf32>
    %cst_115 = arith.constant 5.000000e-01 : f32
    %315 = vector.broadcast %cst_115 : f32 to vector<2x8x32xf32>
    %316 = arith.mulf %315, %313 : vector<2x8x32xf32>
    %317 = math.exp %316 : vector<2x8x32xf32>
    %318 = arith.mulf %314, %317 : vector<2x8x32xf32>
    %319 = arith.addf %312, %318 : vector<2x8x32xf32>
    %320 = vector.shape_cast %319 : vector<2x8x32xf32> to vector<16x32xf32>
    %c712 = arith.constant 712 : index
    %c0_116 = arith.constant 0 : index
    %321 = vector.load %arg3[%c712, %c0_116] : memref<784x128xf32, #tpu.memory_space<vmem>>, vector<32x32xf32>
    %cst_117 = arith.constant dense<0.000000e+00> : vector<16x32xf32>
    %322 = tpu.matmul %320, %321, %cst_117 {dimension_numbers = #tpu.dot_dimension_numbers<[1], [0], [0], [1], [0, 0, 1, 1], [], []>} : vector<16x32xf32>, vector<32x32xf32>, vector<16x32xf32> -> vector<16x32xf32>
    %c34 = arith.constant 34 : index
    %c0_118 = arith.constant 0 : index
    %323 = vector.load %arg4[%c34, %c0_118] : memref<48x128xf32, #tpu.memory_space<vmem>>, vector<1x32xf32>
    %324 = vector.broadcast %323 : vector<1x32xf32> to vector<16x32xf32>
    %325 = arith.addf %322, %324 : vector<16x32xf32>
    %326 = vector.shape_cast %325 : vector<16x32xf32> to vector<2x8x32xf32>
    %c744 = arith.constant 744 : index
    %c0_119 = arith.constant 0 : index
    %327 = vector.load %arg3[%c744, %c0_119] : memref<784x128xf32, #tpu.memory_space<vmem>>, vector<4x32xf32>
    %cst_120 = arith.constant dense<0.000000e+00> : vector<2x32xf32>
    %328 = tpu.matmul %2, %327, %cst_120 {dimension_numbers = #tpu.dot_dimension_numbers<[1], [0], [0], [1], [0, 0, 1, 1], [], []>} : vector<2x4xf32>, vector<4x32xf32>, vector<2x32xf32> -> vector<2x32xf32>
    %329 = vector.shape_cast %328 : vector<2x32xf32> to vector<2x1x32xf32>
    %330 = vector.broadcast %329 : vector<2x1x32xf32> to vector<2x8x32xf32>
    %331 = arith.addf %326, %330 : vector<2x8x32xf32>
    %332 = vector.shape_cast %3 : vector<8x32xf32> to vector<1x8x32xf32>
    %333 = vector.broadcast %332 : vector<1x8x32xf32> to vector<2x8x32xf32>
    %334 = arith.addf %331, %333 : vector<2x8x32xf32>
    %335 = vector.shape_cast %334 : vector<2x8x32xf32> to vector<16x32xf32>
    %c320 = arith.constant 320 : index
    %c0_121 = arith.constant 0 : index
    %336 = vector.load %arg3[%c320, %c0_121] : memref<784x128xf32, #tpu.memory_space<vmem>>, vector<32x128xf32>
    %cst_122 = arith.constant dense<0.000000e+00> : vector<16x128xf32>
    %337 = tpu.matmul %335, %336, %cst_122 {dimension_numbers = #tpu.dot_dimension_numbers<[1], [0], [0], [1], [0, 0, 1, 1], [], []>} : vector<16x32xf32>, vector<32x128xf32>, vector<16x128xf32> -> vector<16x128xf32>
    %c16 = arith.constant 16 : index
    %c0_123 = arith.constant 0 : index
    %338 = vector.load %arg4[%c16, %c0_123] : memref<48x128xf32, #tpu.memory_space<vmem>>, vector<1x128xf32>
    %339 = vector.broadcast %338 : vector<1x128xf32> to vector<16x128xf32>
    %340 = arith.addf %337, %339 : vector<16x128xf32>
    %341 = vector.shape_cast %340 : vector<16x128xf32> to vector<2x8x128xf32>
    %342 = vector.extract_strided_slice %341 {offsets = [0, 0, 0], sizes = [2, 8, 8], strides = [1, 1, 1]} : vector<2x8x128xf32> to vector<2x8x8xf32>
    %343 = vector.extract_strided_slice %341 {offsets = [0, 0, 32], sizes = [2, 8, 8], strides = [1, 1, 1]} : vector<2x8x128xf32> to vector<2x8x8xf32>
    %344 = vector.extract_strided_slice %341 {offsets = [0, 0, 64], sizes = [2, 8, 8], strides = [1, 1, 1]} : vector<2x8x128xf32> to vector<2x8x8xf32>
    "tpu.trace_start"() <{level = 10 : i32, message = "bqd,bkd->bqk"}> : () -> ()
    %cst_124 = arith.constant dense<0.000000e+00> : vector<2x8x8xf32>
    %345 = tpu.matmul %342, %343, %cst_124 {dimension_numbers = #tpu.dot_dimension_numbers<[2], [2], [1], [1], [0, 0, 0, 1, 1, 1], [0], [0]>} : vector<2x8x8xf32>, vector<2x8x8xf32>, vector<2x8x8xf32> -> vector<2x8x8xf32>
    "tpu.trace_stop"() : () -> ()
    %cst_125 = arith.constant 0.353553385 : f32
    %346 = vector.broadcast %cst_125 : f32 to vector<2x8x8xf32>
    %347 = arith.mulf %345, %346 : vector<2x8x8xf32>
    %cst_126 = arith.constant dense<0xFF800000> : vector<2x8xf32>
    %348 = vector.multi_reduction <maximumf>, %347, %cst_126 [2] : vector<2x8x8xf32> to vector<2x8xf32>
    %349 = vector.shape_cast %348 : vector<2x8xf32> to vector<2x8x1xf32>
    %350 = vector.broadcast %349 : vector<2x8x1xf32> to vector<2x8x8xf32>
    %351 = arith.subf %347, %350 : vector<2x8x8xf32>
    %352 = math.exp %351 : vector<2x8x8xf32>
    %cst_127 = arith.constant dense<0.000000e+00> : vector<2x8xf32>
    %353 = vector.multi_reduction <add>, %352, %cst_127 [2] : vector<2x8x8xf32> to vector<2x8xf32>
    %354 = vector.shape_cast %353 : vector<2x8xf32> to vector<2x8x1xf32>
    %355 = tpu.reciprocal %354 {approx = true} : vector<2x8x1xf32> -> vector<2x8x1xf32>
    %356 = vector.broadcast %355 : vector<2x8x1xf32> to vector<2x8x8xf32>
    %357 = arith.mulf %352, %356 : vector<2x8x8xf32>
    "tpu.trace_start"() <{level = 10 : i32, message = "bqk,bkd->bqd"}> : () -> ()
    %cst_128 = arith.constant dense<0.000000e+00> : vector<2x8x8xf32>
    %358 = tpu.matmul %357, %344, %cst_128 {dimension_numbers = #tpu.dot_dimension_numbers<[2], [1], [1], [2], [0, 0, 0, 1, 1, 2], [0], [0]>} : vector<2x8x8xf32>, vector<2x8x8xf32>, vector<2x8x8xf32> -> vector<2x8x8xf32>
    "tpu.trace_stop"() : () -> ()
    %359 = vector.extract_strided_slice %341 {offsets = [0, 0, 8], sizes = [2, 8, 8], strides = [1, 1, 1]} : vector<2x8x128xf32> to vector<2x8x8xf32>
    %360 = vector.extract_strided_slice %341 {offsets = [0, 0, 40], sizes = [2, 8, 8], strides = [1, 1, 1]} : vector<2x8x128xf32> to vector<2x8x8xf32>
    %361 = vector.extract_strided_slice %341 {offsets = [0, 0, 72], sizes = [2, 8, 8], strides = [1, 1, 1]} : vector<2x8x128xf32> to vector<2x8x8xf32>
    "tpu.trace_start"() <{level = 10 : i32, message = "bqd,bkd->bqk"}> : () -> ()
    %cst_129 = arith.constant dense<0.000000e+00> : vector<2x8x8xf32>
    %362 = tpu.matmul %359, %360, %cst_129 {dimension_numbers = #tpu.dot_dimension_numbers<[2], [2], [1], [1], [0, 0, 0, 1, 1, 1], [0], [0]>} : vector<2x8x8xf32>, vector<2x8x8xf32>, vector<2x8x8xf32> -> vector<2x8x8xf32>
    "tpu.trace_stop"() : () -> ()
    %cst_130 = arith.constant 0.353553385 : f32
    %363 = vector.broadcast %cst_130 : f32 to vector<2x8x8xf32>
    %364 = arith.mulf %362, %363 : vector<2x8x8xf32>
    %cst_131 = arith.constant dense<0xFF800000> : vector<2x8xf32>
    %365 = vector.multi_reduction <maximumf>, %364, %cst_131 [2] : vector<2x8x8xf32> to vector<2x8xf32>
    %366 = vector.shape_cast %365 : vector<2x8xf32> to vector<2x8x1xf32>
    %367 = vector.broadcast %366 : vector<2x8x1xf32> to vector<2x8x8xf32>
    %368 = arith.subf %364, %367 : vector<2x8x8xf32>
    %369 = math.exp %368 : vector<2x8x8xf32>
    %cst_132 = arith.constant dense<0.000000e+00> : vector<2x8xf32>
    %370 = vector.multi_reduction <add>, %369, %cst_132 [2] : vector<2x8x8xf32> to vector<2x8xf32>
    %371 = vector.shape_cast %370 : vector<2x8xf32> to vector<2x8x1xf32>
    %372 = tpu.reciprocal %371 {approx = true} : vector<2x8x1xf32> -> vector<2x8x1xf32>
    %373 = vector.broadcast %372 : vector<2x8x1xf32> to vector<2x8x8xf32>
    %374 = arith.mulf %369, %373 : vector<2x8x8xf32>
    "tpu.trace_start"() <{level = 10 : i32, message = "bqk,bkd->bqd"}> : () -> ()
    %cst_133 = arith.constant dense<0.000000e+00> : vector<2x8x8xf32>
    %375 = tpu.matmul %374, %361, %cst_133 {dimension_numbers = #tpu.dot_dimension_numbers<[2], [1], [1], [2], [0, 0, 0, 1, 1, 2], [0], [0]>} : vector<2x8x8xf32>, vector<2x8x8xf32>, vector<2x8x8xf32> -> vector<2x8x8xf32>
    "tpu.trace_stop"() : () -> ()
    %376 = vector.extract_strided_slice %341 {offsets = [0, 0, 16], sizes = [2, 8, 8], strides = [1, 1, 1]} : vector<2x8x128xf32> to vector<2x8x8xf32>
    %377 = vector.extract_strided_slice %341 {offsets = [0, 0, 48], sizes = [2, 8, 8], strides = [1, 1, 1]} : vector<2x8x128xf32> to vector<2x8x8xf32>
    %378 = vector.extract_strided_slice %341 {offsets = [0, 0, 80], sizes = [2, 8, 8], strides = [1, 1, 1]} : vector<2x8x128xf32> to vector<2x8x8xf32>
    "tpu.trace_start"() <{level = 10 : i32, message = "bqd,bkd->bqk"}> : () -> ()
    %cst_134 = arith.constant dense<0.000000e+00> : vector<2x8x8xf32>
    %379 = tpu.matmul %376, %377, %cst_134 {dimension_numbers = #tpu.dot_dimension_numbers<[2], [2], [1], [1], [0, 0, 0, 1, 1, 1], [0], [0]>} : vector<2x8x8xf32>, vector<2x8x8xf32>, vector<2x8x8xf32> -> vector<2x8x8xf32>
    "tpu.trace_stop"() : () -> ()
    %cst_135 = arith.constant 0.353553385 : f32
    %380 = vector.broadcast %cst_135 : f32 to vector<2x8x8xf32>
    %381 = arith.mulf %379, %380 : vector<2x8x8xf32>
    %cst_136 = arith.constant dense<0xFF800000> : vector<2x8xf32>
    %382 = vector.multi_reduction <maximumf>, %381, %cst_136 [2] : vector<2x8x8xf32> to vector<2x8xf32>
    %383 = vector.shape_cast %382 : vector<2x8xf32> to vector<2x8x1xf32>
    %384 = vector.broadcast %383 : vector<2x8x1xf32> to vector<2x8x8xf32>
    %385 = arith.subf %381, %384 : vector<2x8x8xf32>
    %386 = math.exp %385 : vector<2x8x8xf32>
    %cst_137 = arith.constant dense<0.000000e+00> : vector<2x8xf32>
    %387 = vector.multi_reduction <add>, %386, %cst_137 [2] : vector<2x8x8xf32> to vector<2x8xf32>
    %388 = vector.shape_cast %387 : vector<2x8xf32> to vector<2x8x1xf32>
    %389 = tpu.reciprocal %388 {approx = true} : vector<2x8x1xf32> -> vector<2x8x1xf32>
    %390 = vector.broadcast %389 : vector<2x8x1xf32> to vector<2x8x8xf32>
    %391 = arith.mulf %386, %390 : vector<2x8x8xf32>
    "tpu.trace_start"() <{level = 10 : i32, message = "bqk,bkd->bqd"}> : () -> ()
    %cst_138 = arith.constant dense<0.000000e+00> : vector<2x8x8xf32>
    %392 = tpu.matmul %391, %378, %cst_138 {dimension_numbers = #tpu.dot_dimension_numbers<[2], [1], [1], [2], [0, 0, 0, 1, 1, 2], [0], [0]>} : vector<2x8x8xf32>, vector<2x8x8xf32>, vector<2x8x8xf32> -> vector<2x8x8xf32>
    "tpu.trace_stop"() : () -> ()
    %393 = vector.extract_strided_slice %341 {offsets = [0, 0, 24], sizes = [2, 8, 8], strides = [1, 1, 1]} : vector<2x8x128xf32> to vector<2x8x8xf32>
    %394 = vector.extract_strided_slice %341 {offsets = [0, 0, 56], sizes = [2, 8, 8], strides = [1, 1, 1]} : vector<2x8x128xf32> to vector<2x8x8xf32>
    %395 = vector.extract_strided_slice %341 {offsets = [0, 0, 88], sizes = [2, 8, 8], strides = [1, 1, 1]} : vector<2x8x128xf32> to vector<2x8x8xf32>
    "tpu.trace_start"() <{level = 10 : i32, message = "bqd,bkd->bqk"}> : () -> ()
    %cst_139 = arith.constant dense<0.000000e+00> : vector<2x8x8xf32>
    %396 = tpu.matmul %393, %394, %cst_139 {dimension_numbers = #tpu.dot_dimension_numbers<[2], [2], [1], [1], [0, 0, 0, 1, 1, 1], [0], [0]>} : vector<2x8x8xf32>, vector<2x8x8xf32>, vector<2x8x8xf32> -> vector<2x8x8xf32>
    "tpu.trace_stop"() : () -> ()
    %cst_140 = arith.constant 0.353553385 : f32
    %397 = vector.broadcast %cst_140 : f32 to vector<2x8x8xf32>
    %398 = arith.mulf %396, %397 : vector<2x8x8xf32>
    %cst_141 = arith.constant dense<0xFF800000> : vector<2x8xf32>
    %399 = vector.multi_reduction <maximumf>, %398, %cst_141 [2] : vector<2x8x8xf32> to vector<2x8xf32>
    %400 = vector.shape_cast %399 : vector<2x8xf32> to vector<2x8x1xf32>
    %401 = vector.broadcast %400 : vector<2x8x1xf32> to vector<2x8x8xf32>
    %402 = arith.subf %398, %401 : vector<2x8x8xf32>
    %403 = math.exp %402 : vector<2x8x8xf32>
    %cst_142 = arith.constant dense<0.000000e+00> : vector<2x8xf32>
    %404 = vector.multi_reduction <add>, %403, %cst_142 [2] : vector<2x8x8xf32> to vector<2x8xf32>
    %405 = vector.shape_cast %404 : vector<2x8xf32> to vector<2x8x1xf32>
    %406 = tpu.reciprocal %405 {approx = true} : vector<2x8x1xf32> -> vector<2x8x1xf32>
    %407 = vector.broadcast %406 : vector<2x8x1xf32> to vector<2x8x8xf32>
    %408 = arith.mulf %403, %407 : vector<2x8x8xf32>
    "tpu.trace_start"() <{level = 10 : i32, message = "bqk,bkd->bqd"}> : () -> ()
    %cst_143 = arith.constant dense<0.000000e+00> : vector<2x8x8xf32>
    %409 = tpu.matmul %408, %395, %cst_143 {dimension_numbers = #tpu.dot_dimension_numbers<[2], [1], [1], [2], [0, 0, 0, 1, 1, 2], [0], [0]>} : vector<2x8x8xf32>, vector<2x8x8xf32>, vector<2x8x8xf32> -> vector<2x8x8xf32>
    "tpu.trace_stop"() : () -> ()
    %410 = tpu.concatenate %358, %375, %392, %409 in 2 : vector<2x8x8xf32>, vector<2x8x8xf32>, vector<2x8x8xf32>, vector<2x8x8xf32> -> vector<2x8x32xf32>
    %411 = vector.shape_cast %410 : vector<2x8x32xf32> to vector<16x32xf32>
    %c352 = arith.constant 352 : index
    %c0_144 = arith.constant 0 : index
    %412 = vector.load %arg3[%c352, %c0_144] : memref<784x128xf32, #tpu.memory_space<vmem>>, vector<32x32xf32>
    %cst_145 = arith.constant dense<0.000000e+00> : vector<16x32xf32>
    %413 = tpu.matmul %411, %412, %cst_145 {dimension_numbers = #tpu.dot_dimension_numbers<[1], [0], [0], [1], [0, 0, 1, 1], [], []>} : vector<16x32xf32>, vector<32x32xf32>, vector<16x32xf32> -> vector<16x32xf32>
    %c17 = arith.constant 17 : index
    %c0_146 = arith.constant 0 : index
    %414 = vector.load %arg4[%c17, %c0_146] : memref<48x128xf32, #tpu.memory_space<vmem>>, vector<1x32xf32>
    %415 = vector.broadcast %414 : vector<1x32xf32> to vector<16x32xf32>
    %416 = arith.addf %413, %415 : vector<16x32xf32>
    %417 = arith.addf %335, %416 : vector<16x32xf32>
    %cst_147 = arith.constant dense<0.000000e+00> : vector<16xf32>
    %418 = vector.multi_reduction <add>, %417, %cst_147 [1] : vector<16x32xf32> to vector<16xf32>
    %419 = vector.shape_cast %418 : vector<16xf32> to vector<16x1xf32>
    %cst_148 = arith.constant 3.200000e+01 : f32
    %420 = vector.broadcast %cst_148 : f32 to vector<16x1xf32>
    %421 = arith.divf %419, %420 : vector<16x1xf32>
    %422 = arith.mulf %417, %417 : vector<16x32xf32>
    %cst_149 = arith.constant dense<0.000000e+00> : vector<16xf32>
    %423 = vector.multi_reduction <add>, %422, %cst_149 [1] : vector<16x32xf32> to vector<16xf32>
    %424 = vector.shape_cast %423 : vector<16xf32> to vector<16x1xf32>
    %cst_150 = arith.constant 3.200000e+01 : f32
    %425 = vector.broadcast %cst_150 : f32 to vector<16x1xf32>
    %426 = arith.divf %424, %425 : vector<16x1xf32>
    %427 = arith.mulf %421, %421 : vector<16x1xf32>
    %428 = arith.subf %426, %427 : vector<16x1xf32>
    %429 = vector.broadcast %421 : vector<16x1xf32> to vector<16x32xf32>
    %430 = arith.subf %417, %429 : vector<16x32xf32>
    %cst_151 = arith.constant 9.99999974E-6 : f32
    %431 = vector.broadcast %cst_151 : f32 to vector<16x1xf32>
    %432 = arith.addf %428, %431 : vector<16x1xf32>
    %433 = math.rsqrt %432 : vector<16x1xf32>
    %434 = vector.broadcast %433 : vector<16x1xf32> to vector<16x32xf32>
    %435 = arith.mulf %430, %434 : vector<16x32xf32>
    %c18 = arith.constant 18 : index
    %c0_152 = arith.constant 0 : index
    %436 = vector.load %arg4[%c18, %c0_152] : memref<48x128xf32, #tpu.memory_space<vmem>>, vector<1x32xf32>
    %437 = vector.broadcast %436 : vector<1x32xf32> to vector<16x32xf32>
    %438 = arith.mulf %435, %437 : vector<16x32xf32>
    %c19 = arith.constant 19 : index
    %c0_153 = arith.constant 0 : index
    %439 = vector.load %arg4[%c19, %c0_153] : memref<48x128xf32, #tpu.memory_space<vmem>>, vector<1x32xf32>
    %440 = vector.broadcast %439 : vector<1x32xf32> to vector<16x32xf32>
    %441 = arith.addf %438, %440 : vector<16x32xf32>
    %c384 = arith.constant 384 : index
    %c0_154 = arith.constant 0 : index
    %442 = vector.load %arg3[%c384, %c0_154] : memref<784x128xf32, #tpu.memory_space<vmem>>, vector<32x64xf32>
    %cst_155 = arith.constant dense<0.000000e+00> : vector<16x64xf32>
    %443 = tpu.matmul %441, %442, %cst_155 {dimension_numbers = #tpu.dot_dimension_numbers<[1], [0], [0], [1], [0, 0, 1, 1], [], []>} : vector<16x32xf32>, vector<32x64xf32>, vector<16x64xf32> -> vector<16x64xf32>
    %c20 = arith.constant 20 : index
    %c0_156 = arith.constant 0 : index
    %444 = vector.load %arg4[%c20, %c0_156] : memref<48x128xf32, #tpu.memory_space<vmem>>, vector<1x64xf32>
    %445 = vector.broadcast %444 : vector<1x64xf32> to vector<16x64xf32>
    %446 = arith.addf %443, %445 : vector<16x64xf32>
    %cst_157 = arith.constant 0.000000e+00 : f32
    %447 = vector.broadcast %cst_157 : f32 to vector<16x64xf32>
    %448 = arith.maximumf %446, %447 : vector<16x64xf32>
    %c416 = arith.constant 416 : index
    %c0_158 = arith.constant 0 : index
    %449 = vector.load %arg3[%c416, %c0_158] : memref<784x128xf32, #tpu.memory_space<vmem>>, vector<64x32xf32>
    %cst_159 = arith.constant dense<0.000000e+00> : vector<16x32xf32>
    %450 = tpu.matmul %448, %449, %cst_159 {dimension_numbers = #tpu.dot_dimension_numbers<[1], [0], [0], [1], [0, 0, 1, 1], [], []>} : vector<16x64xf32>, vector<64x32xf32>, vector<16x32xf32> -> vector<16x32xf32>
    %c21 = arith.constant 21 : index
    %c0_160 = arith.constant 0 : index
    %451 = vector.load %arg4[%c21, %c0_160] : memref<48x128xf32, #tpu.memory_space<vmem>>, vector<1x32xf32>
    %452 = vector.broadcast %451 : vector<1x32xf32> to vector<16x32xf32>
    %453 = arith.addf %450, %452 : vector<16x32xf32>
    %454 = arith.addf %441, %453 : vector<16x32xf32>
    %cst_161 = arith.constant dense<0.000000e+00> : vector<16xf32>
    %455 = vector.multi_reduction <add>, %454, %cst_161 [1] : vector<16x32xf32> to vector<16xf32>
    %456 = vector.shape_cast %455 : vector<16xf32> to vector<16x1xf32>
    %cst_162 = arith.constant 3.200000e+01 : f32
    %457 = vector.broadcast %cst_162 : f32 to vector<16x1xf32>
    %458 = arith.divf %456, %457 : vector<16x1xf32>
    %459 = arith.mulf %454, %454 : vector<16x32xf32>
    %cst_163 = arith.constant dense<0.000000e+00> : vector<16xf32>
    %460 = vector.multi_reduction <add>, %459, %cst_163 [1] : vector<16x32xf32> to vector<16xf32>
    %461 = vector.shape_cast %460 : vector<16xf32> to vector<16x1xf32>
    %cst_164 = arith.constant 3.200000e+01 : f32
    %462 = vector.broadcast %cst_164 : f32 to vector<16x1xf32>
    %463 = arith.divf %461, %462 : vector<16x1xf32>
    %464 = arith.mulf %458, %458 : vector<16x1xf32>
    %465 = arith.subf %463, %464 : vector<16x1xf32>
    %466 = vector.broadcast %458 : vector<16x1xf32> to vector<16x32xf32>
    %467 = arith.subf %454, %466 : vector<16x32xf32>
    %cst_165 = arith.constant 9.99999974E-6 : f32
    %468 = vector.broadcast %cst_165 : f32 to vector<16x1xf32>
    %469 = arith.addf %465, %468 : vector<16x1xf32>
    %470 = math.rsqrt %469 : vector<16x1xf32>
    %471 = vector.broadcast %470 : vector<16x1xf32> to vector<16x32xf32>
    %472 = arith.mulf %467, %471 : vector<16x32xf32>
    %c22 = arith.constant 22 : index
    %c0_166 = arith.constant 0 : index
    %473 = vector.load %arg4[%c22, %c0_166] : memref<48x128xf32, #tpu.memory_space<vmem>>, vector<1x32xf32>
    %474 = vector.broadcast %473 : vector<1x32xf32> to vector<16x32xf32>
    %475 = arith.mulf %472, %474 : vector<16x32xf32>
    %c23 = arith.constant 23 : index
    %c0_167 = arith.constant 0 : index
    %476 = vector.load %arg4[%c23, %c0_167] : memref<48x128xf32, #tpu.memory_space<vmem>>, vector<1x32xf32>
    %477 = vector.broadcast %476 : vector<1x32xf32> to vector<16x32xf32>
    %478 = arith.addf %475, %477 : vector<16x32xf32>
    %c480 = arith.constant 480 : index
    %c0_168 = arith.constant 0 : index
    %479 = vector.load %arg3[%c480, %c0_168] : memref<784x128xf32, #tpu.memory_space<vmem>>, vector<32x128xf32>
    %cst_169 = arith.constant dense<0.000000e+00> : vector<16x128xf32>
    %480 = tpu.matmul %478, %479, %cst_169 {dimension_numbers = #tpu.dot_dimension_numbers<[1], [0], [0], [1], [0, 0, 1, 1], [], []>} : vector<16x32xf32>, vector<32x128xf32>, vector<16x128xf32> -> vector<16x128xf32>
    %c24 = arith.constant 24 : index
    %c0_170 = arith.constant 0 : index
    %481 = vector.load %arg4[%c24, %c0_170] : memref<48x128xf32, #tpu.memory_space<vmem>>, vector<1x128xf32>
    %482 = vector.broadcast %481 : vector<1x128xf32> to vector<16x128xf32>
    %483 = arith.addf %480, %482 : vector<16x128xf32>
    %484 = vector.shape_cast %483 : vector<16x128xf32> to vector<2x8x128xf32>
    %485 = vector.extract_strided_slice %484 {offsets = [0, 0, 0], sizes = [2, 8, 8], strides = [1, 1, 1]} : vector<2x8x128xf32> to vector<2x8x8xf32>
    %486 = vector.extract_strided_slice %484 {offsets = [0, 0, 32], sizes = [2, 8, 8], strides = [1, 1, 1]} : vector<2x8x128xf32> to vector<2x8x8xf32>
    %487 = vector.extract_strided_slice %484 {offsets = [0, 0, 64], sizes = [2, 8, 8], strides = [1, 1, 1]} : vector<2x8x128xf32> to vector<2x8x8xf32>
    "tpu.trace_start"() <{level = 10 : i32, message = "bqd,bkd->bqk"}> : () -> ()
    %cst_171 = arith.constant dense<0.000000e+00> : vector<2x8x8xf32>
    %488 = tpu.matmul %485, %486, %cst_171 {dimension_numbers = #tpu.dot_dimension_numbers<[2], [2], [1], [1], [0, 0, 0, 1, 1, 1], [0], [0]>} : vector<2x8x8xf32>, vector<2x8x8xf32>, vector<2x8x8xf32> -> vector<2x8x8xf32>
    "tpu.trace_stop"() : () -> ()
    %cst_172 = arith.constant 0.353553385 : f32
    %489 = vector.broadcast %cst_172 : f32 to vector<2x8x8xf32>
    %490 = arith.mulf %488, %489 : vector<2x8x8xf32>
    %cst_173 = arith.constant dense<0xFF800000> : vector<2x8xf32>
    %491 = vector.multi_reduction <maximumf>, %490, %cst_173 [2] : vector<2x8x8xf32> to vector<2x8xf32>
    %492 = vector.shape_cast %491 : vector<2x8xf32> to vector<2x8x1xf32>
    %493 = vector.broadcast %492 : vector<2x8x1xf32> to vector<2x8x8xf32>
    %494 = arith.subf %490, %493 : vector<2x8x8xf32>
    %495 = math.exp %494 : vector<2x8x8xf32>
    %cst_174 = arith.constant dense<0.000000e+00> : vector<2x8xf32>
    %496 = vector.multi_reduction <add>, %495, %cst_174 [2] : vector<2x8x8xf32> to vector<2x8xf32>
    %497 = vector.shape_cast %496 : vector<2x8xf32> to vector<2x8x1xf32>
    %498 = tpu.reciprocal %497 {approx = true} : vector<2x8x1xf32> -> vector<2x8x1xf32>
    %499 = vector.broadcast %498 : vector<2x8x1xf32> to vector<2x8x8xf32>
    %500 = arith.mulf %495, %499 : vector<2x8x8xf32>
    "tpu.trace_start"() <{level = 10 : i32, message = "bqk,bkd->bqd"}> : () -> ()
    %cst_175 = arith.constant dense<0.000000e+00> : vector<2x8x8xf32>
    %501 = tpu.matmul %500, %487, %cst_175 {dimension_numbers = #tpu.dot_dimension_numbers<[2], [1], [1], [2], [0, 0, 0, 1, 1, 2], [0], [0]>} : vector<2x8x8xf32>, vector<2x8x8xf32>, vector<2x8x8xf32> -> vector<2x8x8xf32>
    "tpu.trace_stop"() : () -> ()
    %502 = vector.extract_strided_slice %484 {offsets = [0, 0, 8], sizes = [2, 8, 8], strides = [1, 1, 1]} : vector<2x8x128xf32> to vector<2x8x8xf32>
    %503 = vector.extract_strided_slice %484 {offsets = [0, 0, 40], sizes = [2, 8, 8], strides = [1, 1, 1]} : vector<2x8x128xf32> to vector<2x8x8xf32>
    %504 = vector.extract_strided_slice %484 {offsets = [0, 0, 72], sizes = [2, 8, 8], strides = [1, 1, 1]} : vector<2x8x128xf32> to vector<2x8x8xf32>
    "tpu.trace_start"() <{level = 10 : i32, message = "bqd,bkd->bqk"}> : () -> ()
    %cst_176 = arith.constant dense<0.000000e+00> : vector<2x8x8xf32>
    %505 = tpu.matmul %502, %503, %cst_176 {dimension_numbers = #tpu.dot_dimension_numbers<[2], [2], [1], [1], [0, 0, 0, 1, 1, 1], [0], [0]>} : vector<2x8x8xf32>, vector<2x8x8xf32>, vector<2x8x8xf32> -> vector<2x8x8xf32>
    "tpu.trace_stop"() : () -> ()
    %cst_177 = arith.constant 0.353553385 : f32
    %506 = vector.broadcast %cst_177 : f32 to vector<2x8x8xf32>
    %507 = arith.mulf %505, %506 : vector<2x8x8xf32>
    %cst_178 = arith.constant dense<0xFF800000> : vector<2x8xf32>
    %508 = vector.multi_reduction <maximumf>, %507, %cst_178 [2] : vector<2x8x8xf32> to vector<2x8xf32>
    %509 = vector.shape_cast %508 : vector<2x8xf32> to vector<2x8x1xf32>
    %510 = vector.broadcast %509 : vector<2x8x1xf32> to vector<2x8x8xf32>
    %511 = arith.subf %507, %510 : vector<2x8x8xf32>
    %512 = math.exp %511 : vector<2x8x8xf32>
    %cst_179 = arith.constant dense<0.000000e+00> : vector<2x8xf32>
    %513 = vector.multi_reduction <add>, %512, %cst_179 [2] : vector<2x8x8xf32> to vector<2x8xf32>
    %514 = vector.shape_cast %513 : vector<2x8xf32> to vector<2x8x1xf32>
    %515 = tpu.reciprocal %514 {approx = true} : vector<2x8x1xf32> -> vector<2x8x1xf32>
    %516 = vector.broadcast %515 : vector<2x8x1xf32> to vector<2x8x8xf32>
    %517 = arith.mulf %512, %516 : vector<2x8x8xf32>
    "tpu.trace_start"() <{level = 10 : i32, message = "bqk,bkd->bqd"}> : () -> ()
    %cst_180 = arith.constant dense<0.000000e+00> : vector<2x8x8xf32>
    %518 = tpu.matmul %517, %504, %cst_180 {dimension_numbers = #tpu.dot_dimension_numbers<[2], [1], [1], [2], [0, 0, 0, 1, 1, 2], [0], [0]>} : vector<2x8x8xf32>, vector<2x8x8xf32>, vector<2x8x8xf32> -> vector<2x8x8xf32>
    "tpu.trace_stop"() : () -> ()
    %519 = vector.extract_strided_slice %484 {offsets = [0, 0, 16], sizes = [2, 8, 8], strides = [1, 1, 1]} : vector<2x8x128xf32> to vector<2x8x8xf32>
    %520 = vector.extract_strided_slice %484 {offsets = [0, 0, 48], sizes = [2, 8, 8], strides = [1, 1, 1]} : vector<2x8x128xf32> to vector<2x8x8xf32>
    %521 = vector.extract_strided_slice %484 {offsets = [0, 0, 80], sizes = [2, 8, 8], strides = [1, 1, 1]} : vector<2x8x128xf32> to vector<2x8x8xf32>
    "tpu.trace_start"() <{level = 10 : i32, message = "bqd,bkd->bqk"}> : () -> ()
    %cst_181 = arith.constant dense<0.000000e+00> : vector<2x8x8xf32>
    %522 = tpu.matmul %519, %520, %cst_181 {dimension_numbers = #tpu.dot_dimension_numbers<[2], [2], [1], [1], [0, 0, 0, 1, 1, 1], [0], [0]>} : vector<2x8x8xf32>, vector<2x8x8xf32>, vector<2x8x8xf32> -> vector<2x8x8xf32>
    "tpu.trace_stop"() : () -> ()
    %cst_182 = arith.constant 0.353553385 : f32
    %523 = vector.broadcast %cst_182 : f32 to vector<2x8x8xf32>
    %524 = arith.mulf %522, %523 : vector<2x8x8xf32>
    %cst_183 = arith.constant dense<0xFF800000> : vector<2x8xf32>
    %525 = vector.multi_reduction <maximumf>, %524, %cst_183 [2] : vector<2x8x8xf32> to vector<2x8xf32>
    %526 = vector.shape_cast %525 : vector<2x8xf32> to vector<2x8x1xf32>
    %527 = vector.broadcast %526 : vector<2x8x1xf32> to vector<2x8x8xf32>
    %528 = arith.subf %524, %527 : vector<2x8x8xf32>
    %529 = math.exp %528 : vector<2x8x8xf32>
    %cst_184 = arith.constant dense<0.000000e+00> : vector<2x8xf32>
    %530 = vector.multi_reduction <add>, %529, %cst_184 [2] : vector<2x8x8xf32> to vector<2x8xf32>
    %531 = vector.shape_cast %530 : vector<2x8xf32> to vector<2x8x1xf32>
    %532 = tpu.reciprocal %531 {approx = true} : vector<2x8x1xf32> -> vector<2x8x1xf32>
    %533 = vector.broadcast %532 : vector<2x8x1xf32> to vector<2x8x8xf32>
    %534 = arith.mulf %529, %533 : vector<2x8x8xf32>
    "tpu.trace_start"() <{level = 10 : i32, message = "bqk,bkd->bqd"}> : () -> ()
    %cst_185 = arith.constant dense<0.000000e+00> : vector<2x8x8xf32>
    %535 = tpu.matmul %534, %521, %cst_185 {dimension_numbers = #tpu.dot_dimension_numbers<[2], [1], [1], [2], [0, 0, 0, 1, 1, 2], [0], [0]>} : vector<2x8x8xf32>, vector<2x8x8xf32>, vector<2x8x8xf32> -> vector<2x8x8xf32>
    "tpu.trace_stop"() : () -> ()
    %536 = vector.extract_strided_slice %484 {offsets = [0, 0, 24], sizes = [2, 8, 8], strides = [1, 1, 1]} : vector<2x8x128xf32> to vector<2x8x8xf32>
    %537 = vector.extract_strided_slice %484 {offsets = [0, 0, 56], sizes = [2, 8, 8], strides = [1, 1, 1]} : vector<2x8x128xf32> to vector<2x8x8xf32>
    %538 = vector.extract_strided_slice %484 {offsets = [0, 0, 88], sizes = [2, 8, 8], strides = [1, 1, 1]} : vector<2x8x128xf32> to vector<2x8x8xf32>
    "tpu.trace_start"() <{level = 10 : i32, message = "bqd,bkd->bqk"}> : () -> ()
    %cst_186 = arith.constant dense<0.000000e+00> : vector<2x8x8xf32>
    %539 = tpu.matmul %536, %537, %cst_186 {dimension_numbers = #tpu.dot_dimension_numbers<[2], [2], [1], [1], [0, 0, 0, 1, 1, 1], [0], [0]>} : vector<2x8x8xf32>, vector<2x8x8xf32>, vector<2x8x8xf32> -> vector<2x8x8xf32>
    "tpu.trace_stop"() : () -> ()
    %cst_187 = arith.constant 0.353553385 : f32
    %540 = vector.broadcast %cst_187 : f32 to vector<2x8x8xf32>
    %541 = arith.mulf %539, %540 : vector<2x8x8xf32>
    %cst_188 = arith.constant dense<0xFF800000> : vector<2x8xf32>
    %542 = vector.multi_reduction <maximumf>, %541, %cst_188 [2] : vector<2x8x8xf32> to vector<2x8xf32>
    %543 = vector.shape_cast %542 : vector<2x8xf32> to vector<2x8x1xf32>
    %544 = vector.broadcast %543 : vector<2x8x1xf32> to vector<2x8x8xf32>
    %545 = arith.subf %541, %544 : vector<2x8x8xf32>
    %546 = math.exp %545 : vector<2x8x8xf32>
    %cst_189 = arith.constant dense<0.000000e+00> : vector<2x8xf32>
    %547 = vector.multi_reduction <add>, %546, %cst_189 [2] : vector<2x8x8xf32> to vector<2x8xf32>
    %548 = vector.shape_cast %547 : vector<2x8xf32> to vector<2x8x1xf32>
    %549 = tpu.reciprocal %548 {approx = true} : vector<2x8x1xf32> -> vector<2x8x1xf32>
    %550 = vector.broadcast %549 : vector<2x8x1xf32> to vector<2x8x8xf32>
    %551 = arith.mulf %546, %550 : vector<2x8x8xf32>
    "tpu.trace_start"() <{level = 10 : i32, message = "bqk,bkd->bqd"}> : () -> ()
    %cst_190 = arith.constant dense<0.000000e+00> : vector<2x8x8xf32>
    %552 = tpu.matmul %551, %538, %cst_190 {dimension_numbers = #tpu.dot_dimension_numbers<[2], [1], [1], [2], [0, 0, 0, 1, 1, 2], [0], [0]>} : vector<2x8x8xf32>, vector<2x8x8xf32>, vector<2x8x8xf32> -> vector<2x8x8xf32>
    "tpu.trace_stop"() : () -> ()
    %553 = tpu.concatenate %501, %518, %535, %552 in 2 : vector<2x8x8xf32>, vector<2x8x8xf32>, vector<2x8x8xf32>, vector<2x8x8xf32> -> vector<2x8x32xf32>
    %554 = vector.shape_cast %553 : vector<2x8x32xf32> to vector<16x32xf32>
    %c512 = arith.constant 512 : index
    %c0_191 = arith.constant 0 : index
    %555 = vector.load %arg3[%c512, %c0_191] : memref<784x128xf32, #tpu.memory_space<vmem>>, vector<32x32xf32>
    %cst_192 = arith.constant dense<0.000000e+00> : vector<16x32xf32>
    %556 = tpu.matmul %554, %555, %cst_192 {dimension_numbers = #tpu.dot_dimension_numbers<[1], [0], [0], [1], [0, 0, 1, 1], [], []>} : vector<16x32xf32>, vector<32x32xf32>, vector<16x32xf32> -> vector<16x32xf32>
    %c25 = arith.constant 25 : index
    %c0_193 = arith.constant 0 : index
    %557 = vector.load %arg4[%c25, %c0_193] : memref<48x128xf32, #tpu.memory_space<vmem>>, vector<1x32xf32>
    %558 = vector.broadcast %557 : vector<1x32xf32> to vector<16x32xf32>
    %559 = arith.addf %556, %558 : vector<16x32xf32>
    %560 = arith.addf %478, %559 : vector<16x32xf32>
    %cst_194 = arith.constant dense<0.000000e+00> : vector<16xf32>
    %561 = vector.multi_reduction <add>, %560, %cst_194 [1] : vector<16x32xf32> to vector<16xf32>
    %562 = vector.shape_cast %561 : vector<16xf32> to vector<16x1xf32>
    %cst_195 = arith.constant 3.200000e+01 : f32
    %563 = vector.broadcast %cst_195 : f32 to vector<16x1xf32>
    %564 = arith.divf %562, %563 : vector<16x1xf32>
    %565 = arith.mulf %560, %560 : vector<16x32xf32>
    %cst_196 = arith.constant dense<0.000000e+00> : vector<16xf32>
    %566 = vector.multi_reduction <add>, %565, %cst_196 [1] : vector<16x32xf32> to vector<16xf32>
    %567 = vector.shape_cast %566 : vector<16xf32> to vector<16x1xf32>
    %cst_197 = arith.constant 3.200000e+01 : f32
    %568 = vector.broadcast %cst_197 : f32 to vector<16x1xf32>
    %569 = arith.divf %567, %568 : vector<16x1xf32>
    %570 = arith.mulf %564, %564 : vector<16x1xf32>
    %571 = arith.subf %569, %570 : vector<16x1xf32>
    %572 = vector.broadcast %564 : vector<16x1xf32> to vector<16x32xf32>
    %573 = arith.subf %560, %572 : vector<16x32xf32>
    %cst_198 = arith.constant 9.99999974E-6 : f32
    %574 = vector.broadcast %cst_198 : f32 to vector<16x1xf32>
    %575 = arith.addf %571, %574 : vector<16x1xf32>
    %576 = math.rsqrt %575 : vector<16x1xf32>
    %577 = vector.broadcast %576 : vector<16x1xf32> to vector<16x32xf32>
    %578 = arith.mulf %573, %577 : vector<16x32xf32>
    %c26 = arith.constant 26 : index
    %c0_199 = arith.constant 0 : index
    %579 = vector.load %arg4[%c26, %c0_199] : memref<48x128xf32, #tpu.memory_space<vmem>>, vector<1x32xf32>
    %580 = vector.broadcast %579 : vector<1x32xf32> to vector<16x32xf32>
    %581 = arith.mulf %578, %580 : vector<16x32xf32>
    %c27 = arith.constant 27 : index
    %c0_200 = arith.constant 0 : index
    %582 = vector.load %arg4[%c27, %c0_200] : memref<48x128xf32, #tpu.memory_space<vmem>>, vector<1x32xf32>
    %583 = vector.broadcast %582 : vector<1x32xf32> to vector<16x32xf32>
    %584 = arith.addf %581, %583 : vector<16x32xf32>
    %c544 = arith.constant 544 : index
    %c0_201 = arith.constant 0 : index
    %585 = vector.load %arg3[%c544, %c0_201] : memref<784x128xf32, #tpu.memory_space<vmem>>, vector<32x64xf32>
    %cst_202 = arith.constant dense<0.000000e+00> : vector<16x64xf32>
    %586 = tpu.matmul %584, %585, %cst_202 {dimension_numbers = #tpu.dot_dimension_numbers<[1], [0], [0], [1], [0, 0, 1, 1], [], []>} : vector<16x32xf32>, vector<32x64xf32>, vector<16x64xf32> -> vector<16x64xf32>
    %c28 = arith.constant 28 : index
    %c0_203 = arith.constant 0 : index
    %587 = vector.load %arg4[%c28, %c0_203] : memref<48x128xf32, #tpu.memory_space<vmem>>, vector<1x64xf32>
    %588 = vector.broadcast %587 : vector<1x64xf32> to vector<16x64xf32>
    %589 = arith.addf %586, %588 : vector<16x64xf32>
    %cst_204 = arith.constant 0.000000e+00 : f32
    %590 = vector.broadcast %cst_204 : f32 to vector<16x64xf32>
    %591 = arith.maximumf %589, %590 : vector<16x64xf32>
    %c576 = arith.constant 576 : index
    %c0_205 = arith.constant 0 : index
    %592 = vector.load %arg3[%c576, %c0_205] : memref<784x128xf32, #tpu.memory_space<vmem>>, vector<64x32xf32>
    %cst_206 = arith.constant dense<0.000000e+00> : vector<16x32xf32>
    %593 = tpu.matmul %591, %592, %cst_206 {dimension_numbers = #tpu.dot_dimension_numbers<[1], [0], [0], [1], [0, 0, 1, 1], [], []>} : vector<16x64xf32>, vector<64x32xf32>, vector<16x32xf32> -> vector<16x32xf32>
    %c29 = arith.constant 29 : index
    %c0_207 = arith.constant 0 : index
    %594 = vector.load %arg4[%c29, %c0_207] : memref<48x128xf32, #tpu.memory_space<vmem>>, vector<1x32xf32>
    %595 = vector.broadcast %594 : vector<1x32xf32> to vector<16x32xf32>
    %596 = arith.addf %593, %595 : vector<16x32xf32>
    %597 = arith.addf %584, %596 : vector<16x32xf32>
    %cst_208 = arith.constant dense<0.000000e+00> : vector<16xf32>
    %598 = vector.multi_reduction <add>, %597, %cst_208 [1] : vector<16x32xf32> to vector<16xf32>
    %599 = vector.shape_cast %598 : vector<16xf32> to vector<16x1xf32>
    %cst_209 = arith.constant 3.200000e+01 : f32
    %600 = vector.broadcast %cst_209 : f32 to vector<16x1xf32>
    %601 = arith.divf %599, %600 : vector<16x1xf32>
    %602 = arith.mulf %597, %597 : vector<16x32xf32>
    %cst_210 = arith.constant dense<0.000000e+00> : vector<16xf32>
    %603 = vector.multi_reduction <add>, %602, %cst_210 [1] : vector<16x32xf32> to vector<16xf32>
    %604 = vector.shape_cast %603 : vector<16xf32> to vector<16x1xf32>
    %cst_211 = arith.constant 3.200000e+01 : f32
    %605 = vector.broadcast %cst_211 : f32 to vector<16x1xf32>
    %606 = arith.divf %604, %605 : vector<16x1xf32>
    %607 = arith.mulf %601, %601 : vector<16x1xf32>
    %608 = arith.subf %606, %607 : vector<16x1xf32>
    %609 = vector.broadcast %601 : vector<16x1xf32> to vector<16x32xf32>
    %610 = arith.subf %597, %609 : vector<16x32xf32>
    %cst_212 = arith.constant 9.99999974E-6 : f32
    %611 = vector.broadcast %cst_212 : f32 to vector<16x1xf32>
    %612 = arith.addf %608, %611 : vector<16x1xf32>
    %613 = math.rsqrt %612 : vector<16x1xf32>
    %614 = vector.broadcast %613 : vector<16x1xf32> to vector<16x32xf32>
    %615 = arith.mulf %610, %614 : vector<16x32xf32>
    %c30 = arith.constant 30 : index
    %c0_213 = arith.constant 0 : index
    %616 = vector.load %arg4[%c30, %c0_213] : memref<48x128xf32, #tpu.memory_space<vmem>>, vector<1x32xf32>
    %617 = vector.broadcast %616 : vector<1x32xf32> to vector<16x32xf32>
    %618 = arith.mulf %615, %617 : vector<16x32xf32>
    %c31 = arith.constant 31 : index
    %c0_214 = arith.constant 0 : index
    %619 = vector.load %arg4[%c31, %c0_214] : memref<48x128xf32, #tpu.memory_space<vmem>>, vector<1x32xf32>
    %620 = vector.broadcast %619 : vector<1x32xf32> to vector<16x32xf32>
    %621 = arith.addf %618, %620 : vector<16x32xf32>
    %c752 = arith.constant 752 : index
    %c0_215 = arith.constant 0 : index
    %622 = vector.load %arg3[%c752, %c0_215] : memref<784x128xf32, #tpu.memory_space<vmem>>, vector<32x32xf32>
    %cst_216 = arith.constant dense<0.000000e+00> : vector<16x32xf32>
    %623 = tpu.matmul %621, %622, %cst_216 {dimension_numbers = #tpu.dot_dimension_numbers<[1], [0], [0], [1], [0, 0, 1, 1], [], []>} : vector<16x32xf32>, vector<32x32xf32>, vector<16x32xf32> -> vector<16x32xf32>
    %c35 = arith.constant 35 : index
    %c0_217 = arith.constant 0 : index
    %624 = vector.load %arg4[%c35, %c0_217] : memref<48x128xf32, #tpu.memory_space<vmem>>, vector<1x32xf32>
    %625 = vector.broadcast %624 : vector<1x32xf32> to vector<16x32xf32>
    %626 = arith.addf %623, %625 : vector<16x32xf32>
    %627 = vector.shape_cast %626 : vector<16x32xf32> to vector<2x8x32xf32>
    %c0_218 = arith.constant 0 : index
    %c0_219 = arith.constant 0 : index
    %c0_220 = arith.constant 0 : index
    %628 = vector.load %arg5[%c0_218, %c0_219, %c0_220] : memref<2x8x96xf32, #tpu.memory_space<vmem>>, vector<2x8x32xf32>
    tpu.vector_store %arg5[%c0_218, %c0_219, %c0_220], %627 {strides = array<i32>} : memref<2x8x96xf32, #tpu.memory_space<vmem>>, vector<2x8x32xf32>,
    return
  }
}

</mosaic_0001>

<llo_original>
// kernel: _lambda_.1
$region0: #{_lambda_.1}
  #allocation0 [shape = 'u32[]', space=smem, size = 0x4, offset = 0x4, fixed_abs, tag = 'smem constant byte address 0x4 - core index']
  #allocation1 [shape = 'u32[72,128]{1,0:T(1,128)}', space=vmem, size = 0x9000, scoped, tag = 'internal scratch']
  %s0 = inlined_call_operand.hbm [shape: f32[2,8,32], index: 0, kind: input, shape index: {}]
  %s1 = inlined_call_operand.hbm [shape: f32[2,4], index: 1, kind: input, shape index: {}]
  %s2 = inlined_call_operand.hbm [shape: f32[2,8,32], index: 2, kind: input, shape index: {}]
  %s3 = inlined_call_operand.hbm [shape: f32[784,128], index: 3, kind: input, shape index: {}]
  %s4 = inlined_call_operand.hbm [shape: f32[48,128], index: 4, kind: input, shape index: {}]
  %s5 = inlined_call_operand.vmem [shape: f32[2,8,96], index: 5, kind: output, shape index: {}]
  %s6 = sld [smem:[#allocation0]]
  $region50: #{_lambda_.1} parent=0
    _
  %s8 = ssub.s32 1, %s6
  %s9 = scalar_select 0, %s8, %s6
  $region1: #{_lambda_.1} parent=0
    #allocation2 [shape = 'u8[8192]{0}', space=vmem, size = 0x2000, scoped, tag = 'input window, operand 0, single buffered']
    #allocation3 [shape = 's32[1]{0}', space=sflag, size = 0x4, scoped, tag = 'scoped memory for _lambda_.1']
    #allocation4 [shape = 'u8[1024]{0}', space=vmem, size = 0x400, scoped, tag = 'input window, operand 1, single buffered']
    #allocation5 [shape = 's32[1]{0}', space=sflag, size = 0x4, scoped, tag = 'scoped memory for _lambda_.1']
    #allocation6 [shape = 'u8[8192]{0}', space=vmem, size = 0x2000, scoped, tag = 'input window, operand 2, single buffered']
    #allocation7 [shape = 'u8[401408]{0}', space=vmem, size = 0x62000, scoped, tag = 'input window, operand 3, single buffered']
    #allocation8 [shape = 's32[1]{0}', space=sflag, size = 0x4, scoped, tag = 'scoped memory for _lambda_.1']
    #allocation9 [shape = 'u8[24576]{0}', space=vmem, size = 0x6000, scoped, tag = 'input window, operand 4, single buffered']
    %10 = vsyncpa [#allocation3], 0
    %11 = vsyncpa [#allocation5], 0
    %12 = vsyncpa [#allocation8], 0
    // Predicated region
    $region2: #{_lambda_.1} parent=1 // pred_check
      _
    $region3: #{_lambda_.1} parent=1 // pred_check_branch
      %14 = sbr.rel (0) target = $region5
    $region4: #{_lambda_.1} parent=1 // pred_region
      %16 = vsyncadd [#allocation3], 0
      %s17 = sshll.u32 %s0, 4
      %s18 = int_to_ptr.hbm [resolvable:$true] %s17
      %s19 = sshll.u32 [#allocation2], 4
      %s20 = int_to_ptr.vmem [resolvable:$true] %s19
      %25 = dma.hbm_to_vmem [thread:$0]  %s18, 256, %s20, [#allocation3], 128, 128, 8
    $region5: #{_lambda_.1} parent=1 // pred_fallthru
      _
    // Predicated region
    $region6: #{_lambda_.1} parent=1 // pred_check
      _
    $region7: #{_lambda_.1} parent=1 // pred_check_branch
      %27 = sbr.rel (0) target = $region9
    $region8: #{_lambda_.1} parent=1 // pred_region
      %29 = vsyncadd [#allocation5], 0
      %s31 = sshll.u32 %s1, 4
      %s32 = int_to_ptr.hbm [resolvable:$true] %s31
      %s33 = sshll.u32 [#allocation4], 4
      %s34 = int_to_ptr.vmem [resolvable:$true] %s33
      %36 = dma.hbm_to_vmem [thread:$0]  %s32, 32, %s34, [#allocation5]
    $region9: #{_lambda_.1} parent=1 // pred_fallthru
      _
    // Predicated region
    $region10: #{_lambda_.1} parent=1 // pred_check
      _
    $region11: #{_lambda_.1} parent=1 // pred_check_branch
      %38 = sbr.rel (0) target = $region13
    $region12: #{_lambda_.1} parent=1 // pred_region
      %40 = vsyncadd [#allocation5], 0
      %s41 = sshll.u32 %s2, 4
      %s42 = int_to_ptr.hbm [resolvable:$true] %s41
      %s43 = sshll.u32 [#allocation6], 4
      %s44 = int_to_ptr.vmem [resolvable:$true] %s43
      %49 = dma.hbm_to_vmem [thread:$0]  %s42, 256, %s44, [#allocation5], 128, 128, 8
    $region13: #{_lambda_.1} parent=1 // pred_fallthru
      _
    // Predicated region
    $region14: #{_lambda_.1} parent=1 // pred_check
      _
    $region15: #{_lambda_.1} parent=1 // pred_check_branch
      %51 = sbr.rel (0) target = $region17
    $region16: #{_lambda_.1} parent=1 // pred_region
      %53 = vsyncadd [#allocation8], 0
      %s54 = sshll.u32 %s3, 4
      %s55 = int_to_ptr.hbm [resolvable:$true] %s54
      %s56 = sshll.u32 [#allocation7], 4
      %s57 = int_to_ptr.vmem [resolvable:$true] %s56
      %62 = dma.hbm_to_vmem [thread:$0]  %s55, 12544, %s57, [#allocation8], 128, 128, 8
    $region17: #{_lambda_.1} parent=1 // pred_fallthru
      _
    // Predicated region
    $region18: #{_lambda_.1} parent=1 // pred_check
      _
    $region19: #{_lambda_.1} parent=1 // pred_check_branch
      %64 = sbr.rel (0) target = $region21
    $region20: #{_lambda_.1} parent=1 // pred_region
      %66 = vsyncadd [#allocation8], 0
      %s67 = sshll.u32 %s4, 4
      %s68 = int_to_ptr.hbm [resolvable:$true] %s67
      %s69 = sshll.u32 [#allocation9], 4
      %s70 = int_to_ptr.vmem [resolvable:$true] %s69
      %75 = dma.hbm_to_vmem [thread:$0]  %s68, 768, %s70, [#allocation8], 128, 128, 8
    $region21: #{_lambda_.1} parent=1 // pred_fallthru
      _
    // Predicated region
    $region22: #{_lambda_.1} parent=1 // pred_check
      _
    $region23: #{_lambda_.1} parent=1 // pred_check_branch
      %77 = sbr.rel (0) target = $region25
    $region24: #{_lambda_.1} parent=1 // pred_region
      %79 = dma.done [#allocation3], 256
    $region25: #{_lambda_.1} parent=1 // pred_fallthru
      _
    // Predicated region
    $region26: #{_lambda_.1} parent=1 // pred_check
      _
    $region27: #{_lambda_.1} parent=1 // pred_check_branch
      %81 = sbr.rel (0) target = $region29
    $region28: #{_lambda_.1} parent=1 // pred_region
      %83 = dma.done [#allocation5], 32
    $region29: #{_lambda_.1} parent=1 // pred_fallthru
      _
    // Predicated region
    $region30: #{_lambda_.1} parent=1 // pred_check
      _
    $region31: #{_lambda_.1} parent=1 // pred_check_branch
      %85 = sbr.rel (0) target = $region33
    $region32: #{_lambda_.1} parent=1 // pred_region
      %87 = dma.done [#allocation5], 256
    $region33: #{_lambda_.1} parent=1 // pred_fallthru
      _
    // Predicated region
    $region34: #{_lambda_.1} parent=1 // pred_check
      _
    $region35: #{_lambda_.1} parent=1 // pred_check_branch
      %89 = sbr.rel (0) target = $region37
    $region36: #{_lambda_.1} parent=1 // pred_region
      %91 = dma.done [#allocation8], 12544
    $region37: #{_lambda_.1} parent=1 // pred_fallthru
      _
    // Predicated region
    $region38: #{_lambda_.1} parent=1 // pred_check
      _
    $region39: #{_lambda_.1} parent=1 // pred_check_branch
      %93 = sbr.rel (0) target = $region41
    $region40: #{_lambda_.1} parent=1 // pred_region
      %95 = dma.done [#allocation8], 768
    $region41: #{_lambda_.1} parent=1 // pred_fallthru
      _
    %v96 = vld [vmem:[#allocation2] sm:$0xff]
    %v97 = vld [vmem:[#allocation2 + $0x8] sm:$0xff]
    %v98 = vld [vmem:[#allocation4] sm:$0x3]
    %v99 = vld [vmem:[#allocation9 + $0x24] sm:$0xff]
    %v100 = vld [vmem:[#allocation7 + $0x280] sm:$0xff]
    %v101 = vld [vmem:[#allocation7 + $0x288] sm:$0xff]
    %v102 = vld [vmem:[#allocation7 + $0x290] sm:$0xff]
    %v103 = vld [vmem:[#allocation7 + $0x298] sm:$0xff]
    %v104 = vld [vmem:[#allocation9 + $0x20] sm:$0x1]
    %v105 = vperm.slane %v104, 0
    %vm106 = vcmask 261120
    %v108 = vsel %vm106, %v96, 0
    %v111 = vsel %vm106, %v97, 0
    %113 = vmatpush.msra.mxu0 0.0
    %114 = vmatpush.msra.mxu0 0.0
    %115 = vmatpush.msra.mxu0 0.0
    %116 = vmatpush.msra.mxu0 0.0
    %117 = vmatpush.msra.mxu0 0.0
    %118 = vmatpush.msra.mxu0 0.0
    %119 = vmatpush.msra.mxu0 0.0
    %120 = vmatpush.msra.mxu0 0.0
    %121 = vmatpush.msra.mxu0 0.0
    %122 = vmatpush.msra.mxu0 0.0
    %123 = vmatpush.msra.mxu0 0.0
    %124 = vmatpush.msra.mxu0 0.0
    %125 = vmatpush.msra.mxu0 %v103
    %126 = vmatpush.msra.mxu0 %v102
    %127 = vmatpush.msra.mxu0 %v101
    %128 = vmatpush.msra.mxu0 %v100
    %129 = vmatmul.f32.gmra.mxu0 %v108
    %v130 = vpop.f32.mrf.mxu0
    %v131 = vadd.f32 %v105, %v130
    %132 = vmatmul.f32.gmra.mxu0 %v111
    %v133 = vpop.f32.mrf.mxu0
    %v134 = vadd.f32 %v105, %v133
    %135 = vdwg.mxu0
    %v136 = vadd.f32 %v131, %v99
    %v137 = vadd.f32 %v134, %v99
    %v138 = vld [vmem:[#allocation7] sm:$0xff]
    %v139 = vld [vmem:[#allocation7 + $0x8] sm:$0xff]
    %v140 = vld [vmem:[#allocation7 + $0x10] sm:$0xff]
    %v141 = vld [vmem:[#allocation7 + $0x18] sm:$0xff]
    %v142 = vld [vmem:[#allocation9] sm:$0x1]
    %v143 = vperm.slane %v142, 0
    %v145 = vsel %vm106, %v136, 0
    %v148 = vsel %vm106, %v137, 0
    %150 = vmatpush.msra.mxu0 0.0
    %151 = vmatpush.msra.mxu0 0.0
    %152 = vmatpush.msra.mxu0 0.0
    %153 = vmatpush.msra.mxu0 0.0
    %154 = vmatpush.msra.mxu0 0.0
    %155 = vmatpush.msra.mxu0 0.0
    %156 = vmatpush.msra.mxu0 0.0
    %157 = vmatpush.msra.mxu0 0.0
    %158 = vmatpush.msra.mxu0 0.0
    %159 = vmatpush.msra.mxu0 0.0
    %160 = vmatpush.msra.mxu0 0.0
    %161 = vmatpush.msra.mxu0 0.0
    %162 = vmatpush.msra.mxu0 %v141
    %163 = vmatpush.msra.mxu0 %v140
    %164 = vmatpush.msra.mxu0 %v139
    %165 = vmatpush.msra.mxu0 %v138
    %166 = vmatmul.f32.gmra.mxu0 %v145
    %v167 = vpop.f32.mrf.mxu0
    %v168 = vadd.f32 %v143, %v167
    %169 = vmatmul.f32.gmra.mxu0 %v148
    %v170 = vpop.f32.mrf.mxu0
    %v171 = vadd.f32 %v143, %v170
    %172 = vdwg.mxu0
    %174 = vrot.lane.b32.xlu0 %v168, 96
    %v175 = vpop.permute.xlu0 %174
    %vm176 = vcmask 64512
    %v177 = vsel %vm176, %v168, 0
    %v179 = vsel %vm176, %v175, 0
    %181 = vmatpush.xpose.msra.mxu0 0.0
    %182 = vmatpush.xpose.msra.mxu0 0.0
    %183 = vmatpush.xpose.msra.mxu0 0.0
    %184 = vmatpush.xpose.msra.mxu0 0.0
    %185 = vmatpush.xpose.msra.mxu0 0.0
    %186 = vmatpush.xpose.msra.mxu0 0.0
    %187 = vmatpush.xpose.msra.mxu0 0.0
    %188 = vmatpush.xpose.msra.mxu0 0.0
    %189 = vmatpush.xpose.msra.mxu0 0.0
    %190 = vmatpush.xpose.msra.mxu0 0.0
    %191 = vmatpush.xpose.msra.mxu0 0.0
    %192 = vmatpush.xpose.msra.mxu0 0.0
    %193 = vmatpush.xpose.msra.mxu0 0.0
    %194 = vmatpush.xpose.msra.mxu0 0.0
    %195 = vmatpush.xpose.msra.mxu0 0.0
    %196 = vmatpush.xpose.msra.mxu0 %v179
    %197 = vmatmul.f32.gmra.mxu0 %v177
    %v198 = vpop.f32.mrf.mxu0
    %v199 = vadd.f32 0.0, %v198
    %200 = vdwg.mxu0
    %202 = vrot.lane.b32.xlu0 %v171, 96
    %v203 = vpop.permute.xlu0 %202
    %v204 = vsel %vm176, %v171, 0
    %v206 = vsel %vm176, %v203, 0
    %208 = vmatpush.xpose.msra.mxu0 0.0
    %209 = vmatpush.xpose.msra.mxu0 0.0
    %210 = vmatpush.xpose.msra.mxu0 0.0
    %211 = vmatpush.xpose.msra.mxu0 0.0
    %212 = vmatpush.xpose.msra.mxu0 0.0
    %213 = vmatpush.xpose.msra.mxu0 0.0
    %214 = vmatpush.xpose.msra.mxu0 0.0
    %215 = vmatpush.xpose.msra.mxu0 0.0
    %216 = vmatpush.xpose.msra.mxu0 0.0
    %217 = vmatpush.xpose.msra.mxu0 0.0
    %218 = vmatpush.xpose.msra.mxu0 0.0
    %219 = vmatpush.xpose.msra.mxu0 0.0
    %220 = vmatpush.xpose.msra.mxu0 0.0
    %221 = vmatpush.xpose.msra.mxu0 0.0
    %222 = vmatpush.xpose.msra.mxu0 0.0
    %223 = vmatpush.xpose.msra.mxu0 %v206
    %224 = vmatmul.f32.gmra.mxu0 %v204
    %v225 = vpop.f32.mrf.mxu0
    %v226 = vadd.f32 0.0, %v225
    %227 = vdwg.mxu0
    %v228 = vmul.f32 %v199, 0.35355338
    %v229 = vmul.f32 %v226, 0.35355338
    %v230 = vsel %vm176, %v228, -inf
    %231 = vmax.xlane.f32.xlu0 %v230
    %v232 = vpop.xlane.xlu0 %231
    %v233 = vsel %vm176, %v229, -inf
    %234 = vmax.xlane.f32.xlu0 %v233
    %v235 = vpop.xlane.xlu0 %234
    %v236 = vsub.f32 %v228, %v232
    %v237 = vsub.f32 %v229, %v235
    %v238 = vmul.f32 %v236, 1.442695
    %v239 = vpow.pop %v238
    %v240 = vmul.f32 %v237, 1.442695
    %v241 = vpow.pop %v240
    %v242 = vsel %vm176, %v239, 0.0
    %243 = vadd.xlane.f32.xlu0 %v242
    %v244 = vpop.xlane.xlu0 %243
    %v245 = vsel %vm176, %v241, 0.0
    %246 = vadd.xlane.f32.xlu0 %v245
    %v247 = vpop.xlane.xlu0 %246
    %v248 = vrcp.pop %v244
    %v249 = vrcp.pop %v247
    %v250 = vmul.f32 %v239, %v248
    %v251 = vmul.f32 %v241, %v249
    %252 = vrot.lane.b32.xlu0 %v168, 64
    %v253 = vpop.permute.xlu0 %252
    %v256 = vsel %vm176, %v250, 0
    %258 = vmatpush.msra.mxu0 0.0
    %259 = vmatpush.msra.mxu0 0.0
    %260 = vmatpush.msra.mxu0 0.0
    %261 = vmatpush.msra.mxu0 0.0
    %262 = vmatpush.msra.mxu0 0.0
    %263 = vmatpush.msra.mxu0 0.0
    %264 = vmatpush.msra.mxu0 0.0
    %265 = vmatpush.msra.mxu0 0.0
    %266 = vmatpush.msra.mxu0 0.0
    %267 = vmatpush.msra.mxu0 0.0
    %268 = vmatpush.msra.mxu0 0.0
    %269 = vmatpush.msra.mxu0 0.0
    %270 = vmatpush.msra.mxu0 0.0
    %271 = vmatpush.msra.mxu0 0.0
    %272 = vmatpush.msra.mxu0 0.0
    %273 = vmatpush.msra.mxu0 %v253
    %274 = vmatmul.f32.gmra.mxu0 %v256
    %v275 = vpop.f32.mrf.mxu0
    %v276 = vadd.f32 0.0, %v275
    %277 = vdwg.mxu0
    %278 = vrot.lane.b32.xlu0 %v171, 64
    %v279 = vpop.permute.xlu0 %278
    %v282 = vsel %vm176, %v251, 0
    %284 = vmatpush.msra.mxu0 0.0
    %285 = vmatpush.msra.mxu0 0.0
    %286 = vmatpush.msra.mxu0 0.0
    %287 = vmatpush.msra.mxu0 0.0
    %288 = vmatpush.msra.mxu0 0.0
    %289 = vmatpush.msra.mxu0 0.0
    %290 = vmatpush.msra.mxu0 0.0
    %291 = vmatpush.msra.mxu0 0.0
    %292 = vmatpush.msra.mxu0 0.0
    %293 = vmatpush.msra.mxu0 0.0
    %294 = vmatpush.msra.mxu0 0.0
    %295 = vmatpush.msra.mxu0 0.0
    %296 = vmatpush.msra.mxu0 0.0
    %297 = vmatpush.msra.mxu0 0.0
    %298 = vmatpush.msra.mxu0 0.0
    %299 = vmatpush.msra.mxu0 %v279
    %300 = vmatmul.f32.gmra.mxu0 %v282
    %v301 = vpop.f32.mrf.mxu0
    %v302 = vadd.f32 0.0, %v301
    %303 = vdwg.mxu0
    %304 = vrot.lane.b32.xlu0 %v168, 120
    %v305 = vpop.permute.xlu0 %304
    %306 = vrot.lane.b32.xlu0 %v168, 88
    %v307 = vpop.permute.xlu0 %306
    %v308 = vsel %vm176, %v305, 0
    %v310 = vsel %vm176, %v307, 0
    %312 = vmatpush.xpose.msra.mxu0 0.0
    %313 = vmatpush.xpose.msra.mxu0 0.0
    %314 = vmatpush.xpose.msra.mxu0 0.0
    %315 = vmatpush.xpose.msra.mxu0 0.0
    %316 = vmatpush.xpose.msra.mxu0 0.0
    %317 = vmatpush.xpose.msra.mxu0 0.0
    %318 = vmatpush.xpose.msra.mxu0 0.0
    %319 = vmatpush.xpose.msra.mxu0 0.0
    %320 = vmatpush.xpose.msra.mxu0 0.0
    %321 = vmatpush.xpose.msra.mxu0 0.0
    %322 = vmatpush.xpose.msra.mxu0 0.0
    %323 = vmatpush.xpose.msra.mxu0 0.0
    %324 = vmatpush.xpose.msra.mxu0 0.0
    %325 = vmatpush.xpose.msra.mxu0 0.0
    %326 = vmatpush.xpose.msra.mxu0 0.0
    %327 = vmatpush.xpose.msra.mxu0 %v310
    %328 = vmatmul.f32.gmra.mxu0 %v308
    %v329 = vpop.f32.mrf.mxu0
    %v330 = vadd.f32 0.0, %v329
    %331 = vdwg.mxu0
    %332 = vrot.lane.b32.xlu0 %v171, 120
    %v333 = vpop.permute.xlu0 %332
    %334 = vrot.lane.b32.xlu0 %v171, 88
    %v335 = vpop.permute.xlu0 %334
    %v336 = vsel %vm176, %v333, 0
    %v338 = vsel %vm176, %v335, 0
    %340 = vmatpush.xpose.msra.mxu0 0.0
    %341 = vmatpush.xpose.msra.mxu0 0.0
    %342 = vmatpush.xpose.msra.mxu0 0.0
    %343 = vmatpush.xpose.msra.mxu0 0.0
    %344 = vmatpush.xpose.msra.mxu0 0.0
    %345 = vmatpush.xpose.msra.mxu0 0.0
    %346 = vmatpush.xpose.msra.mxu0 0.0
    %347 = vmatpush.xpose.msra.mxu0 0.0
    %348 = vmatpush.xpose.msra.mxu0 0.0
    %349 = vmatpush.xpose.msra.mxu0 0.0
    %350 = vmatpush.xpose.msra.mxu0 0.0
    %351 = vmatpush.xpose.msra.mxu0 0.0
    %352 = vmatpush.xpose.msra.mxu0 0.0
    %353 = vmatpush.xpose.msra.mxu0 0.0
    %354 = vmatpush.xpose.msra.mxu0 0.0
    %355 = vmatpush.xpose.msra.mxu0 %v338
    %356 = vmatmul.f32.gmra.mxu0 %v336
    %v357 = vpop.f32.mrf.mxu0
    %v358 = vadd.f32 0.0, %v357
    %359 = vdwg.mxu0
    %v360 = vmul.f32 %v330, 0.35355338
    %v361 = vmul.f32 %v358, 0.35355338
    %v362 = vsel %vm176, %v360, -inf
    %363 = vmax.xlane.f32.xlu0 %v362
    %v364 = vpop.xlane.xlu0 %363
    %v365 = vsel %vm176, %v361, -inf
    %366 = vmax.xlane.f32.xlu0 %v365
    %v367 = vpop.xlane.xlu0 %366
    %v368 = vsub.f32 %v360, %v364
    %v369 = vsub.f32 %v361, %v367
    %v370 = vmul.f32 %v368, 1.442695
    %v371 = vpow.pop %v370
    %v372 = vmul.f32 %v369, 1.442695
    %v373 = vpow.pop %v372
    %v374 = vsel %vm176, %v371, 0.0
    %375 = vadd.xlane.f32.xlu0 %v374
    %v376 = vpop.xlane.xlu0 %375
    %v377 = vsel %vm176, %v373, 0.0
    %378 = vadd.xlane.f32.xlu0 %v377
    %v379 = vpop.xlane.xlu0 %378
    %v380 = vrcp.pop %v376
    %v381 = vrcp.pop %v379
    %v382 = vmul.f32 %v371, %v380
    %v383 = vmul.f32 %v373, %v381
    %384 = vrot.lane.b32.xlu0 %v168, 56
    %v385 = vpop.permute.xlu0 %384
    %v388 = vsel %vm176, %v382, 0
    %390 = vmatpush.msra.mxu0 0.0
    %391 = vmatpush.msra.mxu0 0.0
    %392 = vmatpush.msra.mxu0 0.0
    %393 = vmatpush.msra.mxu0 0.0
    %394 = vmatpush.msra.mxu0 0.0
    %395 = vmatpush.msra.mxu0 0.0
    %396 = vmatpush.msra.mxu0 0.0
    %397 = vmatpush.msra.mxu0 0.0
    %398 = vmatpush.msra.mxu0 0.0
    %399 = vmatpush.msra.mxu0 0.0
    %400 = vmatpush.msra.mxu0 0.0
    %401 = vmatpush.msra.mxu0 0.0
    %402 = vmatpush.msra.mxu0 0.0
    %403 = vmatpush.msra.mxu0 0.0
    %404 = vmatpush.msra.mxu0 0.0
    %405 = vmatpush.msra.mxu0 %v385
    %406 = vmatmul.f32.gmra.mxu0 %v388
    %v407 = vpop.f32.mrf.mxu0
    %v408 = vadd.f32 0.0, %v407
    %409 = vdwg.mxu0
    %410 = vrot.lane.b32.xlu0 %v171, 56
    %v411 = vpop.permute.xlu0 %410
    %v414 = vsel %vm176, %v383, 0
    %416 = vmatpush.msra.mxu0 0.0
    %417 = vmatpush.msra.mxu0 0.0
    %418 = vmatpush.msra.mxu0 0.0
    %419 = vmatpush.msra.mxu0 0.0
    %420 = vmatpush.msra.mxu0 0.0
    %421 = vmatpush.msra.mxu0 0.0
    %422 = vmatpush.msra.mxu0 0.0
    %423 = vmatpush.msra.mxu0 0.0
    %424 = vmatpush.msra.mxu0 0.0
    %425 = vmatpush.msra.mxu0 0.0
    %426 = vmatpush.msra.mxu0 0.0
    %427 = vmatpush.msra.mxu0 0.0
    %428 = vmatpush.msra.mxu0 0.0
    %429 = vmatpush.msra.mxu0 0.0
    %430 = vmatpush.msra.mxu0 0.0
    %431 = vmatpush.msra.mxu0 %v411
    %432 = vmatmul.f32.gmra.mxu0 %v414
    %v433 = vpop.f32.mrf.mxu0
    %v434 = vadd.f32 0.0, %v433
    %435 = vdwg.mxu0
    %436 = vrot.lane.b32.xlu0 %v168, 112
    %v437 = vpop.permute.xlu0 %436
    %438 = vrot.lane.b32.xlu0 %v168, 80
    %v439 = vpop.permute.xlu0 %438
    %v440 = vsel %vm176, %v437, 0
    %v442 = vsel %vm176, %v439, 0
    %444 = vmatpush.xpose.msra.mxu0 0.0
    %445 = vmatpush.xpose.msra.mxu0 0.0
    %446 = vmatpush.xpose.msra.mxu0 0.0
    %447 = vmatpush.xpose.msra.mxu0 0.0
    %448 = vmatpush.xpose.msra.mxu0 0.0
    %449 = vmatpush.xpose.msra.mxu0 0.0
    %450 = vmatpush.xpose.msra.mxu0 0.0
    %451 = vmatpush.xpose.msra.mxu0 0.0
    %452 = vmatpush.xpose.msra.mxu0 0.0
    %453 = vmatpush.xpose.msra.mxu0 0.0
    %454 = vmatpush.xpose.msra.mxu0 0.0
    %455 = vmatpush.xpose.msra.mxu0 0.0
    %456 = vmatpush.xpose.msra.mxu0 0.0
    %457 = vmatpush.xpose.msra.mxu0 0.0
    %458 = vmatpush.xpose.msra.mxu0 0.0
    %459 = vmatpush.xpose.msra.mxu0 %v442
    %460 = vmatmul.f32.gmra.mxu0 %v440
    %v461 = vpop.f32.mrf.mxu0
    %v462 = vadd.f32 0.0, %v461
    %463 = vdwg.mxu0
    %464 = vrot.lane.b32.xlu0 %v171, 112
    %v465 = vpop.permute.xlu0 %464
    %466 = vrot.lane.b32.xlu0 %v171, 80
    %v467 = vpop.permute.xlu0 %466
    %v468 = vsel %vm176, %v465, 0
    %v470 = vsel %vm176, %v467, 0
    %472 = vmatpush.xpose.msra.mxu0 0.0
    %473 = vmatpush.xpose.msra.mxu0 0.0
    %474 = vmatpush.xpose.msra.mxu0 0.0
    %475 = vmatpush.xpose.msra.mxu0 0.0
    %476 = vmatpush.xpose.msra.mxu0 0.0
    %477 = vmatpush.xpose.msra.mxu0 0.0
    %478 = vmatpush.xpose.msra.mxu0 0.0
    %479 = vmatpush.xpose.msra.mxu0 0.0
    %480 = vmatpush.xpose.msra.mxu0 0.0
    %481 = vmatpush.xpose.msra.mxu0 0.0
    %482 = vmatpush.xpose.msra.mxu0 0.0
    %483 = vmatpush.xpose.msra.mxu0 0.0
    %484 = vmatpush.xpose.msra.mxu0 0.0
    %485 = vmatpush.xpose.msra.mxu0 0.0
    %486 = vmatpush.xpose.msra.mxu0 0.0
    %487 = vmatpush.xpose.msra.mxu0 %v470
    %488 = vmatmul.f32.gmra.mxu0 %v468
    %v489 = vpop.f32.mrf.mxu0
    %v490 = vadd.f32 0.0, %v489
    %491 = vdwg.mxu0
    %v492 = vmul.f32 %v462, 0.35355338
    %v493 = vmul.f32 %v490, 0.35355338
    %v494 = vsel %vm176, %v492, -inf
    %495 = vmax.xlane.f32.xlu0 %v494
    %v496 = vpop.xlane.xlu0 %495
    %v497 = vsel %vm176, %v493, -inf
    %498 = vmax.xlane.f32.xlu0 %v497
    %v499 = vpop.xlane.xlu0 %498
    %v500 = vsub.f32 %v492, %v496
    %v501 = vsub.f32 %v493, %v499
    %v502 = vmul.f32 %v500, 1.442695
    %v503 = vpow.pop %v502
    %v504 = vmul.f32 %v501, 1.442695
    %v505 = vpow.pop %v504
    %v506 = vsel %vm176, %v503, 0.0
    %507 = vadd.xlane.f32.xlu0 %v506
    %v508 = vpop.xlane.xlu0 %507
    %v509 = vsel %vm176, %v505, 0.0
    %510 = vadd.xlane.f32.xlu0 %v509
    %v511 = vpop.xlane.xlu0 %510
    %v512 = vrcp.pop %v508
    %v513 = vrcp.pop %v511
    %v514 = vmul.f32 %v503, %v512
    %v515 = vmul.f32 %v505, %v513
    %516 = vrot.lane.b32.xlu0 %v168, 48
    %v517 = vpop.permute.xlu0 %516
    %v520 = vsel %vm176, %v514, 0
    %522 = vmatpush.msra.mxu0 0.0
    %523 = vmatpush.msra.mxu0 0.0
    %524 = vmatpush.msra.mxu0 0.0
    %525 = vmatpush.msra.mxu0 0.0
    %526 = vmatpush.msra.mxu0 0.0
    %527 = vmatpush.msra.mxu0 0.0
    %528 = vmatpush.msra.mxu0 0.0
    %529 = vmatpush.msra.mxu0 0.0
    %530 = vmatpush.msra.mxu0 0.0
    %531 = vmatpush.msra.mxu0 0.0
    %532 = vmatpush.msra.mxu0 0.0
    %533 = vmatpush.msra.mxu0 0.0
    %534 = vmatpush.msra.mxu0 0.0
    %535 = vmatpush.msra.mxu0 0.0
    %536 = vmatpush.msra.mxu0 0.0
    %537 = vmatpush.msra.mxu0 %v517
    %538 = vmatmul.f32.gmra.mxu0 %v520
    %v539 = vpop.f32.mrf.mxu0
    %v540 = vadd.f32 0.0, %v539
    %541 = vdwg.mxu0
    %542 = vrot.lane.b32.xlu0 %v171, 48
    %v543 = vpop.permute.xlu0 %542
    %v546 = vsel %vm176, %v515, 0
    %548 = vmatpush.msra.mxu0 0.0
    %549 = vmatpush.msra.mxu0 0.0
    %550 = vmatpush.msra.mxu0 0.0
    %551 = vmatpush.msra.mxu0 0.0
    %552 = vmatpush.msra.mxu0 0.0
    %553 = vmatpush.msra.mxu0 0.0
    %554 = vmatpush.msra.mxu0 0.0
    %555 = vmatpush.msra.mxu0 0.0
    %556 = vmatpush.msra.mxu0 0.0
    %557 = vmatpush.msra.mxu0 0.0
    %558 = vmatpush.msra.mxu0 0.0
    %559 = vmatpush.msra.mxu0 0.0
    %560 = vmatpush.msra.mxu0 0.0
    %561 = vmatpush.msra.mxu0 0.0
    %562 = vmatpush.msra.mxu0 0.0
    %563 = vmatpush.msra.mxu0 %v543
    %564 = vmatmul.f32.gmra.mxu0 %v546
    %v565 = vpop.f32.mrf.mxu0
    %v566 = vadd.f32 0.0, %v565
    %567 = vdwg.mxu0
    %568 = vrot.lane.b32.xlu0 %v168, 104
    %v569 = vpop.permute.xlu0 %568
    %570 = vrot.lane.b32.xlu0 %v168, 72
    %v571 = vpop.permute.xlu0 %570
    %v572 = vsel %vm176, %v569, 0
    %v574 = vsel %vm176, %v571, 0
    %576 = vmatpush.xpose.msra.mxu0 0.0
    %577 = vmatpush.xpose.msra.mxu0 0.0
    %578 = vmatpush.xpose.msra.mxu0 0.0
    %579 = vmatpush.xpose.msra.mxu0 0.0
    %580 = vmatpush.xpose.msra.mxu0 0.0
    %581 = vmatpush.xpose.msra.mxu0 0.0
    %582 = vmatpush.xpose.msra.mxu0 0.0
    %583 = vmatpush.xpose.msra.mxu0 0.0
    %584 = vmatpush.xpose.msra.mxu0 0.0
    %585 = vmatpush.xpose.msra.mxu0 0.0
    %586 = vmatpush.xpose.msra.mxu0 0.0
    %587 = vmatpush.xpose.msra.mxu0 0.0
    %588 = vmatpush.xpose.msra.mxu0 0.0
    %589 = vmatpush.xpose.msra.mxu0 0.0
    %590 = vmatpush.xpose.msra.mxu0 0.0
    %591 = vmatpush.xpose.msra.mxu0 %v574
    %592 = vmatmul.f32.gmra.mxu0 %v572
    %v593 = vpop.f32.mrf.mxu0
    %v594 = vadd.f32 0.0, %v593
    %595 = vdwg.mxu0
    %596 = vrot.lane.b32.xlu0 %v171, 104
    %v597 = vpop.permute.xlu0 %596
    %598 = vrot.lane.b32.xlu0 %v171, 72
    %v599 = vpop.permute.xlu0 %598
    %v600 = vsel %vm176, %v597, 0
    %v602 = vsel %vm176, %v599, 0
    %604 = vmatpush.xpose.msra.mxu0 0.0
    %605 = vmatpush.xpose.msra.mxu0 0.0
    %606 = vmatpush.xpose.msra.mxu0 0.0
    %607 = vmatpush.xpose.msra.mxu0 0.0
    %608 = vmatpush.xpose.msra.mxu0 0.0
    %609 = vmatpush.xpose.msra.mxu0 0.0
    %610 = vmatpush.xpose.msra.mxu0 0.0
    %611 = vmatpush.xpose.msra.mxu0 0.0
    %612 = vmatpush.xpose.msra.mxu0 0.0
    %613 = vmatpush.xpose.msra.mxu0 0.0
    %614 = vmatpush.xpose.msra.mxu0 0.0
    %615 = vmatpush.xpose.msra.mxu0 0.0
    %616 = vmatpush.xpose.msra.mxu0 0.0
    %617 = vmatpush.xpose.msra.mxu0 0.0
    %618 = vmatpush.xpose.msra.mxu0 0.0
    %619 = vmatpush.xpose.msra.mxu0 %v602
    %620 = vmatmul.f32.gmra.mxu0 %v600
    %v621 = vpop.f32.mrf.mxu0
    %v622 = vadd.f32 0.0, %v621
    %623 = vdwg.mxu0
    %v624 = vmul.f32 %v594, 0.35355338
    %v625 = vmul.f32 %v622, 0.35355338
    %v626 = vsel %vm176, %v624, -inf
    %627 = vmax.xlane.f32.xlu0 %v626
    %v628 = vpop.xlane.xlu0 %627
    %v629 = vsel %vm176, %v625, -inf
    %630 = vmax.xlane.f32.xlu0 %v629
    %v631 = vpop.xlane.xlu0 %630
    %v632 = vsub.f32 %v624, %v628
    %v633 = vsub.f32 %v625, %v631
    %v634 = vmul.f32 %v632, 1.442695
    %v635 = vpow.pop %v634
    %v636 = vmul.f32 %v633, 1.442695
    %v637 = vpow.pop %v636
    %v638 = vsel %vm176, %v635, 0.0
    %639 = vadd.xlane.f32.xlu0 %v638
    %v640 = vpop.xlane.xlu0 %639
    %v641 = vsel %vm176, %v637, 0.0
    %642 = vadd.xlane.f32.xlu0 %v641
    %v643 = vpop.xlane.xlu0 %642
    %v644 = vrcp.pop %v640
    %v645 = vrcp.pop %v643
    %v646 = vmul.f32 %v635, %v644
    %v647 = vmul.f32 %v637, %v645
    %648 = vrot.lane.b32.xlu0 %v168, 40
    %v649 = vpop.permute.xlu0 %648
    %v652 = vsel %vm176, %v646, 0
    %654 = vmatpush.msra.mxu0 0.0
    %655 = vmatpush.msra.mxu0 0.0
    %656 = vmatpush.msra.mxu0 0.0
    %657 = vmatpush.msra.mxu0 0.0
    %658 = vmatpush.msra.mxu0 0.0
    %659 = vmatpush.msra.mxu0 0.0
    %660 = vmatpush.msra.mxu0 0.0
    %661 = vmatpush.msra.mxu0 0.0
    %662 = vmatpush.msra.mxu0 0.0
    %663 = vmatpush.msra.mxu0 0.0
    %664 = vmatpush.msra.mxu0 0.0
    %665 = vmatpush.msra.mxu0 0.0
    %666 = vmatpush.msra.mxu0 0.0
    %667 = vmatpush.msra.mxu0 0.0
    %668 = vmatpush.msra.mxu0 0.0
    %669 = vmatpush.msra.mxu0 %v649
    %670 = vmatmul.f32.gmra.mxu0 %v652
    %v671 = vpop.f32.mrf.mxu0
    %v672 = vadd.f32 0.0, %v671
    %673 = vdwg.mxu0
    %674 = vrot.lane.b32.xlu0 %v171, 40
    %v675 = vpop.permute.xlu0 %674
    %v678 = vsel %vm176, %v647, 0
    %680 = vmatpush.msra.mxu0 0.0
    %681 = vmatpush.msra.mxu0 0.0
    %682 = vmatpush.msra.mxu0 0.0
    %683 = vmatpush.msra.mxu0 0.0
    %684 = vmatpush.msra.mxu0 0.0
    %685 = vmatpush.msra.mxu0 0.0
    %686 = vmatpush.msra.mxu0 0.0
    %687 = vmatpush.msra.mxu0 0.0
    %688 = vmatpush.msra.mxu0 0.0
    %689 = vmatpush.msra.mxu0 0.0
    %690 = vmatpush.msra.mxu0 0.0
    %691 = vmatpush.msra.mxu0 0.0
    %692 = vmatpush.msra.mxu0 0.0
    %693 = vmatpush.msra.mxu0 0.0
    %694 = vmatpush.msra.mxu0 0.0
    %695 = vmatpush.msra.mxu0 %v675
    %696 = vmatmul.f32.gmra.mxu0 %v678
    %v697 = vpop.f32.mrf.mxu0
    %v698 = vadd.f32 0.0, %v697
    %699 = vdwg.mxu0
    %702 = vrot.lane.b32.xlu0 %v408, 8
    %v703 = vpop.permute.xlu0 %702
    %704 = vrot.lane.b32.xlu0 %v434, 8
    %v705 = vpop.permute.xlu0 %704
    %710 = vrot.lane.b32.xlu0 %v540, 16
    %v711 = vpop.permute.xlu0 %710
    %712 = vrot.lane.b32.xlu0 %v566, 16
    %v713 = vpop.permute.xlu0 %712
    %718 = vrot.lane.b32.xlu0 %v672, 24
    %v719 = vpop.permute.xlu0 %718
    %720 = vrot.lane.b32.xlu0 %v698, 24
    %v721 = vpop.permute.xlu0 %720
    %v724 = vsel %vm176, %v276, %v703
    %v725 = vsel %vm176, %v302, %v705
    %vm726 = vcmask 130048
    %v727 = vsel %vm726, %v724, %v711
    %v728 = vsel %vm726, %v725, %v713
    %vm729 = vcmask 195584
    %v730 = vsel %vm729, %v727, %v719
    %v731 = vsel %vm729, %v728, %v721
    %v732 = vld [vmem:[#allocation7 + $0x20] sm:$0xff]
    %v733 = vld [vmem:[#allocation7 + $0x28] sm:$0xff]
    %v734 = vld [vmem:[#allocation7 + $0x30] sm:$0xff]
    %v735 = vld [vmem:[#allocation7 + $0x38] sm:$0xff]
    %v736 = vld [vmem:[#allocation9 + $0x1] sm:$0x1]
    %v737 = vperm.slane %v736, 0
    %v739 = vsel %vm106, %v730, 0
    %v742 = vsel %vm106, %v731, 0
    %744 = vmatpush.msra.mxu0 0.0
    %745 = vmatpush.msra.mxu0 0.0
    %746 = vmatpush.msra.mxu0 0.0
    %747 = vmatpush.msra.mxu0 0.0
    %748 = vmatpush.msra.mxu0 0.0
    %749 = vmatpush.msra.mxu0 0.0
    %750 = vmatpush.msra.mxu0 0.0
    %751 = vmatpush.msra.mxu0 0.0
    %752 = vmatpush.msra.mxu0 0.0
    %753 = vmatpush.msra.mxu0 0.0
    %754 = vmatpush.msra.mxu0 0.0
    %755 = vmatpush.msra.mxu0 0.0
    %756 = vmatpush.msra.mxu0 %v735
    %757 = vmatpush.msra.mxu0 %v734
    %758 = vmatpush.msra.mxu0 %v733
    %759 = vmatpush.msra.mxu0 %v732
    %760 = vmatmul.f32.gmra.mxu0 %v739
    %v761 = vpop.f32.mrf.mxu0
    %v762 = vadd.f32 %v737, %v761
    %763 = vmatmul.f32.gmra.mxu0 %v742
    %v764 = vpop.f32.mrf.mxu0
    %v765 = vadd.f32 %v737, %v764
    %766 = vdwg.mxu0
    %v767 = vadd.f32 %v136, %v762
    %v768 = vadd.f32 %v137, %v765
    %v769 = vsel %vm106, %v767, 0.0
    %770 = vadd.xlane.f32.xlu0 %v769
    %v771 = vpop.xlane.xlu0 %770
    %v772 = vsel %vm106, %v768, 0.0
    %773 = vadd.xlane.f32.xlu0 %v772
    %v774 = vpop.xlane.xlu0 %773
    %v775 = vrcp.pop 32.0
    %v776 = vmul.f32 32.0, %v775
    %v777 = vsub.f32 1.0, %v776
    %v778 = vmul.f32 %v775, %v777
    %v779 = vadd.f32 %v775, %v778
    %vm780 = vweird.f32 %v775
    %v781 = vsel %vm780, %v775, %v779
    %v782 = vmul.f32 %v771, %v781
    %v783 = vmul.f32 %v774, %v781
    %v784 = vmul.f32 %v767, %v767
    %v785 = vmul.f32 %v768, %v768
    %v786 = vsel %vm106, %v784, 0.0
    %787 = vadd.xlane.f32.xlu0 %v786
    %v788 = vpop.xlane.xlu0 %787
    %v789 = vsel %vm106, %v785, 0.0
    %790 = vadd.xlane.f32.xlu0 %v789
    %v791 = vpop.xlane.xlu0 %790
    %v792 = vmul.f32 %v788, %v781
    %v793 = vmul.f32 %v791, %v781
    %v794 = vmul.f32 %v782, %v782
    %v795 = vmul.f32 %v783, %v783
    %v796 = vsub.f32 %v792, %v794
    %v797 = vsub.f32 %v793, %v795
    %v798 = vsub.f32 %v767, %v782
    %v799 = vsub.f32 %v768, %v783
    %v800 = vadd.f32 %v796, 1e-05
    %v801 = vadd.f32 %v797, 1e-05
    %v802 = vrsqrt.pop %v800
    %v803 = vmul.f32 %v802, %v800
    %v804 = vmul.f32 %v803, %v802
    %v805 = vmul.f32 0.5, %v804
    %v806 = vsub.f32 1.5, %v805
    %v807 = vmul.f32 %v802, %v806
    %vm808 = vweird.f32 %v800
    %vm809 = vweird.f32 %v802
    %vm810 = vmor %vm808, %vm809
    %v811 = vsel %vm810, %v802, %v807
    %v812 = vrsqrt.pop %v801
    %v813 = vmul.f32 %v812, %v801
    %v814 = vmul.f32 %v813, %v812
    %v815 = vmul.f32 0.5, %v814
    %v816 = vsub.f32 1.5, %v815
    %v817 = vmul.f32 %v812, %v816
    %vm818 = vweird.f32 %v801
    %vm819 = vweird.f32 %v812
    %vm820 = vmor %vm818, %vm819
    %v821 = vsel %vm820, %v812, %v817
    %v822 = vmul.f32 %v798, %v811
    %v823 = vmul.f32 %v799, %v821
    %v824 = vld [vmem:[#allocation9 + $0x2] sm:$0x1]
    %v825 = vperm.slane %v824, 0
    %v826 = vmul.f32 %v822, %v825
    %v827 = vmul.f32 %v823, %v825
    %v828 = vld [vmem:[#allocation9 + $0x3] sm:$0x1]
    %v829 = vperm.slane %v828, 0
    %v830 = vadd.f32 %v826, %v829
    %v831 = vadd.f32 %v827, %v829
    %v832 = vld [vmem:[#allocation7 + $0x40] sm:$0xff]
    %v833 = vld [vmem:[#allocation7 + $0x48] sm:$0xff]
    %v834 = vld [vmem:[#allocation7 + $0x50] sm:$0xff]
    %v835 = vld [vmem:[#allocation7 + $0x58] sm:$0xff]
    %v836 = vld [vmem:[#allocation9 + $0x4] sm:$0x1]
    %v837 = vperm.slane %v836, 0
    %v839 = vsel %vm106, %v830, 0
    %v842 = vsel %vm106, %v831, 0
    %844 = vmatpush.msra.mxu0 0.0
    %845 = vmatpush.msra.mxu0 0.0
    %846 = vmatpush.msra.mxu0 0.0
    %847 = vmatpush.msra.mxu0 0.0
    %848 = vmatpush.msra.mxu0 0.0
    %849 = vmatpush.msra.mxu0 0.0
    %850 = vmatpush.msra.mxu0 0.0
    %851 = vmatpush.msra.mxu0 0.0
    %852 = vmatpush.msra.mxu0 0.0
    %853 = vmatpush.msra.mxu0 0.0
    %854 = vmatpush.msra.mxu0 0.0
    %855 = vmatpush.msra.mxu0 0.0
    %856 = vmatpush.msra.mxu0 %v835
    %857 = vmatpush.msra.mxu0 %v834
    %858 = vmatpush.msra.mxu0 %v833
    %859 = vmatpush.msra.mxu0 %v832
    %860 = vmatmul.f32.gmra.mxu0 %v839
    %v861 = vpop.f32.mrf.mxu0
    %v862 = vadd.f32 %v837, %v861
    %863 = vmatmul.f32.gmra.mxu0 %v842
    %v864 = vpop.f32.mrf.mxu0
    %v865 = vadd.f32 %v837, %v864
    %866 = vdwg.mxu0
    %v867 = vmax.f32 %v862, 0.0
    %v868 = vmax.f32 %v865, 0.0
    %v869 = vld [vmem:[#allocation7 + $0x60] sm:$0xff]
    %v870 = vld [vmem:[#allocation7 + $0x68] sm:$0xff]
    %v871 = vld [vmem:[#allocation7 + $0x70] sm:$0xff]
    %v872 = vld [vmem:[#allocation7 + $0x78] sm:$0xff]
    %v873 = vld [vmem:[#allocation7 + $0x80] sm:$0xff]
    %v874 = vld [vmem:[#allocation7 + $0x88] sm:$0xff]
    %v875 = vld [vmem:[#allocation7 + $0x90] sm:$0xff]
    %v876 = vld [vmem:[#allocation7 + $0x98] sm:$0xff]
    %v877 = vld [vmem:[#allocation9 + $0x5] sm:$0x1]
    %v878 = vperm.slane %v877, 0
    %vm879 = vcmask 523264
    %v881 = vsel %vm879, %v867, 0
    %v884 = vsel %vm879, %v868, 0
    %886 = vmatpush.msra.mxu0 0.0
    %887 = vmatpush.msra.mxu0 0.0
    %888 = vmatpush.msra.mxu0 0.0
    %889 = vmatpush.msra.mxu0 0.0
    %890 = vmatpush.msra.mxu0 0.0
    %891 = vmatpush.msra.mxu0 0.0
    %892 = vmatpush.msra.mxu0 0.0
    %893 = vmatpush.msra.mxu0 0.0
    %894 = vmatpush.msra.mxu0 %v876
    %895 = vmatpush.msra.mxu0 %v875
    %896 = vmatpush.msra.mxu0 %v874
    %897 = vmatpush.msra.mxu0 %v873
    %898 = vmatpush.msra.mxu0 %v872
    %899 = vmatpush.msra.mxu0 %v871
    %900 = vmatpush.msra.mxu0 %v870
    %901 = vmatpush.msra.mxu0 %v869
    %902 = vmatmul.f32.gmra.mxu0 %v881
    %v903 = vpop.f32.mrf.mxu0
    %v904 = vadd.f32 %v878, %v903
    %905 = vmatmul.f32.gmra.mxu0 %v884
    %v906 = vpop.f32.mrf.mxu0
    %v907 = vadd.f32 %v878, %v906
    %908 = vdwg.mxu0
    %v909 = vadd.f32 %v830, %v904
    %v910 = vadd.f32 %v831, %v907
    %v911 = vsel %vm106, %v909, 0.0
    %912 = vadd.xlane.f32.xlu0 %v911
    %v913 = vpop.xlane.xlu0 %912
    %v914 = vsel %vm106, %v910, 0.0
    %915 = vadd.xlane.f32.xlu0 %v914
    %v916 = vpop.xlane.xlu0 %915
    %v917 = vmul.f32 %v913, %v781
    %v918 = vmul.f32 %v916, %v781
    %v919 = vmul.f32 %v909, %v909
    %v920 = vmul.f32 %v910, %v910
    %v921 = vsel %vm106, %v919, 0.0
    %922 = vadd.xlane.f32.xlu0 %v921
    %v923 = vpop.xlane.xlu0 %922
    %v924 = vsel %vm106, %v920, 0.0
    %925 = vadd.xlane.f32.xlu0 %v924
    %v926 = vpop.xlane.xlu0 %925
    %v927 = vmul.f32 %v923, %v781
    %v928 = vmul.f32 %v926, %v781
    %v929 = vmul.f32 %v917, %v917
    %v930 = vmul.f32 %v918, %v918
    %v931 = vsub.f32 %v927, %v929
    %v932 = vsub.f32 %v928, %v930
    %v933 = vsub.f32 %v909, %v917
    %v934 = vsub.f32 %v910, %v918
    %v935 = vadd.f32 %v931, 1e-05
    %v936 = vadd.f32 %v932, 1e-05
    %v937 = vrsqrt.pop %v935
    %v938 = vmul.f32 %v937, %v935
    %v939 = vmul.f32 %v938, %v937
    %v940 = vmul.f32 0.5, %v939
    %v941 = vsub.f32 1.5, %v940
    %v942 = vmul.f32 %v937, %v941
    %vm943 = vweird.f32 %v935
    %vm944 = vweird.f32 %v937
    %vm945 = vmor %vm943, %vm944
    %v946 = vsel %vm945, %v937, %v942
    %v947 = vrsqrt.pop %v936
    %v948 = vmul.f32 %v947, %v936
    %v949 = vmul.f32 %v948, %v947
    %v950 = vmul.f32 0.5, %v949
    %v951 = vsub.f32 1.5, %v950
    %v952 = vmul.f32 %v947, %v951
    %vm953 = vweird.f32 %v936
    %vm954 = vweird.f32 %v947
    %vm955 = vmor %vm953, %vm954
    %v956 = vsel %vm955, %v947, %v952
    %v957 = vmul.f32 %v933, %v946
    %v958 = vmul.f32 %v934, %v956
    %v959 = vld [vmem:[#allocation9 + $0x6] sm:$0x1]
    %v960 = vperm.slane %v959, 0
    %v961 = vmul.f32 %v957, %v960
    %v962 = vmul.f32 %v958, %v960
    %v963 = vld [vmem:[#allocation9 + $0x7] sm:$0x1]
    %v964 = vperm.slane %v963, 0
    %v965 = vadd.f32 %v961, %v964
    %v966 = vadd.f32 %v962, %v964
    %v967 = vld [vmem:[#allocation7 + $0xa0] sm:$0xff]
    %v968 = vld [vmem:[#allocation7 + $0xa8] sm:$0xff]
    %v969 = vld [vmem:[#allocation7 + $0xb0] sm:$0xff]
    %v970 = vld [vmem:[#allocation7 + $0xb8] sm:$0xff]
    %v971 = vld [vmem:[#allocation9 + $0x8] sm:$0x1]
    %v972 = vperm.slane %v971, 0
    %v974 = vsel %vm106, %v965, 0
    %v977 = vsel %vm106, %v966, 0
    %979 = vmatpush.msra.mxu0 0.0
    %980 = vmatpush.msra.mxu0 0.0
    %981 = vmatpush.msra.mxu0 0.0
    %982 = vmatpush.msra.mxu0 0.0
    %983 = vmatpush.msra.mxu0 0.0
    %984 = vmatpush.msra.mxu0 0.0
    %985 = vmatpush.msra.mxu0 0.0
    %986 = vmatpush.msra.mxu0 0.0
    %987 = vmatpush.msra.mxu0 0.0
    %988 = vmatpush.msra.mxu0 0.0
    %989 = vmatpush.msra.mxu0 0.0
    %990 = vmatpush.msra.mxu0 0.0
    %991 = vmatpush.msra.mxu0 %v970
    %992 = vmatpush.msra.mxu0 %v969
    %993 = vmatpush.msra.mxu0 %v968
    %994 = vmatpush.msra.mxu0 %v967
    %995 = vmatmul.f32.gmra.mxu0 %v974
    %v996 = vpop.f32.mrf.mxu0
    %v997 = vadd.f32 %v972, %v996
    %998 = vmatmul.f32.gmra.mxu0 %v977
    %v999 = vpop.f32.mrf.mxu0
    %v1000 = vadd.f32 %v972, %v999
    %1001 = vdwg.mxu0
    %1003 = vrot.lane.b32.xlu0 %v997, 96
    %v1004 = vpop.permute.xlu0 %1003
    %v1005 = vsel %vm176, %v997, 0
    %v1007 = vsel %vm176, %v1004, 0
    %1009 = vmatpush.xpose.msra.mxu0 0.0
    %1010 = vmatpush.xpose.msra.mxu0 0.0
    %1011 = vmatpush.xpose.msra.mxu0 0.0
    %1012 = vmatpush.xpose.msra.mxu0 0.0
    %1013 = vmatpush.xpose.msra.mxu0 0.0
    %1014 = vmatpush.xpose.msra.mxu0 0.0
    %1015 = vmatpush.xpose.msra.mxu0 0.0
    %1016 = vmatpush.xpose.msra.mxu0 0.0
    %1017 = vmatpush.xpose.msra.mxu0 0.0
    %1018 = vmatpush.xpose.msra.mxu0 0.0
    %1019 = vmatpush.xpose.msra.mxu0 0.0
    %1020 = vmatpush.xpose.msra.mxu0 0.0
    %1021 = vmatpush.xpose.msra.mxu0 0.0
    %1022 = vmatpush.xpose.msra.mxu0 0.0
    %1023 = vmatpush.xpose.msra.mxu0 0.0
    %1024 = vmatpush.xpose.msra.mxu0 %v1007
    %1025 = vmatmul.f32.gmra.mxu0 %v1005
    %v1026 = vpop.f32.mrf.mxu0
    %v1027 = vadd.f32 0.0, %v1026
    %1028 = vdwg.mxu0
    %1030 = vrot.lane.b32.xlu0 %v1000, 96
    %v1031 = vpop.permute.xlu0 %1030
    %v1032 = vsel %vm176, %v1000, 0
    %v1034 = vsel %vm176, %v1031, 0
    %1036 = vmatpush.xpose.msra.mxu0 0.0
    %1037 = vmatpush.xpose.msra.mxu0 0.0
    %1038 = vmatpush.xpose.msra.mxu0 0.0
    %1039 = vmatpush.xpose.msra.mxu0 0.0
    %1040 = vmatpush.xpose.msra.mxu0 0.0
    %1041 = vmatpush.xpose.msra.mxu0 0.0
    %1042 = vmatpush.xpose.msra.mxu0 0.0
    %1043 = vmatpush.xpose.msra.mxu0 0.0
    %1044 = vmatpush.xpose.msra.mxu0 0.0
    %1045 = vmatpush.xpose.msra.mxu0 0.0
    %1046 = vmatpush.xpose.msra.mxu0 0.0
    %1047 = vmatpush.xpose.msra.mxu0 0.0
    %1048 = vmatpush.xpose.msra.mxu0 0.0
    %1049 = vmatpush.xpose.msra.mxu0 0.0
    %1050 = vmatpush.xpose.msra.mxu0 0.0
    %1051 = vmatpush.xpose.msra.mxu0 %v1034
    %1052 = vmatmul.f32.gmra.mxu0 %v1032
    %v1053 = vpop.f32.mrf.mxu0
    %v1054 = vadd.f32 0.0, %v1053
    %1055 = vdwg.mxu0
    %v1056 = vmul.f32 %v1027, 0.35355338
    %v1057 = vmul.f32 %v1054, 0.35355338
    %v1058 = vsel %vm176, %v1056, -inf
    %1059 = vmax.xlane.f32.xlu0 %v1058
    %v1060 = vpop.xlane.xlu0 %1059
    %v1061 = vsel %vm176, %v1057, -inf
    %1062 = vmax.xlane.f32.xlu0 %v1061
    %v1063 = vpop.xlane.xlu0 %1062
    %v1064 = vsub.f32 %v1056, %v1060
    %v1065 = vsub.f32 %v1057, %v1063
    %v1066 = vmul.f32 %v1064, 1.442695
    %v1067 = vpow.pop %v1066
    %v1068 = vmul.f32 %v1065, 1.442695
    %v1069 = vpow.pop %v1068
    %v1070 = vsel %vm176, %v1067, 0.0
    %1071 = vadd.xlane.f32.xlu0 %v1070
    %v1072 = vpop.xlane.xlu0 %1071
    %v1073 = vsel %vm176, %v1069, 0.0
    %1074 = vadd.xlane.f32.xlu0 %v1073
    %v1075 = vpop.xlane.xlu0 %1074
    %v1076 = vrcp.pop %v1072
    %v1077 = vrcp.pop %v1075
    %v1078 = vmul.f32 %v1067, %v1076
    %v1079 = vmul.f32 %v1069, %v1077
    %1080 = vrot.lane.b32.xlu0 %v997, 64
    %v1081 = vpop.permute.xlu0 %1080
    %v1084 = vsel %vm176, %v1078, 0
    %1086 = vmatpush.msra.mxu0 0.0
    %1087 = vmatpush.msra.mxu0 0.0
    %1088 = vmatpush.msra.mxu0 0.0
    %1089 = vmatpush.msra.mxu0 0.0
    %1090 = vmatpush.msra.mxu0 0.0
    %1091 = vmatpush.msra.mxu0 0.0
    %1092 = vmatpush.msra.mxu0 0.0
    %1093 = vmatpush.msra.mxu0 0.0
    %1094 = vmatpush.msra.mxu0 0.0
    %1095 = vmatpush.msra.mxu0 0.0
    %1096 = vmatpush.msra.mxu0 0.0
    %1097 = vmatpush.msra.mxu0 0.0
    %1098 = vmatpush.msra.mxu0 0.0
    %1099 = vmatpush.msra.mxu0 0.0
    %1100 = vmatpush.msra.mxu0 0.0
    %1101 = vmatpush.msra.mxu0 %v1081
    %1102 = vmatmul.f32.gmra.mxu0 %v1084
    %v1103 = vpop.f32.mrf.mxu0
    %v1104 = vadd.f32 0.0, %v1103
    %1105 = vdwg.mxu0
    %1106 = vrot.lane.b32.xlu0 %v1000, 64
    %v1107 = vpop.permute.xlu0 %1106
    %v1110 = vsel %vm176, %v1079, 0
    %1112 = vmatpush.msra.mxu0 0.0
    %1113 = vmatpush.msra.mxu0 0.0
    %1114 = vmatpush.msra.mxu0 0.0
    %1115 = vmatpush.msra.mxu0 0.0
    %1116 = vmatpush.msra.mxu0 0.0
    %1117 = vmatpush.msra.mxu0 0.0
    %1118 = vmatpush.msra.mxu0 0.0
    %1119 = vmatpush.msra.mxu0 0.0
    %1120 = vmatpush.msra.mxu0 0.0
    %1121 = vmatpush.msra.mxu0 0.0
    %1122 = vmatpush.msra.mxu0 0.0
    %1123 = vmatpush.msra.mxu0 0.0
    %1124 = vmatpush.msra.mxu0 0.0
    %1125 = vmatpush.msra.mxu0 0.0
    %1126 = vmatpush.msra.mxu0 0.0
    %1127 = vmatpush.msra.mxu0 %v1107
    %1128 = vmatmul.f32.gmra.mxu0 %v1110
    %v1129 = vpop.f32.mrf.mxu0
    %v1130 = vadd.f32 0.0, %v1129
    %1131 = vdwg.mxu0
    %1132 = vrot.lane.b32.xlu0 %v997, 120
    %v1133 = vpop.permute.xlu0 %1132
    %1134 = vrot.lane.b32.xlu0 %v997, 88
    %v1135 = vpop.permute.xlu0 %1134
    %v1136 = vsel %vm176, %v1133, 0
    %v1138 = vsel %vm176, %v1135, 0
    %1140 = vmatpush.xpose.msra.mxu0 0.0
    %1141 = vmatpush.xpose.msra.mxu0 0.0
    %1142 = vmatpush.xpose.msra.mxu0 0.0
    %1143 = vmatpush.xpose.msra.mxu0 0.0
    %1144 = vmatpush.xpose.msra.mxu0 0.0
    %1145 = vmatpush.xpose.msra.mxu0 0.0
    %1146 = vmatpush.xpose.msra.mxu0 0.0
    %1147 = vmatpush.xpose.msra.mxu0 0.0
    %1148 = vmatpush.xpose.msra.mxu0 0.0
    %1149 = vmatpush.xpose.msra.mxu0 0.0
    %1150 = vmatpush.xpose.msra.mxu0 0.0
    %1151 = vmatpush.xpose.msra.mxu0 0.0
    %1152 = vmatpush.xpose.msra.mxu0 0.0
    %1153 = vmatpush.xpose.msra.mxu0 0.0
    %1154 = vmatpush.xpose.msra.mxu0 0.0
    %1155 = vmatpush.xpose.msra.mxu0 %v1138
    %1156 = vmatmul.f32.gmra.mxu0 %v1136
    %v1157 = vpop.f32.mrf.mxu0
    %v1158 = vadd.f32 0.0, %v1157
    %1159 = vdwg.mxu0
    %1160 = vrot.lane.b32.xlu0 %v1000, 120
    %v1161 = vpop.permute.xlu0 %1160
    %1162 = vrot.lane.b32.xlu0 %v1000, 88
    %v1163 = vpop.permute.xlu0 %1162
    %v1164 = vsel %vm176, %v1161, 0
    %v1166 = vsel %vm176, %v1163, 0
    %1168 = vmatpush.xpose.msra.mxu0 0.0
    %1169 = vmatpush.xpose.msra.mxu0 0.0
    %1170 = vmatpush.xpose.msra.mxu0 0.0
    %1171 = vmatpush.xpose.msra.mxu0 0.0
    %1172 = vmatpush.xpose.msra.mxu0 0.0
    %1173 = vmatpush.xpose.msra.mxu0 0.0
    %1174 = vmatpush.xpose.msra.mxu0 0.0
    %1175 = vmatpush.xpose.msra.mxu0 0.0
    %1176 = vmatpush.xpose.msra.mxu0 0.0
    %1177 = vmatpush.xpose.msra.mxu0 0.0
    %1178 = vmatpush.xpose.msra.mxu0 0.0
    %1179 = vmatpush.xpose.msra.mxu0 0.0
    %1180 = vmatpush.xpose.msra.mxu0 0.0
    %1181 = vmatpush.xpose.msra.mxu0 0.0
    %1182 = vmatpush.xpose.msra.mxu0 0.0
    %1183 = vmatpush.xpose.msra.mxu0 %v1166
    %1184 = vmatmul.f32.gmra.mxu0 %v1164
    %v1185 = vpop.f32.mrf.mxu0
    %v1186 = vadd.f32 0.0, %v1185
    %1187 = vdwg.mxu0
    %v1188 = vmul.f32 %v1158, 0.35355338
    %v1189 = vmul.f32 %v1186, 0.35355338
    %v1190 = vsel %vm176, %v1188, -inf
    %1191 = vmax.xlane.f32.xlu0 %v1190
    %v1192 = vpop.xlane.xlu0 %1191
    %v1193 = vsel %vm176, %v1189, -inf
    %1194 = vmax.xlane.f32.xlu0 %v1193
    %v1195 = vpop.xlane.xlu0 %1194
    %v1196 = vsub.f32 %v1188, %v1192
    %v1197 = vsub.f32 %v1189, %v1195
    %v1198 = vmul.f32 %v1196, 1.442695
    %v1199 = vpow.pop %v1198
    %v1200 = vmul.f32 %v1197, 1.442695
    %v1201 = vpow.pop %v1200
    %v1202 = vsel %vm176, %v1199, 0.0
    %1203 = vadd.xlane.f32.xlu0 %v1202
    %v1204 = vpop.xlane.xlu0 %1203
    %v1205 = vsel %vm176, %v1201, 0.0
    %1206 = vadd.xlane.f32.xlu0 %v1205
    %v1207 = vpop.xlane.xlu0 %1206
    %v1208 = vrcp.pop %v1204
    %v1209 = vrcp.pop %v1207
    %v1210 = vmul.f32 %v1199, %v1208
    %v1211 = vmul.f32 %v1201, %v1209
    %1212 = vrot.lane.b32.xlu0 %v997, 56
    %v1213 = vpop.permute.xlu0 %1212
    %v1216 = vsel %vm176, %v1210, 0
    %1218 = vmatpush.msra.mxu0 0.0
    %1219 = vmatpush.msra.mxu0 0.0
    %1220 = vmatpush.msra.mxu0 0.0
    %1221 = vmatpush.msra.mxu0 0.0
    %1222 = vmatpush.msra.mxu0 0.0
    %1223 = vmatpush.msra.mxu0 0.0
    %1224 = vmatpush.msra.mxu0 0.0
    %1225 = vmatpush.msra.mxu0 0.0
    %1226 = vmatpush.msra.mxu0 0.0
    %1227 = vmatpush.msra.mxu0 0.0
    %1228 = vmatpush.msra.mxu0 0.0
    %1229 = vmatpush.msra.mxu0 0.0
    %1230 = vmatpush.msra.mxu0 0.0
    %1231 = vmatpush.msra.mxu0 0.0
    %1232 = vmatpush.msra.mxu0 0.0
    %1233 = vmatpush.msra.mxu0 %v1213
    %1234 = vmatmul.f32.gmra.mxu0 %v1216
    %v1235 = vpop.f32.mrf.mxu0
    %v1236 = vadd.f32 0.0, %v1235
    %1237 = vdwg.mxu0
    %1238 = vrot.lane.b32.xlu0 %v1000, 56
    %v1239 = vpop.permute.xlu0 %1238
    %v1242 = vsel %vm176, %v1211, 0
    %1244 = vmatpush.msra.mxu0 0.0
    %1245 = vmatpush.msra.mxu0 0.0
    %1246 = vmatpush.msra.mxu0 0.0
    %1247 = vmatpush.msra.mxu0 0.0
    %1248 = vmatpush.msra.mxu0 0.0
    %1249 = vmatpush.msra.mxu0 0.0
    %1250 = vmatpush.msra.mxu0 0.0
    %1251 = vmatpush.msra.mxu0 0.0
    %1252 = vmatpush.msra.mxu0 0.0
    %1253 = vmatpush.msra.mxu0 0.0
    %1254 = vmatpush.msra.mxu0 0.0
    %1255 = vmatpush.msra.mxu0 0.0
    %1256 = vmatpush.msra.mxu0 0.0
    %1257 = vmatpush.msra.mxu0 0.0
    %1258 = vmatpush.msra.mxu0 0.0
    %1259 = vmatpush.msra.mxu0 %v1239
    %1260 = vmatmul.f32.gmra.mxu0 %v1242
    %v1261 = vpop.f32.mrf.mxu0
    %v1262 = vadd.f32 0.0, %v1261
    %1263 = vdwg.mxu0
    %1264 = vrot.lane.b32.xlu0 %v997, 112
    %v1265 = vpop.permute.xlu0 %1264
    %1266 = vrot.lane.b32.xlu0 %v997, 80
    %v1267 = vpop.permute.xlu0 %1266
    %v1268 = vsel %vm176, %v1265, 0
    %v1270 = vsel %vm176, %v1267, 0
    %1272 = vmatpush.xpose.msra.mxu0 0.0
    %1273 = vmatpush.xpose.msra.mxu0 0.0
    %1274 = vmatpush.xpose.msra.mxu0 0.0
    %1275 = vmatpush.xpose.msra.mxu0 0.0
    %1276 = vmatpush.xpose.msra.mxu0 0.0
    %1277 = vmatpush.xpose.msra.mxu0 0.0
    %1278 = vmatpush.xpose.msra.mxu0 0.0
    %1279 = vmatpush.xpose.msra.mxu0 0.0
    %1280 = vmatpush.xpose.msra.mxu0 0.0
    %1281 = vmatpush.xpose.msra.mxu0 0.0
    %1282 = vmatpush.xpose.msra.mxu0 0.0
    %1283 = vmatpush.xpose.msra.mxu0 0.0
    %1284 = vmatpush.xpose.msra.mxu0 0.0
    %1285 = vmatpush.xpose.msra.mxu0 0.0
    %1286 = vmatpush.xpose.msra.mxu0 0.0
    %1287 = vmatpush.xpose.msra.mxu0 %v1270
    %1288 = vmatmul.f32.gmra.mxu0 %v1268
    %v1289 = vpop.f32.mrf.mxu0
    %v1290 = vadd.f32 0.0, %v1289
    %1291 = vdwg.mxu0
    %1292 = vrot.lane.b32.xlu0 %v1000, 112
    %v1293 = vpop.permute.xlu0 %1292
    %1294 = vrot.lane.b32.xlu0 %v1000, 80
    %v1295 = vpop.permute.xlu0 %1294
    %v1296 = vsel %vm176, %v1293, 0
    %v1298 = vsel %vm176, %v1295, 0
    %1300 = vmatpush.xpose.msra.mxu0 0.0
    %1301 = vmatpush.xpose.msra.mxu0 0.0
    %1302 = vmatpush.xpose.msra.mxu0 0.0
    %1303 = vmatpush.xpose.msra.mxu0 0.0
    %1304 = vmatpush.xpose.msra.mxu0 0.0
    %1305 = vmatpush.xpose.msra.mxu0 0.0
    %1306 = vmatpush.xpose.msra.mxu0 0.0
    %1307 = vmatpush.xpose.msra.mxu0 0.0
    %1308 = vmatpush.xpose.msra.mxu0 0.0
    %1309 = vmatpush.xpose.msra.mxu0 0.0
    %1310 = vmatpush.xpose.msra.mxu0 0.0
    %1311 = vmatpush.xpose.msra.mxu0 0.0
    %1312 = vmatpush.xpose.msra.mxu0 0.0
    %1313 = vmatpush.xpose.msra.mxu0 0.0
    %1314 = vmatpush.xpose.msra.mxu0 0.0
    %1315 = vmatpush.xpose.msra.mxu0 %v1298
    %1316 = vmatmul.f32.gmra.mxu0 %v1296
    %v1317 = vpop.f32.mrf.mxu0
    %v1318 = vadd.f32 0.0, %v1317
    %1319 = vdwg.mxu0
    %v1320 = vmul.f32 %v1290, 0.35355338
    %v1321 = vmul.f32 %v1318, 0.35355338
    %v1322 = vsel %vm176, %v1320, -inf
    %1323 = vmax.xlane.f32.xlu0 %v1322
    %v1324 = vpop.xlane.xlu0 %1323
    %v1325 = vsel %vm176, %v1321, -inf
    %1326 = vmax.xlane.f32.xlu0 %v1325
    %v1327 = vpop.xlane.xlu0 %1326
    %v1328 = vsub.f32 %v1320, %v1324
    %v1329 = vsub.f32 %v1321, %v1327
    %v1330 = vmul.f32 %v1328, 1.442695
    %v1331 = vpow.pop %v1330
    %v1332 = vmul.f32 %v1329, 1.442695
    %v1333 = vpow.pop %v1332
    %v1334 = vsel %vm176, %v1331, 0.0
    %1335 = vadd.xlane.f32.xlu0 %v1334
    %v1336 = vpop.xlane.xlu0 %1335
    %v1337 = vsel %vm176, %v1333, 0.0
    %1338 = vadd.xlane.f32.xlu0 %v1337
    %v1339 = vpop.xlane.xlu0 %1338
    %v1340 = vrcp.pop %v1336
    %v1341 = vrcp.pop %v1339
    %v1342 = vmul.f32 %v1331, %v1340
    %v1343 = vmul.f32 %v1333, %v1341
    %1344 = vrot.lane.b32.xlu0 %v997, 48
    %v1345 = vpop.permute.xlu0 %1344
    %v1348 = vsel %vm176, %v1342, 0
    %1350 = vmatpush.msra.mxu0 0.0
    %1351 = vmatpush.msra.mxu0 0.0
    %1352 = vmatpush.msra.mxu0 0.0
    %1353 = vmatpush.msra.mxu0 0.0
    %1354 = vmatpush.msra.mxu0 0.0
    %1355 = vmatpush.msra.mxu0 0.0
    %1356 = vmatpush.msra.mxu0 0.0
    %1357 = vmatpush.msra.mxu0 0.0
    %1358 = vmatpush.msra.mxu0 0.0
    %1359 = vmatpush.msra.mxu0 0.0
    %1360 = vmatpush.msra.mxu0 0.0
    %1361 = vmatpush.msra.mxu0 0.0
    %1362 = vmatpush.msra.mxu0 0.0
    %1363 = vmatpush.msra.mxu0 0.0
    %1364 = vmatpush.msra.mxu0 0.0
    %1365 = vmatpush.msra.mxu0 %v1345
    %1366 = vmatmul.f32.gmra.mxu0 %v1348
    %v1367 = vpop.f32.mrf.mxu0
    %v1368 = vadd.f32 0.0, %v1367
    %1369 = vdwg.mxu0
    %1370 = vrot.lane.b32.xlu0 %v1000, 48
    %v1371 = vpop.permute.xlu0 %1370
    %v1374 = vsel %vm176, %v1343, 0
    %1376 = vmatpush.msra.mxu0 0.0
    %1377 = vmatpush.msra.mxu0 0.0
    %1378 = vmatpush.msra.mxu0 0.0
    %1379 = vmatpush.msra.mxu0 0.0
    %1380 = vmatpush.msra.mxu0 0.0
    %1381 = vmatpush.msra.mxu0 0.0
    %1382 = vmatpush.msra.mxu0 0.0
    %1383 = vmatpush.msra.mxu0 0.0
    %1384 = vmatpush.msra.mxu0 0.0
    %1385 = vmatpush.msra.mxu0 0.0
    %1386 = vmatpush.msra.mxu0 0.0
    %1387 = vmatpush.msra.mxu0 0.0
    %1388 = vmatpush.msra.mxu0 0.0
    %1389 = vmatpush.msra.mxu0 0.0
    %1390 = vmatpush.msra.mxu0 0.0
    %1391 = vmatpush.msra.mxu0 %v1371
    %1392 = vmatmul.f32.gmra.mxu0 %v1374
    %v1393 = vpop.f32.mrf.mxu0
    %v1394 = vadd.f32 0.0, %v1393
    %1395 = vdwg.mxu0
    %1396 = vrot.lane.b32.xlu0 %v997, 104
    %v1397 = vpop.permute.xlu0 %1396
    %1398 = vrot.lane.b32.xlu0 %v997, 72
    %v1399 = vpop.permute.xlu0 %1398
    %v1400 = vsel %vm176, %v1397, 0
    %v1402 = vsel %vm176, %v1399, 0
    %1404 = vmatpush.xpose.msra.mxu0 0.0
    %1405 = vmatpush.xpose.msra.mxu0 0.0
    %1406 = vmatpush.xpose.msra.mxu0 0.0
    %1407 = vmatpush.xpose.msra.mxu0 0.0
    %1408 = vmatpush.xpose.msra.mxu0 0.0
    %1409 = vmatpush.xpose.msra.mxu0 0.0
    %1410 = vmatpush.xpose.msra.mxu0 0.0
    %1411 = vmatpush.xpose.msra.mxu0 0.0
    %1412 = vmatpush.xpose.msra.mxu0 0.0
    %1413 = vmatpush.xpose.msra.mxu0 0.0
    %1414 = vmatpush.xpose.msra.mxu0 0.0
    %1415 = vmatpush.xpose.msra.mxu0 0.0
    %1416 = vmatpush.xpose.msra.mxu0 0.0
    %1417 = vmatpush.xpose.msra.mxu0 0.0
    %1418 = vmatpush.xpose.msra.mxu0 0.0
    %1419 = vmatpush.xpose.msra.mxu0 %v1402
    %1420 = vmatmul.f32.gmra.mxu0 %v1400
    %v1421 = vpop.f32.mrf.mxu0
    %v1422 = vadd.f32 0.0, %v1421
    %1423 = vdwg.mxu0
    %1424 = vrot.lane.b32.xlu0 %v1000, 104
    %v1425 = vpop.permute.xlu0 %1424
    %1426 = vrot.lane.b32.xlu0 %v1000, 72
    %v1427 = vpop.permute.xlu0 %1426
    %v1428 = vsel %vm176, %v1425, 0
    %v1430 = vsel %vm176, %v1427, 0
    %1432 = vmatpush.xpose.msra.mxu0 0.0
    %1433 = vmatpush.xpose.msra.mxu0 0.0
    %1434 = vmatpush.xpose.msra.mxu0 0.0
    %1435 = vmatpush.xpose.msra.mxu0 0.0
    %1436 = vmatpush.xpose.msra.mxu0 0.0
    %1437 = vmatpush.xpose.msra.mxu0 0.0
    %1438 = vmatpush.xpose.msra.mxu0 0.0
    %1439 = vmatpush.xpose.msra.mxu0 0.0
    %1440 = vmatpush.xpose.msra.mxu0 0.0
    %1441 = vmatpush.xpose.msra.mxu0 0.0
    %1442 = vmatpush.xpose.msra.mxu0 0.0
    %1443 = vmatpush.xpose.msra.mxu0 0.0
    %1444 = vmatpush.xpose.msra.mxu0 0.0
    %1445 = vmatpush.xpose.msra.mxu0 0.0
    %1446 = vmatpush.xpose.msra.mxu0 0.0
    %1447 = vmatpush.xpose.msra.mxu0 %v1430
    %1448 = vmatmul.f32.gmra.mxu0 %v1428
    %v1449 = vpop.f32.mrf.mxu0
    %v1450 = vadd.f32 0.0, %v1449
    %1451 = vdwg.mxu0
    %v1452 = vmul.f32 %v1422, 0.35355338
    %v1453 = vmul.f32 %v1450, 0.35355338
    %v1454 = vsel %vm176, %v1452, -inf
    %1455 = vmax.xlane.f32.xlu0 %v1454
    %v1456 = vpop.xlane.xlu0 %1455
    %v1457 = vsel %vm176, %v1453, -inf
    %1458 = vmax.xlane.f32.xlu0 %v1457
    %v1459 = vpop.xlane.xlu0 %1458
    %v1460 = vsub.f32 %v1452, %v1456
    %v1461 = vsub.f32 %v1453, %v1459
    %v1462 = vmul.f32 %v1460, 1.442695
    %v1463 = vpow.pop %v1462
    %v1464 = vmul.f32 %v1461, 1.442695
    %v1465 = vpow.pop %v1464
    %v1466 = vsel %vm176, %v1463, 0.0
    %1467 = vadd.xlane.f32.xlu0 %v1466
    %v1468 = vpop.xlane.xlu0 %1467
    %v1469 = vsel %vm176, %v1465, 0.0
    %1470 = vadd.xlane.f32.xlu0 %v1469
    %v1471 = vpop.xlane.xlu0 %1470
    %v1472 = vrcp.pop %v1468
    %v1473 = vrcp.pop %v1471
    %v1474 = vmul.f32 %v1463, %v1472
    %v1475 = vmul.f32 %v1465, %v1473
    %1476 = vrot.lane.b32.xlu0 %v997, 40
    %v1477 = vpop.permute.xlu0 %1476
    %v1480 = vsel %vm176, %v1474, 0
    %1482 = vmatpush.msra.mxu0 0.0
    %1483 = vmatpush.msra.mxu0 0.0
    %1484 = vmatpush.msra.mxu0 0.0
    %1485 = vmatpush.msra.mxu0 0.0
    %1486 = vmatpush.msra.mxu0 0.0
    %1487 = vmatpush.msra.mxu0 0.0
    %1488 = vmatpush.msra.mxu0 0.0
    %1489 = vmatpush.msra.mxu0 0.0
    %1490 = vmatpush.msra.mxu0 0.0
    %1491 = vmatpush.msra.mxu0 0.0
    %1492 = vmatpush.msra.mxu0 0.0
    %1493 = vmatpush.msra.mxu0 0.0
    %1494 = vmatpush.msra.mxu0 0.0
    %1495 = vmatpush.msra.mxu0 0.0
    %1496 = vmatpush.msra.mxu0 0.0
    %1497 = vmatpush.msra.mxu0 %v1477
    %1498 = vmatmul.f32.gmra.mxu0 %v1480
    %v1499 = vpop.f32.mrf.mxu0
    %v1500 = vadd.f32 0.0, %v1499
    %1501 = vdwg.mxu0
    %1502 = vrot.lane.b32.xlu0 %v1000, 40
    %v1503 = vpop.permute.xlu0 %1502
    %v1506 = vsel %vm176, %v1475, 0
    %1508 = vmatpush.msra.mxu0 0.0
    %1509 = vmatpush.msra.mxu0 0.0
    %1510 = vmatpush.msra.mxu0 0.0
    %1511 = vmatpush.msra.mxu0 0.0
    %1512 = vmatpush.msra.mxu0 0.0
    %1513 = vmatpush.msra.mxu0 0.0
    %1514 = vmatpush.msra.mxu0 0.0
    %1515 = vmatpush.msra.mxu0 0.0
    %1516 = vmatpush.msra.mxu0 0.0
    %1517 = vmatpush.msra.mxu0 0.0
    %1518 = vmatpush.msra.mxu0 0.0
    %1519 = vmatpush.msra.mxu0 0.0
    %1520 = vmatpush.msra.mxu0 0.0
    %1521 = vmatpush.msra.mxu0 0.0
    %1522 = vmatpush.msra.mxu0 0.0
    %1523 = vmatpush.msra.mxu0 %v1503
    %1524 = vmatmul.f32.gmra.mxu0 %v1506
    %v1525 = vpop.f32.mrf.mxu0
    %v1526 = vadd.f32 0.0, %v1525
    %1527 = vdwg.mxu0
    %1530 = vrot.lane.b32.xlu0 %v1236, 8
    %v1531 = vpop.permute.xlu0 %1530
    %1532 = vrot.lane.b32.xlu0 %v1262, 8
    %v1533 = vpop.permute.xlu0 %1532
    %1538 = vrot.lane.b32.xlu0 %v1368, 16
    %v1539 = vpop.permute.xlu0 %1538
    %1540 = vrot.lane.b32.xlu0 %v1394, 16
    %v1541 = vpop.permute.xlu0 %1540
    %1546 = vrot.lane.b32.xlu0 %v1500, 24
    %v1547 = vpop.permute.xlu0 %1546
    %1548 = vrot.lane.b32.xlu0 %v1526, 24
    %v1549 = vpop.permute.xlu0 %1548
    %v1552 = vsel %vm176, %v1104, %v1531
    %v1553 = vsel %vm176, %v1130, %v1533
    %v1554 = vsel %vm726, %v1552, %v1539
    %v1555 = vsel %vm726, %v1553, %v1541
    %v1556 = vsel %vm729, %v1554, %v1547
    %v1557 = vsel %vm729, %v1555, %v1549
    %v1558 = vld [vmem:[#allocation7 + $0xc0] sm:$0xff]
    %v1559 = vld [vmem:[#allocation7 + $0xc8] sm:$0xff]
    %v1560 = vld [vmem:[#allocation7 + $0xd0] sm:$0xff]
    %v1561 = vld [vmem:[#allocation7 + $0xd8] sm:$0xff]
    %v1562 = vld [vmem:[#allocation9 + $0x9] sm:$0x1]
    %v1563 = vperm.slane %v1562, 0
    %v1565 = vsel %vm106, %v1556, 0
    %v1568 = vsel %vm106, %v1557, 0
    %1570 = vmatpush.msra.mxu0 0.0
    %1571 = vmatpush.msra.mxu0 0.0
    %1572 = vmatpush.msra.mxu0 0.0
    %1573 = vmatpush.msra.mxu0 0.0
    %1574 = vmatpush.msra.mxu0 0.0
    %1575 = vmatpush.msra.mxu0 0.0
    %1576 = vmatpush.msra.mxu0 0.0
    %1577 = vmatpush.msra.mxu0 0.0
    %1578 = vmatpush.msra.mxu0 0.0
    %1579 = vmatpush.msra.mxu0 0.0
    %1580 = vmatpush.msra.mxu0 0.0
    %1581 = vmatpush.msra.mxu0 0.0
    %1582 = vmatpush.msra.mxu0 %v1561
    %1583 = vmatpush.msra.mxu0 %v1560
    %1584 = vmatpush.msra.mxu0 %v1559
    %1585 = vmatpush.msra.mxu0 %v1558
    %1586 = vmatmul.f32.gmra.mxu0 %v1565
    %v1587 = vpop.f32.mrf.mxu0
    %v1588 = vadd.f32 %v1563, %v1587
    %1589 = vmatmul.f32.gmra.mxu0 %v1568
    %v1590 = vpop.f32.mrf.mxu0
    %v1591 = vadd.f32 %v1563, %v1590
    %1592 = vdwg.mxu0
    %v1593 = vadd.f32 %v965, %v1588
    %v1594 = vadd.f32 %v966, %v1591
    %v1595 = vsel %vm106, %v1593, 0.0
    %1596 = vadd.xlane.f32.xlu0 %v1595
    %v1597 = vpop.xlane.xlu0 %1596
    %v1598 = vsel %vm106, %v1594, 0.0
    %1599 = vadd.xlane.f32.xlu0 %v1598
    %v1600 = vpop.xlane.xlu0 %1599
    %v1601 = vmul.f32 %v1597, %v781
    %v1602 = vmul.f32 %v1600, %v781
    %v1603 = vmul.f32 %v1593, %v1593
    %v1604 = vmul.f32 %v1594, %v1594
    %v1605 = vsel %vm106, %v1603, 0.0
    %1606 = vadd.xlane.f32.xlu0 %v1605
    %v1607 = vpop.xlane.xlu0 %1606
    %v1608 = vsel %vm106, %v1604, 0.0
    %1609 = vadd.xlane.f32.xlu0 %v1608
    %v1610 = vpop.xlane.xlu0 %1609
    %v1611 = vmul.f32 %v1607, %v781
    %v1612 = vmul.f32 %v1610, %v781
    %v1613 = vmul.f32 %v1601, %v1601
    %v1614 = vmul.f32 %v1602, %v1602
    %v1615 = vsub.f32 %v1611, %v1613
    %v1616 = vsub.f32 %v1612, %v1614
    %v1617 = vsub.f32 %v1593, %v1601
    %v1618 = vsub.f32 %v1594, %v1602
    %v1619 = vadd.f32 %v1615, 1e-05
    %v1620 = vadd.f32 %v1616, 1e-05
    %v1621 = vrsqrt.pop %v1619
    %v1622 = vmul.f32 %v1621, %v1619
    %v1623 = vmul.f32 %v1622, %v1621
    %v1624 = vmul.f32 0.5, %v1623
    %v1625 = vsub.f32 1.5, %v1624
    %v1626 = vmul.f32 %v1621, %v1625
    %vm1627 = vweird.f32 %v1619
    %vm1628 = vweird.f32 %v1621
    %vm1629 = vmor %vm1627, %vm1628
    %v1630 = vsel %vm1629, %v1621, %v1626
    %v1631 = vrsqrt.pop %v1620
    %v1632 = vmul.f32 %v1631, %v1620
    %v1633 = vmul.f32 %v1632, %v1631
    %v1634 = vmul.f32 0.5, %v1633
    %v1635 = vsub.f32 1.5, %v1634
    %v1636 = vmul.f32 %v1631, %v1635
    %vm1637 = vweird.f32 %v1620
    %vm1638 = vweird.f32 %v1631
    %vm1639 = vmor %vm1637, %vm1638
    %v1640 = vsel %vm1639, %v1631, %v1636
    %v1641 = vmul.f32 %v1617, %v1630
    %v1642 = vmul.f32 %v1618, %v1640
    %v1643 = vld [vmem:[#allocation9 + $0xa] sm:$0x1]
    %v1644 = vperm.slane %v1643, 0
    %v1645 = vmul.f32 %v1641, %v1644
    %v1646 = vmul.f32 %v1642, %v1644
    %v1647 = vld [vmem:[#allocation9 + $0xb] sm:$0x1]
    %v1648 = vperm.slane %v1647, 0
    %v1649 = vadd.f32 %v1645, %v1648
    %v1650 = vadd.f32 %v1646, %v1648
    %v1651 = vld [vmem:[#allocation7 + $0xe0] sm:$0xff]
    %v1652 = vld [vmem:[#allocation7 + $0xe8] sm:$0xff]
    %v1653 = vld [vmem:[#allocation7 + $0xf0] sm:$0xff]
    %v1654 = vld [vmem:[#allocation7 + $0xf8] sm:$0xff]
    %v1655 = vld [vmem:[#allocation9 + $0xc] sm:$0x1]
    %v1656 = vperm.slane %v1655, 0
    %v1658 = vsel %vm106, %v1649, 0
    %v1661 = vsel %vm106, %v1650, 0
    %1663 = vmatpush.msra.mxu0 0.0
    %1664 = vmatpush.msra.mxu0 0.0
    %1665 = vmatpush.msra.mxu0 0.0
    %1666 = vmatpush.msra.mxu0 0.0
    %1667 = vmatpush.msra.mxu0 0.0
    %1668 = vmatpush.msra.mxu0 0.0
    %1669 = vmatpush.msra.mxu0 0.0
    %1670 = vmatpush.msra.mxu0 0.0
    %1671 = vmatpush.msra.mxu0 0.0
    %1672 = vmatpush.msra.mxu0 0.0
    %1673 = vmatpush.msra.mxu0 0.0
    %1674 = vmatpush.msra.mxu0 0.0
    %1675 = vmatpush.msra.mxu0 %v1654
    %1676 = vmatpush.msra.mxu0 %v1653
    %1677 = vmatpush.msra.mxu0 %v1652
    %1678 = vmatpush.msra.mxu0 %v1651
    %1679 = vmatmul.f32.gmra.mxu0 %v1658
    %v1680 = vpop.f32.mrf.mxu0
    %v1681 = vadd.f32 %v1656, %v1680
    %1682 = vmatmul.f32.gmra.mxu0 %v1661
    %v1683 = vpop.f32.mrf.mxu0
    %v1684 = vadd.f32 %v1656, %v1683
    %1685 = vdwg.mxu0
    %v1686 = vmax.f32 %v1681, 0.0
    %v1687 = vmax.f32 %v1684, 0.0
    %v1688 = vld [vmem:[#allocation7 + $0x100] sm:$0xff]
    %v1689 = vld [vmem:[#allocation7 + $0x108] sm:$0xff]
    %v1690 = vld [vmem:[#allocation7 + $0x110] sm:$0xff]
    %v1691 = vld [vmem:[#allocation7 + $0x118] sm:$0xff]
    %v1692 = vld [vmem:[#allocation7 + $0x120] sm:$0xff]
    %v1693 = vld [vmem:[#allocation7 + $0x128] sm:$0xff]
    %v1694 = vld [vmem:[#allocation7 + $0x130] sm:$0xff]
    %v1695 = vld [vmem:[#allocation7 + $0x138] sm:$0xff]
    %v1696 = vld [vmem:[#allocation9 + $0xd] sm:$0x1]
    %v1697 = vperm.slane %v1696, 0
    %v1699 = vsel %vm879, %v1686, 0
    %v1702 = vsel %vm879, %v1687, 0
    %1704 = vmatpush.msra.mxu0 0.0
    %1705 = vmatpush.msra.mxu0 0.0
    %1706 = vmatpush.msra.mxu0 0.0
    %1707 = vmatpush.msra.mxu0 0.0
    %1708 = vmatpush.msra.mxu0 0.0
    %1709 = vmatpush.msra.mxu0 0.0
    %1710 = vmatpush.msra.mxu0 0.0
    %1711 = vmatpush.msra.mxu0 0.0
    %1712 = vmatpush.msra.mxu0 %v1695
    %1713 = vmatpush.msra.mxu0 %v1694
    %1714 = vmatpush.msra.mxu0 %v1693
    %1715 = vmatpush.msra.mxu0 %v1692
    %1716 = vmatpush.msra.mxu0 %v1691
    %1717 = vmatpush.msra.mxu0 %v1690
    %1718 = vmatpush.msra.mxu0 %v1689
    %1719 = vmatpush.msra.mxu0 %v1688
    %1720 = vmatmul.f32.gmra.mxu0 %v1699
    %v1721 = vpop.f32.mrf.mxu0
    %v1722 = vadd.f32 %v1697, %v1721
    %1723 = vmatmul.f32.gmra.mxu0 %v1702
    %v1724 = vpop.f32.mrf.mxu0
    %v1725 = vadd.f32 %v1697, %v1724
    %1726 = vdwg.mxu0
    %v1727 = vadd.f32 %v1649, %v1722
    %v1728 = vadd.f32 %v1650, %v1725
    %v1729 = vsel %vm106, %v1727, 0.0
    %1730 = vadd.xlane.f32.xlu0 %v1729
    %v1731 = vpop.xlane.xlu0 %1730
    %v1732 = vsel %vm106, %v1728, 0.0
    %1733 = vadd.xlane.f32.xlu0 %v1732
    %v1734 = vpop.xlane.xlu0 %1733
    %v1735 = vmul.f32 %v1731, %v781
    %v1736 = vmul.f32 %v1734, %v781
    %v1737 = vmul.f32 %v1727, %v1727
    %v1738 = vmul.f32 %v1728, %v1728
    %v1739 = vsel %vm106, %v1737, 0.0
    %1740 = vadd.xlane.f32.xlu0 %v1739
    %v1741 = vpop.xlane.xlu0 %1740
    %v1742 = vsel %vm106, %v1738, 0.0
    %1743 = vadd.xlane.f32.xlu0 %v1742
    %v1744 = vpop.xlane.xlu0 %1743
    %v1745 = vmul.f32 %v1741, %v781
    %v1746 = vmul.f32 %v1744, %v781
    %v1747 = vmul.f32 %v1735, %v1735
    %v1748 = vmul.f32 %v1736, %v1736
    %v1749 = vsub.f32 %v1745, %v1747
    %v1750 = vsub.f32 %v1746, %v1748
    %v1751 = vsub.f32 %v1727, %v1735
    %v1752 = vsub.f32 %v1728, %v1736
    %v1753 = vadd.f32 %v1749, 1e-05
    %v1754 = vadd.f32 %v1750, 1e-05
    %v1755 = vrsqrt.pop %v1753
    %v1756 = vmul.f32 %v1755, %v1753
    %v1757 = vmul.f32 %v1756, %v1755
    %v1758 = vmul.f32 0.5, %v1757
    %v1759 = vsub.f32 1.5, %v1758
    %v1760 = vmul.f32 %v1755, %v1759
    %vm1761 = vweird.f32 %v1753
    %vm1762 = vweird.f32 %v1755
    %vm1763 = vmor %vm1761, %vm1762
    %v1764 = vsel %vm1763, %v1755, %v1760
    %v1765 = vrsqrt.pop %v1754
    %v1766 = vmul.f32 %v1765, %v1754
    %v1767 = vmul.f32 %v1766, %v1765
    %v1768 = vmul.f32 0.5, %v1767
    %v1769 = vsub.f32 1.5, %v1768
    %v1770 = vmul.f32 %v1765, %v1769
    %vm1771 = vweird.f32 %v1754
    %vm1772 = vweird.f32 %v1765
    %vm1773 = vmor %vm1771, %vm1772
    %v1774 = vsel %vm1773, %v1765, %v1770
    %v1775 = vmul.f32 %v1751, %v1764
    %v1776 = vmul.f32 %v1752, %v1774
    %v1777 = vld [vmem:[#allocation9 + $0xe] sm:$0x1]
    %v1778 = vperm.slane %v1777, 0
    %v1779 = vmul.f32 %v1775, %v1778
    %v1780 = vmul.f32 %v1776, %v1778
    %v1781 = vld [vmem:[#allocation9 + $0xf] sm:$0x1]
    %v1782 = vperm.slane %v1781, 0
    %v1783 = vadd.f32 %v1779, %v1782
    %v1784 = vadd.f32 %v1780, %v1782
    %v1785 = vld [vmem:[#allocation7 + $0x2a0] sm:$0xff]
    %v1786 = vld [vmem:[#allocation7 + $0x2a8] sm:$0xff]
    %v1787 = vld [vmem:[#allocation7 + $0x2b0] sm:$0xff]
    %v1788 = vld [vmem:[#allocation7 + $0x2b8] sm:$0xff]
    %v1789 = vld [vmem:[#allocation9 + $0x21] sm:$0x1]
    %v1790 = vperm.slane %v1789, 0
    %v1792 = vsel %vm106, %v1783, 0
    %v1795 = vsel %vm106, %v1784, 0
    %1797 = vmatpush.msra.mxu0 0.0
    %1798 = vmatpush.msra.mxu0 0.0
    %1799 = vmatpush.msra.mxu0 0.0
    %1800 = vmatpush.msra.mxu0 0.0
    %1801 = vmatpush.msra.mxu0 0.0
    %1802 = vmatpush.msra.mxu0 0.0
    %1803 = vmatpush.msra.mxu0 0.0
    %1804 = vmatpush.msra.mxu0 0.0
    %1805 = vmatpush.msra.mxu0 0.0
    %1806 = vmatpush.msra.mxu0 0.0
    %1807 = vmatpush.msra.mxu0 0.0
    %1808 = vmatpush.msra.mxu0 0.0
    %1809 = vmatpush.msra.mxu0 %v1788
    %1810 = vmatpush.msra.mxu0 %v1787
    %1811 = vmatpush.msra.mxu0 %v1786
    %1812 = vmatpush.msra.mxu0 %v1785
    %1813 = vmatmul.f32.gmra.mxu0 %v1792
    %v1814 = vpop.f32.mrf.mxu0
    %v1815 = vadd.f32 %v1790, %v1814
    %1816 = vmatmul.f32.gmra.mxu0 %v1795
    %v1817 = vpop.f32.mrf.mxu0
    %v1818 = vadd.f32 %v1790, %v1817
    %1819 = vdwg.mxu0
    %v1820 = vld [vmem:[#allocation7 + $0x2c0] sm:$0xf]
    %vm1821 = vcmask 31744
    %v1823 = vsel %vm1821, %v98, 0
    %vm1825 = vcmask 1043456
    %v1827 = vsel %vm1825, %v1820, 0
    %1829 = vmatpush.msra.mxu0 0.0
    %1830 = vmatpush.msra.mxu0 0.0
    %1831 = vmatpush.msra.mxu0 0.0
    %1832 = vmatpush.msra.mxu0 0.0
    %1833 = vmatpush.msra.mxu0 0.0
    %1834 = vmatpush.msra.mxu0 0.0
    %1835 = vmatpush.msra.mxu0 0.0
    %1836 = vmatpush.msra.mxu0 0.0
    %1837 = vmatpush.msra.mxu0 0.0
    %1838 = vmatpush.msra.mxu0 0.0
    %1839 = vmatpush.msra.mxu0 0.0
    %1840 = vmatpush.msra.mxu0 0.0
    %1841 = vmatpush.msra.mxu0 0.0
    %1842 = vmatpush.msra.mxu0 0.0
    %1843 = vmatpush.msra.mxu0 0.0
    %1844 = vmatpush.msra.mxu0 %v1827
    %1845 = vmatmul.f32.gmra.mxu0 %v1823
    %v1846 = vpop.f32.mrf.mxu0
    %v1847 = vadd.f32 0.0, %v1846
    %1848 = vdwg.mxu0
    %v1850 = vrot.slane %v1847, 1
    %v1851 = vperm.slane %v1847, 0
    %v1852 = vperm.slane %v1850, 0
    %v1855 = vadd.f32 %v1815, %v1851
    %v1856 = vadd.f32 %v1818, %v1852
    %1859 = vrot.lane.b32.xlu0 %v1855, 32
    %v1860 = vpop.permute.xlu0 %1859
    %1861 = vrot.lane.b32.xlu0 %v1856, 32
    %v1862 = vpop.permute.xlu0 %1861
    %vm1865 = vcmask 785664
    %1866 = vst.msk [vmem:[%s5] sm:$0xff] %vm1865, %v1860
    %1867 = vst.msk [vmem:[%s5 + $0x8] sm:$0xff] %vm1865, %v1862
    %v1868 = vld [vmem:[#allocation6] sm:$0xff]
    %v1869 = vld [vmem:[#allocation6 + $0x8] sm:$0xff]
    %v1870 = vmul.f32 %v1855, 0.5
    %v1871 = vmul.f32 %v1856, 0.5
    %v1872 = vmul.f32 %v1870, 1.442695
    %v1873 = vpow.pop %v1872
    %v1874 = vmul.f32 %v1871, 1.442695
    %v1875 = vpow.pop %v1874
    %1878 = vrot.lane.b32.xlu0 %v1873, 96
    %v1879 = vpop.permute.xlu0 %1878
    %1880 = vrot.lane.b32.xlu0 %v1875, 96
    %v1881 = vpop.permute.xlu0 %1880
    %v1884 = vmul.f32 %v1868, %v1879
    %v1885 = vmul.f32 %v1869, %v1881
    %v1886 = vadd.f32 %v1855, %v1884
    %v1887 = vadd.f32 %v1856, %v1885
    %v1888 = vld [vmem:[#allocation7 + $0x2c8] sm:$0xff]
    %v1889 = vld [vmem:[#allocation7 + $0x2d0] sm:$0xff]
    %v1890 = vld [vmem:[#allocation7 + $0x2d8] sm:$0xff]
    %v1891 = vld [vmem:[#allocation7 + $0x2e0] sm:$0xff]
    %v1892 = vld [vmem:[#allocation9 + $0x22] sm:$0x1]
    %v1893 = vperm.slane %v1892, 0
    %v1895 = vsel %vm106, %v1886, 0
    %v1898 = vsel %vm106, %v1887, 0
    %1900 = vmatpush.msra.mxu0 0.0
    %1901 = vmatpush.msra.mxu0 0.0
    %1902 = vmatpush.msra.mxu0 0.0
    %1903 = vmatpush.msra.mxu0 0.0
    %1904 = vmatpush.msra.mxu0 0.0
    %1905 = vmatpush.msra.mxu0 0.0
    %1906 = vmatpush.msra.mxu0 0.0
    %1907 = vmatpush.msra.mxu0 0.0
    %1908 = vmatpush.msra.mxu0 0.0
    %1909 = vmatpush.msra.mxu0 0.0
    %1910 = vmatpush.msra.mxu0 0.0
    %1911 = vmatpush.msra.mxu0 0.0
    %1912 = vmatpush.msra.mxu0 %v1891
    %1913 = vmatpush.msra.mxu0 %v1890
    %1914 = vmatpush.msra.mxu0 %v1889
    %1915 = vmatpush.msra.mxu0 %v1888
    %1916 = vmatmul.f32.gmra.mxu0 %v1895
    %v1917 = vpop.f32.mrf.mxu0
    %v1918 = vadd.f32 %v1893, %v1917
    %1919 = vmatmul.f32.gmra.mxu0 %v1898
    %v1920 = vpop.f32.mrf.mxu0
    %v1921 = vadd.f32 %v1893, %v1920
    %1922 = vdwg.mxu0
    %v1923 = vld [vmem:[#allocation7 + $0x2e8] sm:$0xf]
    %v1925 = vsel %vm1825, %v1923, 0
    %1927 = vmatpush.msra.mxu0 0.0
    %1928 = vmatpush.msra.mxu0 0.0
    %1929 = vmatpush.msra.mxu0 0.0
    %1930 = vmatpush.msra.mxu0 0.0
    %1931 = vmatpush.msra.mxu0 0.0
    %1932 = vmatpush.msra.mxu0 0.0
    %1933 = vmatpush.msra.mxu0 0.0
    %1934 = vmatpush.msra.mxu0 0.0
    %1935 = vmatpush.msra.mxu0 0.0
    %1936 = vmatpush.msra.mxu0 0.0
    %1937 = vmatpush.msra.mxu0 0.0
    %1938 = vmatpush.msra.mxu0 0.0
    %1939 = vmatpush.msra.mxu0 0.0
    %1940 = vmatpush.msra.mxu0 0.0
    %1941 = vmatpush.msra.mxu0 0.0
    %1942 = vmatpush.msra.mxu0 %v1925
    %1943 = vmatmul.f32.gmra.mxu0 %v1823
    %v1944 = vpop.f32.mrf.mxu0
    %v1945 = vadd.f32 0.0, %v1944
    %1946 = vdwg.mxu0
    %v1948 = vrot.slane %v1945, 1
    %v1949 = vperm.slane %v1945, 0
    %v1950 = vperm.slane %v1948, 0
    %v1953 = vadd.f32 %v1918, %v1949
    %v1954 = vadd.f32 %v1921, %v1950
    %v1955 = vadd.f32 %v1953, %v99
    %v1956 = vadd.f32 %v1954, %v99
    %v1957 = vld [vmem:[#allocation7 + $0x140] sm:$0xff]
    %v1958 = vld [vmem:[#allocation7 + $0x148] sm:$0xff]
    %v1959 = vld [vmem:[#allocation7 + $0x150] sm:$0xff]
    %v1960 = vld [vmem:[#allocation7 + $0x158] sm:$0xff]
    %v1961 = vld [vmem:[#allocation9 + $0x10] sm:$0x1]
    %v1962 = vperm.slane %v1961, 0
    %v1964 = vsel %vm106, %v1955, 0
    %v1967 = vsel %vm106, %v1956, 0
    %1969 = vmatpush.msra.mxu0 0.0
    %1970 = vmatpush.msra.mxu0 0.0
    %1971 = vmatpush.msra.mxu0 0.0
    %1972 = vmatpush.msra.mxu0 0.0
    %1973 = vmatpush.msra.mxu0 0.0
    %1974 = vmatpush.msra.mxu0 0.0
    %1975 = vmatpush.msra.mxu0 0.0
    %1976 = vmatpush.msra.mxu0 0.0
    %1977 = vmatpush.msra.mxu0 0.0
    %1978 = vmatpush.msra.mxu0 0.0
    %1979 = vmatpush.msra.mxu0 0.0
    %1980 = vmatpush.msra.mxu0 0.0
    %1981 = vmatpush.msra.mxu0 %v1960
    %1982 = vmatpush.msra.mxu0 %v1959
    %1983 = vmatpush.msra.mxu0 %v1958
    %1984 = vmatpush.msra.mxu0 %v1957
    %1985 = vmatmul.f32.gmra.mxu0 %v1964
    %v1986 = vpop.f32.mrf.mxu0
    %v1987 = vadd.f32 %v1962, %v1986
    %1988 = vmatmul.f32.gmra.mxu0 %v1967
    %v1989 = vpop.f32.mrf.mxu0
    %v1990 = vadd.f32 %v1962, %v1989
    %1991 = vdwg.mxu0
    %1993 = vrot.lane.b32.xlu0 %v1987, 96
    %v1994 = vpop.permute.xlu0 %1993
    %v1995 = vsel %vm176, %v1987, 0
    %v1997 = vsel %vm176, %v1994, 0
    %1999 = vmatpush.xpose.msra.mxu0 0.0
    %2000 = vmatpush.xpose.msra.mxu0 0.0
    %2001 = vmatpush.xpose.msra.mxu0 0.0
    %2002 = vmatpush.xpose.msra.mxu0 0.0
    %2003 = vmatpush.xpose.msra.mxu0 0.0
    %2004 = vmatpush.xpose.msra.mxu0 0.0
    %2005 = vmatpush.xpose.msra.mxu0 0.0
    %2006 = vmatpush.xpose.msra.mxu0 0.0
    %2007 = vmatpush.xpose.msra.mxu0 0.0
    %2008 = vmatpush.xpose.msra.mxu0 0.0
    %2009 = vmatpush.xpose.msra.mxu0 0.0
    %2010 = vmatpush.xpose.msra.mxu0 0.0
    %2011 = vmatpush.xpose.msra.mxu0 0.0
    %2012 = vmatpush.xpose.msra.mxu0 0.0
    %2013 = vmatpush.xpose.msra.mxu0 0.0
    %2014 = vmatpush.xpose.msra.mxu0 %v1997
    %2015 = vmatmul.f32.gmra.mxu0 %v1995
    %v2016 = vpop.f32.mrf.mxu0
    %v2017 = vadd.f32 0.0, %v2016
    %2018 = vdwg.mxu0
    %2020 = vrot.lane.b32.xlu0 %v1990, 96
    %v2021 = vpop.permute.xlu0 %2020
    %v2022 = vsel %vm176, %v1990, 0
    %v2024 = vsel %vm176, %v2021, 0
    %2026 = vmatpush.xpose.msra.mxu0 0.0
    %2027 = vmatpush.xpose.msra.mxu0 0.0
    %2028 = vmatpush.xpose.msra.mxu0 0.0
    %2029 = vmatpush.xpose.msra.mxu0 0.0
    %2030 = vmatpush.xpose.msra.mxu0 0.0
    %2031 = vmatpush.xpose.msra.mxu0 0.0
    %2032 = vmatpush.xpose.msra.mxu0 0.0
    %2033 = vmatpush.xpose.msra.mxu0 0.0
    %2034 = vmatpush.xpose.msra.mxu0 0.0
    %2035 = vmatpush.xpose.msra.mxu0 0.0
    %2036 = vmatpush.xpose.msra.mxu0 0.0
    %2037 = vmatpush.xpose.msra.mxu0 0.0
    %2038 = vmatpush.xpose.msra.mxu0 0.0
    %2039 = vmatpush.xpose.msra.mxu0 0.0
    %2040 = vmatpush.xpose.msra.mxu0 0.0
    %2041 = vmatpush.xpose.msra.mxu0 %v2024
    %2042 = vmatmul.f32.gmra.mxu0 %v2022
    %v2043 = vpop.f32.mrf.mxu0
    %v2044 = vadd.f32 0.0, %v2043
    %2045 = vdwg.mxu0
    %v2046 = vmul.f32 %v2017, 0.35355338
    %v2047 = vmul.f32 %v2044, 0.35355338
    %v2048 = vsel %vm176, %v2046, -inf
    %2049 = vmax.xlane.f32.xlu0 %v2048
    %v2050 = vpop.xlane.xlu0 %2049
    %v2051 = vsel %vm176, %v2047, -inf
    %2052 = vmax.xlane.f32.xlu0 %v2051
    %v2053 = vpop.xlane.xlu0 %2052
    %v2054 = vsub.f32 %v2046, %v2050
    %v2055 = vsub.f32 %v2047, %v2053
    %v2056 = vmul.f32 %v2054, 1.442695
    %v2057 = vpow.pop %v2056
    %v2058 = vmul.f32 %v2055, 1.442695
    %v2059 = vpow.pop %v2058
    %v2060 = vsel %vm176, %v2057, 0.0
    %2061 = vadd.xlane.f32.xlu0 %v2060
    %v2062 = vpop.xlane.xlu0 %2061
    %v2063 = vsel %vm176, %v2059, 0.0
    %2064 = vadd.xlane.f32.xlu0 %v2063
    %v2065 = vpop.xlane.xlu0 %2064
    %v2066 = vrcp.pop %v2062
    %v2067 = vrcp.pop %v2065
    %v2068 = vmul.f32 %v2057, %v2066
    %v2069 = vmul.f32 %v2059, %v2067
    %2070 = vrot.lane.b32.xlu0 %v1987, 64
    %v2071 = vpop.permute.xlu0 %2070
    %v2074 = vsel %vm176, %v2068, 0
    %2076 = vmatpush.msra.mxu0 0.0
    %2077 = vmatpush.msra.mxu0 0.0
    %2078 = vmatpush.msra.mxu0 0.0
    %2079 = vmatpush.msra.mxu0 0.0
    %2080 = vmatpush.msra.mxu0 0.0
    %2081 = vmatpush.msra.mxu0 0.0
    %2082 = vmatpush.msra.mxu0 0.0
    %2083 = vmatpush.msra.mxu0 0.0
    %2084 = vmatpush.msra.mxu0 0.0
    %2085 = vmatpush.msra.mxu0 0.0
    %2086 = vmatpush.msra.mxu0 0.0
    %2087 = vmatpush.msra.mxu0 0.0
    %2088 = vmatpush.msra.mxu0 0.0
    %2089 = vmatpush.msra.mxu0 0.0
    %2090 = vmatpush.msra.mxu0 0.0
    %2091 = vmatpush.msra.mxu0 %v2071
    %2092 = vmatmul.f32.gmra.mxu0 %v2074
    %v2093 = vpop.f32.mrf.mxu0
    %v2094 = vadd.f32 0.0, %v2093
    %2095 = vdwg.mxu0
    %2096 = vrot.lane.b32.xlu0 %v1990, 64
    %v2097 = vpop.permute.xlu0 %2096
    %v2100 = vsel %vm176, %v2069, 0
    %2102 = vmatpush.msra.mxu0 0.0
    %2103 = vmatpush.msra.mxu0 0.0
    %2104 = vmatpush.msra.mxu0 0.0
    %2105 = vmatpush.msra.mxu0 0.0
    %2106 = vmatpush.msra.mxu0 0.0
    %2107 = vmatpush.msra.mxu0 0.0
    %2108 = vmatpush.msra.mxu0 0.0
    %2109 = vmatpush.msra.mxu0 0.0
    %2110 = vmatpush.msra.mxu0 0.0
    %2111 = vmatpush.msra.mxu0 0.0
    %2112 = vmatpush.msra.mxu0 0.0
    %2113 = vmatpush.msra.mxu0 0.0
    %2114 = vmatpush.msra.mxu0 0.0
    %2115 = vmatpush.msra.mxu0 0.0
    %2116 = vmatpush.msra.mxu0 0.0
    %2117 = vmatpush.msra.mxu0 %v2097
    %2118 = vmatmul.f32.gmra.mxu0 %v2100
    %v2119 = vpop.f32.mrf.mxu0
    %v2120 = vadd.f32 0.0, %v2119
    %2121 = vdwg.mxu0
    %2122 = vrot.lane.b32.xlu0 %v1987, 120
    %v2123 = vpop.permute.xlu0 %2122
    %2124 = vrot.lane.b32.xlu0 %v1987, 88
    %v2125 = vpop.permute.xlu0 %2124
    %v2126 = vsel %vm176, %v2123, 0
    %v2128 = vsel %vm176, %v2125, 0
    %2130 = vmatpush.xpose.msra.mxu0 0.0
    %2131 = vmatpush.xpose.msra.mxu0 0.0
    %2132 = vmatpush.xpose.msra.mxu0 0.0
    %2133 = vmatpush.xpose.msra.mxu0 0.0
    %2134 = vmatpush.xpose.msra.mxu0 0.0
    %2135 = vmatpush.xpose.msra.mxu0 0.0
    %2136 = vmatpush.xpose.msra.mxu0 0.0
    %2137 = vmatpush.xpose.msra.mxu0 0.0
    %2138 = vmatpush.xpose.msra.mxu0 0.0
    %2139 = vmatpush.xpose.msra.mxu0 0.0
    %2140 = vmatpush.xpose.msra.mxu0 0.0
    %2141 = vmatpush.xpose.msra.mxu0 0.0
    %2142 = vmatpush.xpose.msra.mxu0 0.0
    %2143 = vmatpush.xpose.msra.mxu0 0.0
    %2144 = vmatpush.xpose.msra.mxu0 0.0
    %2145 = vmatpush.xpose.msra.mxu0 %v2128
    %2146 = vmatmul.f32.gmra.mxu0 %v2126
    %v2147 = vpop.f32.mrf.mxu0
    %v2148 = vadd.f32 0.0, %v2147
    %2149 = vdwg.mxu0
    %2150 = vrot.lane.b32.xlu0 %v1990, 120
    %v2151 = vpop.permute.xlu0 %2150
    %2152 = vrot.lane.b32.xlu0 %v1990, 88
    %v2153 = vpop.permute.xlu0 %2152
    %v2154 = vsel %vm176, %v2151, 0
    %v2156 = vsel %vm176, %v2153, 0
    %2158 = vmatpush.xpose.msra.mxu0 0.0
    %2159 = vmatpush.xpose.msra.mxu0 0.0
    %2160 = vmatpush.xpose.msra.mxu0 0.0
    %2161 = vmatpush.xpose.msra.mxu0 0.0
    %2162 = vmatpush.xpose.msra.mxu0 0.0
    %2163 = vmatpush.xpose.msra.mxu0 0.0
    %2164 = vmatpush.xpose.msra.mxu0 0.0
    %2165 = vmatpush.xpose.msra.mxu0 0.0
    %2166 = vmatpush.xpose.msra.mxu0 0.0
    %2167 = vmatpush.xpose.msra.mxu0 0.0
    %2168 = vmatpush.xpose.msra.mxu0 0.0
    %2169 = vmatpush.xpose.msra.mxu0 0.0
    %2170 = vmatpush.xpose.msra.mxu0 0.0
    %2171 = vmatpush.xpose.msra.mxu0 0.0
    %2172 = vmatpush.xpose.msra.mxu0 0.0
    %2173 = vmatpush.xpose.msra.mxu0 %v2156
    %2174 = vmatmul.f32.gmra.mxu0 %v2154
    %v2175 = vpop.f32.mrf.mxu0
    %v2176 = vadd.f32 0.0, %v2175
    %2177 = vdwg.mxu0
    %v2178 = vmul.f32 %v2148, 0.35355338
    %v2179 = vmul.f32 %v2176, 0.35355338
    %v2180 = vsel %vm176, %v2178, -inf
    %2181 = vmax.xlane.f32.xlu0 %v2180
    %v2182 = vpop.xlane.xlu0 %2181
    %v2183 = vsel %vm176, %v2179, -inf
    %2184 = vmax.xlane.f32.xlu0 %v2183
    %v2185 = vpop.xlane.xlu0 %2184
    %v2186 = vsub.f32 %v2178, %v2182
    %v2187 = vsub.f32 %v2179, %v2185
    %v2188 = vmul.f32 %v2186, 1.442695
    %v2189 = vpow.pop %v2188
    %v2190 = vmul.f32 %v2187, 1.442695
    %v2191 = vpow.pop %v2190
    %v2192 = vsel %vm176, %v2189, 0.0
    %2193 = vadd.xlane.f32.xlu0 %v2192
    %v2194 = vpop.xlane.xlu0 %2193
    %v2195 = vsel %vm176, %v2191, 0.0
    %2196 = vadd.xlane.f32.xlu0 %v2195
    %v2197 = vpop.xlane.xlu0 %2196
    %v2198 = vrcp.pop %v2194
    %v2199 = vrcp.pop %v2197
    %v2200 = vmul.f32 %v2189, %v2198
    %v2201 = vmul.f32 %v2191, %v2199
    %2202 = vrot.lane.b32.xlu0 %v1987, 56
    %v2203 = vpop.permute.xlu0 %2202
    %v2206 = vsel %vm176, %v2200, 0
    %2208 = vmatpush.msra.mxu0 0.0
    %2209 = vmatpush.msra.mxu0 0.0
    %2210 = vmatpush.msra.mxu0 0.0
    %2211 = vmatpush.msra.mxu0 0.0
    %2212 = vmatpush.msra.mxu0 0.0
    %2213 = vmatpush.msra.mxu0 0.0
    %2214 = vmatpush.msra.mxu0 0.0
    %2215 = vmatpush.msra.mxu0 0.0
    %2216 = vmatpush.msra.mxu0 0.0
    %2217 = vmatpush.msra.mxu0 0.0
    %2218 = vmatpush.msra.mxu0 0.0
    %2219 = vmatpush.msra.mxu0 0.0
    %2220 = vmatpush.msra.mxu0 0.0
    %2221 = vmatpush.msra.mxu0 0.0
    %2222 = vmatpush.msra.mxu0 0.0
    %2223 = vmatpush.msra.mxu0 %v2203
    %2224 = vmatmul.f32.gmra.mxu0 %v2206
    %v2225 = vpop.f32.mrf.mxu0
    %v2226 = vadd.f32 0.0, %v2225
    %2227 = vdwg.mxu0
    %2228 = vrot.lane.b32.xlu0 %v1990, 56
    %v2229 = vpop.permute.xlu0 %2228
    %v2232 = vsel %vm176, %v2201, 0
    %2234 = vmatpush.msra.mxu0 0.0
    %2235 = vmatpush.msra.mxu0 0.0
    %2236 = vmatpush.msra.mxu0 0.0
    %2237 = vmatpush.msra.mxu0 0.0
    %2238 = vmatpush.msra.mxu0 0.0
    %2239 = vmatpush.msra.mxu0 0.0
    %2240 = vmatpush.msra.mxu0 0.0
    %2241 = vmatpush.msra.mxu0 0.0
    %2242 = vmatpush.msra.mxu0 0.0
    %2243 = vmatpush.msra.mxu0 0.0
    %2244 = vmatpush.msra.mxu0 0.0
    %2245 = vmatpush.msra.mxu0 0.0
    %2246 = vmatpush.msra.mxu0 0.0
    %2247 = vmatpush.msra.mxu0 0.0
    %2248 = vmatpush.msra.mxu0 0.0
    %2249 = vmatpush.msra.mxu0 %v2229
    %2250 = vmatmul.f32.gmra.mxu0 %v2232
    %v2251 = vpop.f32.mrf.mxu0
    %v2252 = vadd.f32 0.0, %v2251
    %2253 = vdwg.mxu0
    %2254 = vrot.lane.b32.xlu0 %v1987, 112
    %v2255 = vpop.permute.xlu0 %2254
    %2256 = vrot.lane.b32.xlu0 %v1987, 80
    %v2257 = vpop.permute.xlu0 %2256
    %v2258 = vsel %vm176, %v2255, 0
    %v2260 = vsel %vm176, %v2257, 0
    %2262 = vmatpush.xpose.msra.mxu0 0.0
    %2263 = vmatpush.xpose.msra.mxu0 0.0
    %2264 = vmatpush.xpose.msra.mxu0 0.0
    %2265 = vmatpush.xpose.msra.mxu0 0.0
    %2266 = vmatpush.xpose.msra.mxu0 0.0
    %2267 = vmatpush.xpose.msra.mxu0 0.0
    %2268 = vmatpush.xpose.msra.mxu0 0.0
    %2269 = vmatpush.xpose.msra.mxu0 0.0
    %2270 = vmatpush.xpose.msra.mxu0 0.0
    %2271 = vmatpush.xpose.msra.mxu0 0.0
    %2272 = vmatpush.xpose.msra.mxu0 0.0
    %2273 = vmatpush.xpose.msra.mxu0 0.0
    %2274 = vmatpush.xpose.msra.mxu0 0.0
    %2275 = vmatpush.xpose.msra.mxu0 0.0
    %2276 = vmatpush.xpose.msra.mxu0 0.0
    %2277 = vmatpush.xpose.msra.mxu0 %v2260
    %2278 = vmatmul.f32.gmra.mxu0 %v2258
    %v2279 = vpop.f32.mrf.mxu0
    %v2280 = vadd.f32 0.0, %v2279
    %2281 = vdwg.mxu0
    %2282 = vrot.lane.b32.xlu0 %v1990, 112
    %v2283 = vpop.permute.xlu0 %2282
    %2284 = vrot.lane.b32.xlu0 %v1990, 80
    %v2285 = vpop.permute.xlu0 %2284
    %v2286 = vsel %vm176, %v2283, 0
    %v2288 = vsel %vm176, %v2285, 0
    %2290 = vmatpush.xpose.msra.mxu0 0.0
    %2291 = vmatpush.xpose.msra.mxu0 0.0
    %2292 = vmatpush.xpose.msra.mxu0 0.0
    %2293 = vmatpush.xpose.msra.mxu0 0.0
    %2294 = vmatpush.xpose.msra.mxu0 0.0
    %2295 = vmatpush.xpose.msra.mxu0 0.0
    %2296 = vmatpush.xpose.msra.mxu0 0.0
    %2297 = vmatpush.xpose.msra.mxu0 0.0
    %2298 = vmatpush.xpose.msra.mxu0 0.0
    %2299 = vmatpush.xpose.msra.mxu0 0.0
    %2300 = vmatpush.xpose.msra.mxu0 0.0
    %2301 = vmatpush.xpose.msra.mxu0 0.0
    %2302 = vmatpush.xpose.msra.mxu0 0.0
    %2303 = vmatpush.xpose.msra.mxu0 0.0
    %2304 = vmatpush.xpose.msra.mxu0 0.0
    %2305 = vmatpush.xpose.msra.mxu0 %v2288
    %2306 = vmatmul.f32.gmra.mxu0 %v2286
    %v2307 = vpop.f32.mrf.mxu0
    %v2308 = vadd.f32 0.0, %v2307
    %2309 = vdwg.mxu0
    %v2310 = vmul.f32 %v2280, 0.35355338
    %v2311 = vmul.f32 %v2308, 0.35355338
    %v2312 = vsel %vm176, %v2310, -inf
    %2313 = vmax.xlane.f32.xlu0 %v2312
    %v2314 = vpop.xlane.xlu0 %2313
    %v2315 = vsel %vm176, %v2311, -inf
    %2316 = vmax.xlane.f32.xlu0 %v2315
    %v2317 = vpop.xlane.xlu0 %2316
    %v2318 = vsub.f32 %v2310, %v2314
    %v2319 = vsub.f32 %v2311, %v2317
    %v2320 = vmul.f32 %v2318, 1.442695
    %v2321 = vpow.pop %v2320
    %v2322 = vmul.f32 %v2319, 1.442695
    %v2323 = vpow.pop %v2322
    %v2324 = vsel %vm176, %v2321, 0.0
    %2325 = vadd.xlane.f32.xlu0 %v2324
    %v2326 = vpop.xlane.xlu0 %2325
    %v2327 = vsel %vm176, %v2323, 0.0
    %2328 = vadd.xlane.f32.xlu0 %v2327
    %v2329 = vpop.xlane.xlu0 %2328
    %v2330 = vrcp.pop %v2326
    %v2331 = vrcp.pop %v2329
    %v2332 = vmul.f32 %v2321, %v2330
    %v2333 = vmul.f32 %v2323, %v2331
    %2334 = vrot.lane.b32.xlu0 %v1987, 48
    %v2335 = vpop.permute.xlu0 %2334
    %v2338 = vsel %vm176, %v2332, 0
    %2340 = vmatpush.msra.mxu0 0.0
    %2341 = vmatpush.msra.mxu0 0.0
    %2342 = vmatpush.msra.mxu0 0.0
    %2343 = vmatpush.msra.mxu0 0.0
    %2344 = vmatpush.msra.mxu0 0.0
    %2345 = vmatpush.msra.mxu0 0.0
    %2346 = vmatpush.msra.mxu0 0.0
    %2347 = vmatpush.msra.mxu0 0.0
    %2348 = vmatpush.msra.mxu0 0.0
    %2349 = vmatpush.msra.mxu0 0.0
    %2350 = vmatpush.msra.mxu0 0.0
    %2351 = vmatpush.msra.mxu0 0.0
    %2352 = vmatpush.msra.mxu0 0.0
    %2353 = vmatpush.msra.mxu0 0.0
    %2354 = vmatpush.msra.mxu0 0.0
    %2355 = vmatpush.msra.mxu0 %v2335
    %2356 = vmatmul.f32.gmra.mxu0 %v2338
    %v2357 = vpop.f32.mrf.mxu0
    %v2358 = vadd.f32 0.0, %v2357
    %2359 = vdwg.mxu0
    %2360 = vrot.lane.b32.xlu0 %v1990, 48
    %v2361 = vpop.permute.xlu0 %2360
    %v2364 = vsel %vm176, %v2333, 0
    %2366 = vmatpush.msra.mxu0 0.0
    %2367 = vmatpush.msra.mxu0 0.0
    %2368 = vmatpush.msra.mxu0 0.0
    %2369 = vmatpush.msra.mxu0 0.0
    %2370 = vmatpush.msra.mxu0 0.0
    %2371 = vmatpush.msra.mxu0 0.0
    %2372 = vmatpush.msra.mxu0 0.0
    %2373 = vmatpush.msra.mxu0 0.0
    %2374 = vmatpush.msra.mxu0 0.0
    %2375 = vmatpush.msra.mxu0 0.0
    %2376 = vmatpush.msra.mxu0 0.0
    %2377 = vmatpush.msra.mxu0 0.0
    %2378 = vmatpush.msra.mxu0 0.0
    %2379 = vmatpush.msra.mxu0 0.0
    %2380 = vmatpush.msra.mxu0 0.0
    %2381 = vmatpush.msra.mxu0 %v2361
    %2382 = vmatmul.f32.gmra.mxu0 %v2364
    %v2383 = vpop.f32.mrf.mxu0
    %v2384 = vadd.f32 0.0, %v2383
    %2385 = vdwg.mxu0
    %2386 = vrot.lane.b32.xlu0 %v1987, 104
    %v2387 = vpop.permute.xlu0 %2386
    %2388 = vrot.lane.b32.xlu0 %v1987, 72
    %v2389 = vpop.permute.xlu0 %2388
    %v2390 = vsel %vm176, %v2387, 0
    %v2392 = vsel %vm176, %v2389, 0
    %2394 = vmatpush.xpose.msra.mxu0 0.0
    %2395 = vmatpush.xpose.msra.mxu0 0.0
    %2396 = vmatpush.xpose.msra.mxu0 0.0
    %2397 = vmatpush.xpose.msra.mxu0 0.0
    %2398 = vmatpush.xpose.msra.mxu0 0.0
    %2399 = vmatpush.xpose.msra.mxu0 0.0
    %2400 = vmatpush.xpose.msra.mxu0 0.0
    %2401 = vmatpush.xpose.msra.mxu0 0.0
    %2402 = vmatpush.xpose.msra.mxu0 0.0
    %2403 = vmatpush.xpose.msra.mxu0 0.0
    %2404 = vmatpush.xpose.msra.mxu0 0.0
    %2405 = vmatpush.xpose.msra.mxu0 0.0
    %2406 = vmatpush.xpose.msra.mxu0 0.0
    %2407 = vmatpush.xpose.msra.mxu0 0.0
    %2408 = vmatpush.xpose.msra.mxu0 0.0
    %2409 = vmatpush.xpose.msra.mxu0 %v2392
    %2410 = vmatmul.f32.gmra.mxu0 %v2390
    %v2411 = vpop.f32.mrf.mxu0
    %v2412 = vadd.f32 0.0, %v2411
    %2413 = vdwg.mxu0
    %2414 = vrot.lane.b32.xlu0 %v1990, 104
    %v2415 = vpop.permute.xlu0 %2414
    %2416 = vrot.lane.b32.xlu0 %v1990, 72
    %v2417 = vpop.permute.xlu0 %2416
    %v2418 = vsel %vm176, %v2415, 0
    %v2420 = vsel %vm176, %v2417, 0
    %2422 = vmatpush.xpose.msra.mxu0 0.0
    %2423 = vmatpush.xpose.msra.mxu0 0.0
    %2424 = vmatpush.xpose.msra.mxu0 0.0
    %2425 = vmatpush.xpose.msra.mxu0 0.0
    %2426 = vmatpush.xpose.msra.mxu0 0.0
    %2427 = vmatpush.xpose.msra.mxu0 0.0
    %2428 = vmatpush.xpose.msra.mxu0 0.0
    %2429 = vmatpush.xpose.msra.mxu0 0.0
    %2430 = vmatpush.xpose.msra.mxu0 0.0
    %2431 = vmatpush.xpose.msra.mxu0 0.0
    %2432 = vmatpush.xpose.msra.mxu0 0.0
    %2433 = vmatpush.xpose.msra.mxu0 0.0
    %2434 = vmatpush.xpose.msra.mxu0 0.0
    %2435 = vmatpush.xpose.msra.mxu0 0.0
    %2436 = vmatpush.xpose.msra.mxu0 0.0
    %2437 = vmatpush.xpose.msra.mxu0 %v2420
    %2438 = vmatmul.f32.gmra.mxu0 %v2418
    %v2439 = vpop.f32.mrf.mxu0
    %v2440 = vadd.f32 0.0, %v2439
    %2441 = vdwg.mxu0
    %v2442 = vmul.f32 %v2412, 0.35355338
    %v2443 = vmul.f32 %v2440, 0.35355338
    %v2444 = vsel %vm176, %v2442, -inf
    %2445 = vmax.xlane.f32.xlu0 %v2444
    %v2446 = vpop.xlane.xlu0 %2445
    %v2447 = vsel %vm176, %v2443, -inf
    %2448 = vmax.xlane.f32.xlu0 %v2447
    %v2449 = vpop.xlane.xlu0 %2448
    %v2450 = vsub.f32 %v2442, %v2446
    %v2451 = vsub.f32 %v2443, %v2449
    %v2452 = vmul.f32 %v2450, 1.442695
    %v2453 = vpow.pop %v2452
    %v2454 = vmul.f32 %v2451, 1.442695
    %v2455 = vpow.pop %v2454
    %v2456 = vsel %vm176, %v2453, 0.0
    %2457 = vadd.xlane.f32.xlu0 %v2456
    %v2458 = vpop.xlane.xlu0 %2457
    %v2459 = vsel %vm176, %v2455, 0.0
    %2460 = vadd.xlane.f32.xlu0 %v2459
    %v2461 = vpop.xlane.xlu0 %2460
    %v2462 = vrcp.pop %v2458
    %v2463 = vrcp.pop %v2461
    %v2464 = vmul.f32 %v2453, %v2462
    %v2465 = vmul.f32 %v2455, %v2463
    %2466 = vrot.lane.b32.xlu0 %v1987, 40
    %v2467 = vpop.permute.xlu0 %2466
    %v2470 = vsel %vm176, %v2464, 0
    %2472 = vmatpush.msra.mxu0 0.0
    %2473 = vmatpush.msra.mxu0 0.0
    %2474 = vmatpush.msra.mxu0 0.0
    %2475 = vmatpush.msra.mxu0 0.0
    %2476 = vmatpush.msra.mxu0 0.0
    %2477 = vmatpush.msra.mxu0 0.0
    %2478 = vmatpush.msra.mxu0 0.0
    %2479 = vmatpush.msra.mxu0 0.0
    %2480 = vmatpush.msra.mxu0 0.0
    %2481 = vmatpush.msra.mxu0 0.0
    %2482 = vmatpush.msra.mxu0 0.0
    %2483 = vmatpush.msra.mxu0 0.0
    %2484 = vmatpush.msra.mxu0 0.0
    %2485 = vmatpush.msra.mxu0 0.0
    %2486 = vmatpush.msra.mxu0 0.0
    %2487 = vmatpush.msra.mxu0 %v2467
    %2488 = vmatmul.f32.gmra.mxu0 %v2470
    %v2489 = vpop.f32.mrf.mxu0
    %v2490 = vadd.f32 0.0, %v2489
    %2491 = vdwg.mxu0
    %2492 = vrot.lane.b32.xlu0 %v1990, 40
    %v2493 = vpop.permute.xlu0 %2492
    %v2496 = vsel %vm176, %v2465, 0
    %2498 = vmatpush.msra.mxu0 0.0
    %2499 = vmatpush.msra.mxu0 0.0
    %2500 = vmatpush.msra.mxu0 0.0
    %2501 = vmatpush.msra.mxu0 0.0
    %2502 = vmatpush.msra.mxu0 0.0
    %2503 = vmatpush.msra.mxu0 0.0
    %2504 = vmatpush.msra.mxu0 0.0
    %2505 = vmatpush.msra.mxu0 0.0
    %2506 = vmatpush.msra.mxu0 0.0
    %2507 = vmatpush.msra.mxu0 0.0
    %2508 = vmatpush.msra.mxu0 0.0
    %2509 = vmatpush.msra.mxu0 0.0
    %2510 = vmatpush.msra.mxu0 0.0
    %2511 = vmatpush.msra.mxu0 0.0
    %2512 = vmatpush.msra.mxu0 0.0
    %2513 = vmatpush.msra.mxu0 %v2493
    %2514 = vmatmul.f32.gmra.mxu0 %v2496
    %v2515 = vpop.f32.mrf.mxu0
    %v2516 = vadd.f32 0.0, %v2515
    %2517 = vdwg.mxu0
    %2520 = vrot.lane.b32.xlu0 %v2226, 8
    %v2521 = vpop.permute.xlu0 %2520
    %2522 = vrot.lane.b32.xlu0 %v2252, 8
    %v2523 = vpop.permute.xlu0 %2522
    %2528 = vrot.lane.b32.xlu0 %v2358, 16
    %v2529 = vpop.permute.xlu0 %2528
    %2530 = vrot.lane.b32.xlu0 %v2384, 16
    %v2531 = vpop.permute.xlu0 %2530
    %2536 = vrot.lane.b32.xlu0 %v2490, 24
    %v2537 = vpop.permute.xlu0 %2536
    %2538 = vrot.lane.b32.xlu0 %v2516, 24
    %v2539 = vpop.permute.xlu0 %2538
    %v2542 = vsel %vm176, %v2094, %v2521
    %v2543 = vsel %vm176, %v2120, %v2523
    %v2544 = vsel %vm726, %v2542, %v2529
    %v2545 = vsel %vm726, %v2543, %v2531
    %v2546 = vsel %vm729, %v2544, %v2537
    %v2547 = vsel %vm729, %v2545, %v2539
    %v2548 = vld [vmem:[#allocation7 + $0x160] sm:$0xff]
    %v2549 = vld [vmem:[#allocation7 + $0x168] sm:$0xff]
    %v2550 = vld [vmem:[#allocation7 + $0x170] sm:$0xff]
    %v2551 = vld [vmem:[#allocation7 + $0x178] sm:$0xff]
    %v2552 = vld [vmem:[#allocation9 + $0x11] sm:$0x1]
    %v2553 = vperm.slane %v2552, 0
    %v2555 = vsel %vm106, %v2546, 0
    %v2558 = vsel %vm106, %v2547, 0
    %2560 = vmatpush.msra.mxu0 0.0
    %2561 = vmatpush.msra.mxu0 0.0
    %2562 = vmatpush.msra.mxu0 0.0
    %2563 = vmatpush.msra.mxu0 0.0
    %2564 = vmatpush.msra.mxu0 0.0
    %2565 = vmatpush.msra.mxu0 0.0
    %2566 = vmatpush.msra.mxu0 0.0
    %2567 = vmatpush.msra.mxu0 0.0
    %2568 = vmatpush.msra.mxu0 0.0
    %2569 = vmatpush.msra.mxu0 0.0
    %2570 = vmatpush.msra.mxu0 0.0
    %2571 = vmatpush.msra.mxu0 0.0
    %2572 = vmatpush.msra.mxu0 %v2551
    %2573 = vmatpush.msra.mxu0 %v2550
    %2574 = vmatpush.msra.mxu0 %v2549
    %2575 = vmatpush.msra.mxu0 %v2548
    %2576 = vmatmul.f32.gmra.mxu0 %v2555
    %v2577 = vpop.f32.mrf.mxu0
    %v2578 = vadd.f32 %v2553, %v2577
    %2579 = vmatmul.f32.gmra.mxu0 %v2558
    %v2580 = vpop.f32.mrf.mxu0
    %v2581 = vadd.f32 %v2553, %v2580
    %2582 = vdwg.mxu0
    %v2583 = vadd.f32 %v1955, %v2578
    %v2584 = vadd.f32 %v1956, %v2581
    %v2585 = vsel %vm106, %v2583, 0.0
    %2586 = vadd.xlane.f32.xlu0 %v2585
    %v2587 = vpop.xlane.xlu0 %2586
    %v2588 = vsel %vm106, %v2584, 0.0
    %2589 = vadd.xlane.f32.xlu0 %v2588
    %v2590 = vpop.xlane.xlu0 %2589
    %v2591 = vmul.f32 %v2587, %v781
    %v2592 = vmul.f32 %v2590, %v781
    %v2593 = vmul.f32 %v2583, %v2583
    %v2594 = vmul.f32 %v2584, %v2584
    %v2595 = vsel %vm106, %v2593, 0.0
    %2596 = vadd.xlane.f32.xlu0 %v2595
    %v2597 = vpop.xlane.xlu0 %2596
    %v2598 = vsel %vm106, %v2594, 0.0
    %2599 = vadd.xlane.f32.xlu0 %v2598
    %v2600 = vpop.xlane.xlu0 %2599
    %v2601 = vmul.f32 %v2597, %v781
    %v2602 = vmul.f32 %v2600, %v781
    %v2603 = vmul.f32 %v2591, %v2591
    %v2604 = vmul.f32 %v2592, %v2592
    %v2605 = vsub.f32 %v2601, %v2603
    %v2606 = vsub.f32 %v2602, %v2604
    %v2607 = vsub.f32 %v2583, %v2591
    %v2608 = vsub.f32 %v2584, %v2592
    %v2609 = vadd.f32 %v2605, 1e-05
    %v2610 = vadd.f32 %v2606, 1e-05
    %v2611 = vrsqrt.pop %v2609
    %v2612 = vmul.f32 %v2611, %v2609
    %v2613 = vmul.f32 %v2612, %v2611
    %v2614 = vmul.f32 0.5, %v2613
    %v2615 = vsub.f32 1.5, %v2614
    %v2616 = vmul.f32 %v2611, %v2615
    %vm2617 = vweird.f32 %v2609
    %vm2618 = vweird.f32 %v2611
    %vm2619 = vmor %vm2617, %vm2618
    %v2620 = vsel %vm2619, %v2611, %v2616
    %v2621 = vrsqrt.pop %v2610
    %v2622 = vmul.f32 %v2621, %v2610
    %v2623 = vmul.f32 %v2622, %v2621
    %v2624 = vmul.f32 0.5, %v2623
    %v2625 = vsub.f32 1.5, %v2624
    %v2626 = vmul.f32 %v2621, %v2625
    %vm2627 = vweird.f32 %v2610
    %vm2628 = vweird.f32 %v2621
    %vm2629 = vmor %vm2627, %vm2628
    %v2630 = vsel %vm2629, %v2621, %v2626
    %v2631 = vmul.f32 %v2607, %v2620
    %v2632 = vmul.f32 %v2608, %v2630
    %v2633 = vld [vmem:[#allocation9 + $0x12] sm:$0x1]
    %v2634 = vperm.slane %v2633, 0
    %v2635 = vmul.f32 %v2631, %v2634
    %v2636 = vmul.f32 %v2632, %v2634
    %v2637 = vld [vmem:[#allocation9 + $0x13] sm:$0x1]
    %v2638 = vperm.slane %v2637, 0
    %v2639 = vadd.f32 %v2635, %v2638
    %v2640 = vadd.f32 %v2636, %v2638
    %v2641 = vld [vmem:[#allocation7 + $0x180] sm:$0xff]
    %v2642 = vld [vmem:[#allocation7 + $0x188] sm:$0xff]
    %v2643 = vld [vmem:[#allocation7 + $0x190] sm:$0xff]
    %v2644 = vld [vmem:[#allocation7 + $0x198] sm:$0xff]
    %v2645 = vld [vmem:[#allocation9 + $0x14] sm:$0x1]
    %v2646 = vperm.slane %v2645, 0
    %v2648 = vsel %vm106, %v2639, 0
    %v2651 = vsel %vm106, %v2640, 0
    %2653 = vmatpush.msra.mxu0 0.0
    %2654 = vmatpush.msra.mxu0 0.0
    %2655 = vmatpush.msra.mxu0 0.0
    %2656 = vmatpush.msra.mxu0 0.0
    %2657 = vmatpush.msra.mxu0 0.0
    %2658 = vmatpush.msra.mxu0 0.0
    %2659 = vmatpush.msra.mxu0 0.0
    %2660 = vmatpush.msra.mxu0 0.0
    %2661 = vmatpush.msra.mxu0 0.0
    %2662 = vmatpush.msra.mxu0 0.0
    %2663 = vmatpush.msra.mxu0 0.0
    %2664 = vmatpush.msra.mxu0 0.0
    %2665 = vmatpush.msra.mxu0 %v2644
    %2666 = vmatpush.msra.mxu0 %v2643
    %2667 = vmatpush.msra.mxu0 %v2642
    %2668 = vmatpush.msra.mxu0 %v2641
    %2669 = vmatmul.f32.gmra.mxu0 %v2648
    %v2670 = vpop.f32.mrf.mxu0
    %v2671 = vadd.f32 %v2646, %v2670
    %2672 = vmatmul.f32.gmra.mxu0 %v2651
    %v2673 = vpop.f32.mrf.mxu0
    %v2674 = vadd.f32 %v2646, %v2673
    %2675 = vdwg.mxu0
    %v2676 = vmax.f32 %v2671, 0.0
    %v2677 = vmax.f32 %v2674, 0.0
    %v2678 = vld [vmem:[#allocation7 + $0x1a0] sm:$0xff]
    %v2679 = vld [vmem:[#allocation7 + $0x1a8] sm:$0xff]
    %v2680 = vld [vmem:[#allocation7 + $0x1b0] sm:$0xff]
    %v2681 = vld [vmem:[#allocation7 + $0x1b8] sm:$0xff]
    %v2682 = vld [vmem:[#allocation7 + $0x1c0] sm:$0xff]
    %v2683 = vld [vmem:[#allocation7 + $0x1c8] sm:$0xff]
    %v2684 = vld [vmem:[#allocation7 + $0x1d0] sm:$0xff]
    %v2685 = vld [vmem:[#allocation7 + $0x1d8] sm:$0xff]
    %v2686 = vld [vmem:[#allocation9 + $0x15] sm:$0x1]
    %v2687 = vperm.slane %v2686, 0
    %v2689 = vsel %vm879, %v2676, 0
    %v2692 = vsel %vm879, %v2677, 0
    %2694 = vmatpush.msra.mxu0 0.0
    %2695 = vmatpush.msra.mxu0 0.0
    %2696 = vmatpush.msra.mxu0 0.0
    %2697 = vmatpush.msra.mxu0 0.0
    %2698 = vmatpush.msra.mxu0 0.0
    %2699 = vmatpush.msra.mxu0 0.0
    %2700 = vmatpush.msra.mxu0 0.0
    %2701 = vmatpush.msra.mxu0 0.0
    %2702 = vmatpush.msra.mxu0 %v2685
    %2703 = vmatpush.msra.mxu0 %v2684
    %2704 = vmatpush.msra.mxu0 %v2683
    %2705 = vmatpush.msra.mxu0 %v2682
    %2706 = vmatpush.msra.mxu0 %v2681
    %2707 = vmatpush.msra.mxu0 %v2680
    %2708 = vmatpush.msra.mxu0 %v2679
    %2709 = vmatpush.msra.mxu0 %v2678
    %2710 = vmatmul.f32.gmra.mxu0 %v2689
    %v2711 = vpop.f32.mrf.mxu0
    %v2712 = vadd.f32 %v2687, %v2711
    %2713 = vmatmul.f32.gmra.mxu0 %v2692
    %v2714 = vpop.f32.mrf.mxu0
    %v2715 = vadd.f32 %v2687, %v2714
    %2716 = vdwg.mxu0
    %v2717 = vadd.f32 %v2639, %v2712
    %v2718 = vadd.f32 %v2640, %v2715
    %v2719 = vsel %vm106, %v2717, 0.0
    %2720 = vadd.xlane.f32.xlu0 %v2719
    %v2721 = vpop.xlane.xlu0 %2720
    %v2722 = vsel %vm106, %v2718, 0.0
    %2723 = vadd.xlane.f32.xlu0 %v2722
    %v2724 = vpop.xlane.xlu0 %2723
    %v2725 = vmul.f32 %v2721, %v781
    %v2726 = vmul.f32 %v2724, %v781
    %v2727 = vmul.f32 %v2717, %v2717
    %v2728 = vmul.f32 %v2718, %v2718
    %v2729 = vsel %vm106, %v2727, 0.0
    %2730 = vadd.xlane.f32.xlu0 %v2729
    %v2731 = vpop.xlane.xlu0 %2730
    %v2732 = vsel %vm106, %v2728, 0.0
    %2733 = vadd.xlane.f32.xlu0 %v2732
    %v2734 = vpop.xlane.xlu0 %2733
    %v2735 = vmul.f32 %v2731, %v781
    %v2736 = vmul.f32 %v2734, %v781
    %v2737 = vmul.f32 %v2725, %v2725
    %v2738 = vmul.f32 %v2726, %v2726
    %v2739 = vsub.f32 %v2735, %v2737
    %v2740 = vsub.f32 %v2736, %v2738
    %v2741 = vsub.f32 %v2717, %v2725
    %v2742 = vsub.f32 %v2718, %v2726
    %v2743 = vadd.f32 %v2739, 1e-05
    %v2744 = vadd.f32 %v2740, 1e-05
    %v2745 = vrsqrt.pop %v2743
    %v2746 = vmul.f32 %v2745, %v2743
    %v2747 = vmul.f32 %v2746, %v2745
    %v2748 = vmul.f32 0.5, %v2747
    %v2749 = vsub.f32 1.5, %v2748
    %v2750 = vmul.f32 %v2745, %v2749
    %vm2751 = vweird.f32 %v2743
    %vm2752 = vweird.f32 %v2745
    %vm2753 = vmor %vm2751, %vm2752
    %v2754 = vsel %vm2753, %v2745, %v2750
    %v2755 = vrsqrt.pop %v2744
    %v2756 = vmul.f32 %v2755, %v2744
    %v2757 = vmul.f32 %v2756, %v2755
    %v2758 = vmul.f32 0.5, %v2757
    %v2759 = vsub.f32 1.5, %v2758
    %v2760 = vmul.f32 %v2755, %v2759
    %vm2761 = vweird.f32 %v2744
    %vm2762 = vweird.f32 %v2755
    %vm2763 = vmor %vm2761, %vm2762
    %v2764 = vsel %vm2763, %v2755, %v2760
    %v2765 = vmul.f32 %v2741, %v2754
    %v2766 = vmul.f32 %v2742, %v2764
    %v2767 = vld [vmem:[#allocation9 + $0x16] sm:$0x1]
    %v2768 = vperm.slane %v2767, 0
    %v2769 = vmul.f32 %v2765, %v2768
    %v2770 = vmul.f32 %v2766, %v2768
    %v2771 = vld [vmem:[#allocation9 + $0x17] sm:$0x1]
    %v2772 = vperm.slane %v2771, 0
    %v2773 = vadd.f32 %v2769, %v2772
    %v2774 = vadd.f32 %v2770, %v2772
    %v2775 = vld [vmem:[#allocation7 + $0x1e0] sm:$0xff]
    %v2776 = vld [vmem:[#allocation7 + $0x1e8] sm:$0xff]
    %v2777 = vld [vmem:[#allocation7 + $0x1f0] sm:$0xff]
    %v2778 = vld [vmem:[#allocation7 + $0x1f8] sm:$0xff]
    %v2779 = vld [vmem:[#allocation9 + $0x18] sm:$0x1]
    %v2780 = vperm.slane %v2779, 0
    %v2782 = vsel %vm106, %v2773, 0
    %v2785 = vsel %vm106, %v2774, 0
    %2787 = vmatpush.msra.mxu0 0.0
    %2788 = vmatpush.msra.mxu0 0.0
    %2789 = vmatpush.msra.mxu0 0.0
    %2790 = vmatpush.msra.mxu0 0.0
    %2791 = vmatpush.msra.mxu0 0.0
    %2792 = vmatpush.msra.mxu0 0.0
    %2793 = vmatpush.msra.mxu0 0.0
    %2794 = vmatpush.msra.mxu0 0.0
    %2795 = vmatpush.msra.mxu0 0.0
    %2796 = vmatpush.msra.mxu0 0.0
    %2797 = vmatpush.msra.mxu0 0.0
    %2798 = vmatpush.msra.mxu0 0.0
    %2799 = vmatpush.msra.mxu0 %v2778
    %2800 = vmatpush.msra.mxu0 %v2777
    %2801 = vmatpush.msra.mxu0 %v2776
    %2802 = vmatpush.msra.mxu0 %v2775
    %2803 = vmatmul.f32.gmra.mxu0 %v2782
    %v2804 = vpop.f32.mrf.mxu0
    %v2805 = vadd.f32 %v2780, %v2804
    %2806 = vmatmul.f32.gmra.mxu0 %v2785
    %v2807 = vpop.f32.mrf.mxu0
    %v2808 = vadd.f32 %v2780, %v2807
    %2809 = vdwg.mxu0
    %2811 = vrot.lane.b32.xlu0 %v2805, 96
    %v2812 = vpop.permute.xlu0 %2811
    %v2813 = vsel %vm176, %v2805, 0
    %v2815 = vsel %vm176, %v2812, 0
    %2817 = vmatpush.xpose.msra.mxu0 0.0
    %2818 = vmatpush.xpose.msra.mxu0 0.0
    %2819 = vmatpush.xpose.msra.mxu0 0.0
    %2820 = vmatpush.xpose.msra.mxu0 0.0
    %2821 = vmatpush.xpose.msra.mxu0 0.0
    %2822 = vmatpush.xpose.msra.mxu0 0.0
    %2823 = vmatpush.xpose.msra.mxu0 0.0
    %2824 = vmatpush.xpose.msra.mxu0 0.0
    %2825 = vmatpush.xpose.msra.mxu0 0.0
    %2826 = vmatpush.xpose.msra.mxu0 0.0
    %2827 = vmatpush.xpose.msra.mxu0 0.0
    %2828 = vmatpush.xpose.msra.mxu0 0.0
    %2829 = vmatpush.xpose.msra.mxu0 0.0
    %2830 = vmatpush.xpose.msra.mxu0 0.0
    %2831 = vmatpush.xpose.msra.mxu0 0.0
    %2832 = vmatpush.xpose.msra.mxu0 %v2815
    %2833 = vmatmul.f32.gmra.mxu0 %v2813
    %v2834 = vpop.f32.mrf.mxu0
    %v2835 = vadd.f32 0.0, %v2834
    %2836 = vdwg.mxu0
    %2838 = vrot.lane.b32.xlu0 %v2808, 96
    %v2839 = vpop.permute.xlu0 %2838
    %v2840 = vsel %vm176, %v2808, 0
    %v2842 = vsel %vm176, %v2839, 0
    %2844 = vmatpush.xpose.msra.mxu0 0.0
    %2845 = vmatpush.xpose.msra.mxu0 0.0
    %2846 = vmatpush.xpose.msra.mxu0 0.0
    %2847 = vmatpush.xpose.msra.mxu0 0.0
    %2848 = vmatpush.xpose.msra.mxu0 0.0
    %2849 = vmatpush.xpose.msra.mxu0 0.0
    %2850 = vmatpush.xpose.msra.mxu0 0.0
    %2851 = vmatpush.xpose.msra.mxu0 0.0
    %2852 = vmatpush.xpose.msra.mxu0 0.0
    %2853 = vmatpush.xpose.msra.mxu0 0.0
    %2854 = vmatpush.xpose.msra.mxu0 0.0
    %2855 = vmatpush.xpose.msra.mxu0 0.0
    %2856 = vmatpush.xpose.msra.mxu0 0.0
    %2857 = vmatpush.xpose.msra.mxu0 0.0
    %2858 = vmatpush.xpose.msra.mxu0 0.0
    %2859 = vmatpush.xpose.msra.mxu0 %v2842
    %2860 = vmatmul.f32.gmra.mxu0 %v2840
    %v2861 = vpop.f32.mrf.mxu0
    %v2862 = vadd.f32 0.0, %v2861
    %2863 = vdwg.mxu0
    %v2864 = vmul.f32 %v2835, 0.35355338
    %v2865 = vmul.f32 %v2862, 0.35355338
    %v2866 = vsel %vm176, %v2864, -inf
    %2867 = vmax.xlane.f32.xlu0 %v2866
    %v2868 = vpop.xlane.xlu0 %2867
    %v2869 = vsel %vm176, %v2865, -inf
    %2870 = vmax.xlane.f32.xlu0 %v2869
    %v2871 = vpop.xlane.xlu0 %2870
    %v2872 = vsub.f32 %v2864, %v2868
    %v2873 = vsub.f32 %v2865, %v2871
    %v2874 = vmul.f32 %v2872, 1.442695
    %v2875 = vpow.pop %v2874
    %v2876 = vmul.f32 %v2873, 1.442695
    %v2877 = vpow.pop %v2876
    %v2878 = vsel %vm176, %v2875, 0.0
    %2879 = vadd.xlane.f32.xlu0 %v2878
    %v2880 = vpop.xlane.xlu0 %2879
    %v2881 = vsel %vm176, %v2877, 0.0
    %2882 = vadd.xlane.f32.xlu0 %v2881
    %v2883 = vpop.xlane.xlu0 %2882
    %v2884 = vrcp.pop %v2880
    %v2885 = vrcp.pop %v2883
    %v2886 = vmul.f32 %v2875, %v2884
    %v2887 = vmul.f32 %v2877, %v2885
    %2888 = vrot.lane.b32.xlu0 %v2805, 64
    %v2889 = vpop.permute.xlu0 %2888
    %v2892 = vsel %vm176, %v2886, 0
    %2894 = vmatpush.msra.mxu0 0.0
    %2895 = vmatpush.msra.mxu0 0.0
    %2896 = vmatpush.msra.mxu0 0.0
    %2897 = vmatpush.msra.mxu0 0.0
    %2898 = vmatpush.msra.mxu0 0.0
    %2899 = vmatpush.msra.mxu0 0.0
    %2900 = vmatpush.msra.mxu0 0.0
    %2901 = vmatpush.msra.mxu0 0.0
    %2902 = vmatpush.msra.mxu0 0.0
    %2903 = vmatpush.msra.mxu0 0.0
    %2904 = vmatpush.msra.mxu0 0.0
    %2905 = vmatpush.msra.mxu0 0.0
    %2906 = vmatpush.msra.mxu0 0.0
    %2907 = vmatpush.msra.mxu0 0.0
    %2908 = vmatpush.msra.mxu0 0.0
    %2909 = vmatpush.msra.mxu0 %v2889
    %2910 = vmatmul.f32.gmra.mxu0 %v2892
    %v2911 = vpop.f32.mrf.mxu0
    %v2912 = vadd.f32 0.0, %v2911
    %2913 = vdwg.mxu0
    %2914 = vrot.lane.b32.xlu0 %v2808, 64
    %v2915 = vpop.permute.xlu0 %2914
    %v2918 = vsel %vm176, %v2887, 0
    %2920 = vmatpush.msra.mxu0 0.0
    %2921 = vmatpush.msra.mxu0 0.0
    %2922 = vmatpush.msra.mxu0 0.0
    %2923 = vmatpush.msra.mxu0 0.0
    %2924 = vmatpush.msra.mxu0 0.0
    %2925 = vmatpush.msra.mxu0 0.0
    %2926 = vmatpush.msra.mxu0 0.0
    %2927 = vmatpush.msra.mxu0 0.0
    %2928 = vmatpush.msra.mxu0 0.0
    %2929 = vmatpush.msra.mxu0 0.0
    %2930 = vmatpush.msra.mxu0 0.0
    %2931 = vmatpush.msra.mxu0 0.0
    %2932 = vmatpush.msra.mxu0 0.0
    %2933 = vmatpush.msra.mxu0 0.0
    %2934 = vmatpush.msra.mxu0 0.0
    %2935 = vmatpush.msra.mxu0 %v2915
    %2936 = vmatmul.f32.gmra.mxu0 %v2918
    %v2937 = vpop.f32.mrf.mxu0
    %v2938 = vadd.f32 0.0, %v2937
    %2939 = vdwg.mxu0
    %2940 = vrot.lane.b32.xlu0 %v2805, 120
    %v2941 = vpop.permute.xlu0 %2940
    %2942 = vrot.lane.b32.xlu0 %v2805, 88
    %v2943 = vpop.permute.xlu0 %2942
    %v2944 = vsel %vm176, %v2941, 0
    %v2946 = vsel %vm176, %v2943, 0
    %2948 = vmatpush.xpose.msra.mxu0 0.0
    %2949 = vmatpush.xpose.msra.mxu0 0.0
    %2950 = vmatpush.xpose.msra.mxu0 0.0
    %2951 = vmatpush.xpose.msra.mxu0 0.0
    %2952 = vmatpush.xpose.msra.mxu0 0.0
    %2953 = vmatpush.xpose.msra.mxu0 0.0
    %2954 = vmatpush.xpose.msra.mxu0 0.0
    %2955 = vmatpush.xpose.msra.mxu0 0.0
    %2956 = vmatpush.xpose.msra.mxu0 0.0
    %2957 = vmatpush.xpose.msra.mxu0 0.0
    %2958 = vmatpush.xpose.msra.mxu0 0.0
    %2959 = vmatpush.xpose.msra.mxu0 0.0
    %2960 = vmatpush.xpose.msra.mxu0 0.0
    %2961 = vmatpush.xpose.msra.mxu0 0.0
    %2962 = vmatpush.xpose.msra.mxu0 0.0
    %2963 = vmatpush.xpose.msra.mxu0 %v2946
    %2964 = vmatmul.f32.gmra.mxu0 %v2944
    %v2965 = vpop.f32.mrf.mxu0
    %v2966 = vadd.f32 0.0, %v2965
    %2967 = vdwg.mxu0
    %2968 = vrot.lane.b32.xlu0 %v2808, 120
    %v2969 = vpop.permute.xlu0 %2968
    %2970 = vrot.lane.b32.xlu0 %v2808, 88
    %v2971 = vpop.permute.xlu0 %2970
    %v2972 = vsel %vm176, %v2969, 0
    %v2974 = vsel %vm176, %v2971, 0
    %2976 = vmatpush.xpose.msra.mxu0 0.0
    %2977 = vmatpush.xpose.msra.mxu0 0.0
    %2978 = vmatpush.xpose.msra.mxu0 0.0
    %2979 = vmatpush.xpose.msra.mxu0 0.0
    %2980 = vmatpush.xpose.msra.mxu0 0.0
    %2981 = vmatpush.xpose.msra.mxu0 0.0
    %2982 = vmatpush.xpose.msra.mxu0 0.0
    %2983 = vmatpush.xpose.msra.mxu0 0.0
    %2984 = vmatpush.xpose.msra.mxu0 0.0
    %2985 = vmatpush.xpose.msra.mxu0 0.0
    %2986 = vmatpush.xpose.msra.mxu0 0.0
    %2987 = vmatpush.xpose.msra.mxu0 0.0
    %2988 = vmatpush.xpose.msra.mxu0 0.0
    %2989 = vmatpush.xpose.msra.mxu0 0.0
    %2990 = vmatpush.xpose.msra.mxu0 0.0
    %2991 = vmatpush.xpose.msra.mxu0 %v2974
    %2992 = vmatmul.f32.gmra.mxu0 %v2972
    %v2993 = vpop.f32.mrf.mxu0
    %v2994 = vadd.f32 0.0, %v2993
    %2995 = vdwg.mxu0
    %v2996 = vmul.f32 %v2966, 0.35355338
    %v2997 = vmul.f32 %v2994, 0.35355338
    %v2998 = vsel %vm176, %v2996, -inf
    %2999 = vmax.xlane.f32.xlu0 %v2998
    %v3000 = vpop.xlane.xlu0 %2999
    %v3001 = vsel %vm176, %v2997, -inf
    %3002 = vmax.xlane.f32.xlu0 %v3001
    %v3003 = vpop.xlane.xlu0 %3002
    %v3004 = vsub.f32 %v2996, %v3000
    %v3005 = vsub.f32 %v2997, %v3003
    %v3006 = vmul.f32 %v3004, 1.442695
    %v3007 = vpow.pop %v3006
    %v3008 = vmul.f32 %v3005, 1.442695
    %v3009 = vpow.pop %v3008
    %v3010 = vsel %vm176, %v3007, 0.0
    %3011 = vadd.xlane.f32.xlu0 %v3010
    %v3012 = vpop.xlane.xlu0 %3011
    %v3013 = vsel %vm176, %v3009, 0.0
    %3014 = vadd.xlane.f32.xlu0 %v3013
    %v3015 = vpop.xlane.xlu0 %3014
    %v3016 = vrcp.pop %v3012
    %v3017 = vrcp.pop %v3015
    %v3018 = vmul.f32 %v3007, %v3016
    %v3019 = vmul.f32 %v3009, %v3017
    %3020 = vrot.lane.b32.xlu0 %v2805, 56
    %v3021 = vpop.permute.xlu0 %3020
    %v3024 = vsel %vm176, %v3018, 0
    %3026 = vmatpush.msra.mxu0 0.0
    %3027 = vmatpush.msra.mxu0 0.0
    %3028 = vmatpush.msra.mxu0 0.0
    %3029 = vmatpush.msra.mxu0 0.0
    %3030 = vmatpush.msra.mxu0 0.0
    %3031 = vmatpush.msra.mxu0 0.0
    %3032 = vmatpush.msra.mxu0 0.0
    %3033 = vmatpush.msra.mxu0 0.0
    %3034 = vmatpush.msra.mxu0 0.0
    %3035 = vmatpush.msra.mxu0 0.0
    %3036 = vmatpush.msra.mxu0 0.0
    %3037 = vmatpush.msra.mxu0 0.0
    %3038 = vmatpush.msra.mxu0 0.0
    %3039 = vmatpush.msra.mxu0 0.0
    %3040 = vmatpush.msra.mxu0 0.0
    %3041 = vmatpush.msra.mxu0 %v3021
    %3042 = vmatmul.f32.gmra.mxu0 %v3024
    %v3043 = vpop.f32.mrf.mxu0
    %v3044 = vadd.f32 0.0, %v3043
    %3045 = vdwg.mxu0
    %3046 = vrot.lane.b32.xlu0 %v2808, 56
    %v3047 = vpop.permute.xlu0 %3046
    %v3050 = vsel %vm176, %v3019, 0
    %3052 = vmatpush.msra.mxu0 0.0
    %3053 = vmatpush.msra.mxu0 0.0
    %3054 = vmatpush.msra.mxu0 0.0
    %3055 = vmatpush.msra.mxu0 0.0
    %3056 = vmatpush.msra.mxu0 0.0
    %3057 = vmatpush.msra.mxu0 0.0
    %3058 = vmatpush.msra.mxu0 0.0
    %3059 = vmatpush.msra.mxu0 0.0
    %3060 = vmatpush.msra.mxu0 0.0
    %3061 = vmatpush.msra.mxu0 0.0
    %3062 = vmatpush.msra.mxu0 0.0
    %3063 = vmatpush.msra.mxu0 0.0
    %3064 = vmatpush.msra.mxu0 0.0
    %3065 = vmatpush.msra.mxu0 0.0
    %3066 = vmatpush.msra.mxu0 0.0
    %3067 = vmatpush.msra.mxu0 %v3047
    %3068 = vmatmul.f32.gmra.mxu0 %v3050
    %v3069 = vpop.f32.mrf.mxu0
    %v3070 = vadd.f32 0.0, %v3069
    %3071 = vdwg.mxu0
    %3072 = vrot.lane.b32.xlu0 %v2805, 112
    %v3073 = vpop.permute.xlu0 %3072
    %3074 = vrot.lane.b32.xlu0 %v2805, 80
    %v3075 = vpop.permute.xlu0 %3074
    %v3076 = vsel %vm176, %v3073, 0
    %v3078 = vsel %vm176, %v3075, 0
    %3080 = vmatpush.xpose.msra.mxu0 0.0
    %3081 = vmatpush.xpose.msra.mxu0 0.0
    %3082 = vmatpush.xpose.msra.mxu0 0.0
    %3083 = vmatpush.xpose.msra.mxu0 0.0
    %3084 = vmatpush.xpose.msra.mxu0 0.0
    %3085 = vmatpush.xpose.msra.mxu0 0.0
    %3086 = vmatpush.xpose.msra.mxu0 0.0
    %3087 = vmatpush.xpose.msra.mxu0 0.0
    %3088 = vmatpush.xpose.msra.mxu0 0.0
    %3089 = vmatpush.xpose.msra.mxu0 0.0
    %3090 = vmatpush.xpose.msra.mxu0 0.0
    %3091 = vmatpush.xpose.msra.mxu0 0.0
    %3092 = vmatpush.xpose.msra.mxu0 0.0
    %3093 = vmatpush.xpose.msra.mxu0 0.0
    %3094 = vmatpush.xpose.msra.mxu0 0.0
    %3095 = vmatpush.xpose.msra.mxu0 %v3078
    %3096 = vmatmul.f32.gmra.mxu0 %v3076
    %v3097 = vpop.f32.mrf.mxu0
    %v3098 = vadd.f32 0.0, %v3097
    %3099 = vdwg.mxu0
    %3100 = vrot.lane.b32.xlu0 %v2808, 112
    %v3101 = vpop.permute.xlu0 %3100
    %3102 = vrot.lane.b32.xlu0 %v2808, 80
    %v3103 = vpop.permute.xlu0 %3102
    %v3104 = vsel %vm176, %v3101, 0
    %v3106 = vsel %vm176, %v3103, 0
    %3108 = vmatpush.xpose.msra.mxu0 0.0
    %3109 = vmatpush.xpose.msra.mxu0 0.0
    %3110 = vmatpush.xpose.msra.mxu0 0.0
    %3111 = vmatpush.xpose.msra.mxu0 0.0
    %3112 = vmatpush.xpose.msra.mxu0 0.0
    %3113 = vmatpush.xpose.msra.mxu0 0.0
    %3114 = vmatpush.xpose.msra.mxu0 0.0
    %3115 = vmatpush.xpose.msra.mxu0 0.0
    %3116 = vmatpush.xpose.msra.mxu0 0.0
    %3117 = vmatpush.xpose.msra.mxu0 0.0
    %3118 = vmatpush.xpose.msra.mxu0 0.0
    %3119 = vmatpush.xpose.msra.mxu0 0.0
    %3120 = vmatpush.xpose.msra.mxu0 0.0
    %3121 = vmatpush.xpose.msra.mxu0 0.0
    %3122 = vmatpush.xpose.msra.mxu0 0.0
    %3123 = vmatpush.xpose.msra.mxu0 %v3106
    %3124 = vmatmul.f32.gmra.mxu0 %v3104
    %v3125 = vpop.f32.mrf.mxu0
    %v3126 = vadd.f32 0.0, %v3125
    %3127 = vdwg.mxu0
    %v3128 = vmul.f32 %v3098, 0.35355338
    %v3129 = vmul.f32 %v3126, 0.35355338
    %v3130 = vsel %vm176, %v3128, -inf
    %3131 = vmax.xlane.f32.xlu0 %v3130
    %v3132 = vpop.xlane.xlu0 %3131
    %v3133 = vsel %vm176, %v3129, -inf
    %3134 = vmax.xlane.f32.xlu0 %v3133
    %v3135 = vpop.xlane.xlu0 %3134
    %v3136 = vsub.f32 %v3128, %v3132
    %v3137 = vsub.f32 %v3129, %v3135
    %v3138 = vmul.f32 %v3136, 1.442695
    %v3139 = vpow.pop %v3138
    %v3140 = vmul.f32 %v3137, 1.442695
    %v3141 = vpow.pop %v3140
    %v3142 = vsel %vm176, %v3139, 0.0
    %3143 = vadd.xlane.f32.xlu0 %v3142
    %v3144 = vpop.xlane.xlu0 %3143
    %v3145 = vsel %vm176, %v3141, 0.0
    %3146 = vadd.xlane.f32.xlu0 %v3145
    %v3147 = vpop.xlane.xlu0 %3146
    %v3148 = vrcp.pop %v3144
    %v3149 = vrcp.pop %v3147
    %v3150 = vmul.f32 %v3139, %v3148
    %v3151 = vmul.f32 %v3141, %v3149
    %3152 = vrot.lane.b32.xlu0 %v2805, 48
    %v3153 = vpop.permute.xlu0 %3152
    %v3156 = vsel %vm176, %v3150, 0
    %3158 = vmatpush.msra.mxu0 0.0
    %3159 = vmatpush.msra.mxu0 0.0
    %3160 = vmatpush.msra.mxu0 0.0
    %3161 = vmatpush.msra.mxu0 0.0
    %3162 = vmatpush.msra.mxu0 0.0
    %3163 = vmatpush.msra.mxu0 0.0
    %3164 = vmatpush.msra.mxu0 0.0
    %3165 = vmatpush.msra.mxu0 0.0
    %3166 = vmatpush.msra.mxu0 0.0
    %3167 = vmatpush.msra.mxu0 0.0
    %3168 = vmatpush.msra.mxu0 0.0
    %3169 = vmatpush.msra.mxu0 0.0
    %3170 = vmatpush.msra.mxu0 0.0
    %3171 = vmatpush.msra.mxu0 0.0
    %3172 = vmatpush.msra.mxu0 0.0
    %3173 = vmatpush.msra.mxu0 %v3153
    %3174 = vmatmul.f32.gmra.mxu0 %v3156
    %v3175 = vpop.f32.mrf.mxu0
    %v3176 = vadd.f32 0.0, %v3175
    %3177 = vdwg.mxu0
    %3178 = vrot.lane.b32.xlu0 %v2808, 48
    %v3179 = vpop.permute.xlu0 %3178
    %v3182 = vsel %vm176, %v3151, 0
    %3184 = vmatpush.msra.mxu0 0.0
    %3185 = vmatpush.msra.mxu0 0.0
    %3186 = vmatpush.msra.mxu0 0.0
    %3187 = vmatpush.msra.mxu0 0.0
    %3188 = vmatpush.msra.mxu0 0.0
    %3189 = vmatpush.msra.mxu0 0.0
    %3190 = vmatpush.msra.mxu0 0.0
    %3191 = vmatpush.msra.mxu0 0.0
    %3192 = vmatpush.msra.mxu0 0.0
    %3193 = vmatpush.msra.mxu0 0.0
    %3194 = vmatpush.msra.mxu0 0.0
    %3195 = vmatpush.msra.mxu0 0.0
    %3196 = vmatpush.msra.mxu0 0.0
    %3197 = vmatpush.msra.mxu0 0.0
    %3198 = vmatpush.msra.mxu0 0.0
    %3199 = vmatpush.msra.mxu0 %v3179
    %3200 = vmatmul.f32.gmra.mxu0 %v3182
    %v3201 = vpop.f32.mrf.mxu0
    %v3202 = vadd.f32 0.0, %v3201
    %3203 = vdwg.mxu0
    %3204 = vrot.lane.b32.xlu0 %v2805, 104
    %v3205 = vpop.permute.xlu0 %3204
    %3206 = vrot.lane.b32.xlu0 %v2805, 72
    %v3207 = vpop.permute.xlu0 %3206
    %v3208 = vsel %vm176, %v3205, 0
    %v3210 = vsel %vm176, %v3207, 0
    %3212 = vmatpush.xpose.msra.mxu0 0.0
    %3213 = vmatpush.xpose.msra.mxu0 0.0
    %3214 = vmatpush.xpose.msra.mxu0 0.0
    %3215 = vmatpush.xpose.msra.mxu0 0.0
    %3216 = vmatpush.xpose.msra.mxu0 0.0
    %3217 = vmatpush.xpose.msra.mxu0 0.0
    %3218 = vmatpush.xpose.msra.mxu0 0.0
    %3219 = vmatpush.xpose.msra.mxu0 0.0
    %3220 = vmatpush.xpose.msra.mxu0 0.0
    %3221 = vmatpush.xpose.msra.mxu0 0.0
    %3222 = vmatpush.xpose.msra.mxu0 0.0
    %3223 = vmatpush.xpose.msra.mxu0 0.0
    %3224 = vmatpush.xpose.msra.mxu0 0.0
    %3225 = vmatpush.xpose.msra.mxu0 0.0
    %3226 = vmatpush.xpose.msra.mxu0 0.0
    %3227 = vmatpush.xpose.msra.mxu0 %v3210
    %3228 = vmatmul.f32.gmra.mxu0 %v3208
    %v3229 = vpop.f32.mrf.mxu0
    %v3230 = vadd.f32 0.0, %v3229
    %3231 = vdwg.mxu0
    %3232 = vrot.lane.b32.xlu0 %v2808, 104
    %v3233 = vpop.permute.xlu0 %3232
    %3234 = vrot.lane.b32.xlu0 %v2808, 72
    %v3235 = vpop.permute.xlu0 %3234
    %v3236 = vsel %vm176, %v3233, 0
    %v3238 = vsel %vm176, %v3235, 0
    %3240 = vmatpush.xpose.msra.mxu0 0.0
    %3241 = vmatpush.xpose.msra.mxu0 0.0
    %3242 = vmatpush.xpose.msra.mxu0 0.0
    %3243 = vmatpush.xpose.msra.mxu0 0.0
    %3244 = vmatpush.xpose.msra.mxu0 0.0
    %3245 = vmatpush.xpose.msra.mxu0 0.0
    %3246 = vmatpush.xpose.msra.mxu0 0.0
    %3247 = vmatpush.xpose.msra.mxu0 0.0
    %3248 = vmatpush.xpose.msra.mxu0 0.0
    %3249 = vmatpush.xpose.msra.mxu0 0.0
    %3250 = vmatpush.xpose.msra.mxu0 0.0
    %3251 = vmatpush.xpose.msra.mxu0 0.0
    %3252 = vmatpush.xpose.msra.mxu0 0.0
    %3253 = vmatpush.xpose.msra.mxu0 0.0
    %3254 = vmatpush.xpose.msra.mxu0 0.0
    %3255 = vmatpush.xpose.msra.mxu0 %v3238
    %3256 = vmatmul.f32.gmra.mxu0 %v3236
    %v3257 = vpop.f32.mrf.mxu0
    %v3258 = vadd.f32 0.0, %v3257
    %3259 = vdwg.mxu0
    %v3260 = vmul.f32 %v3230, 0.35355338
    %v3261 = vmul.f32 %v3258, 0.35355338
    %v3262 = vsel %vm176, %v3260, -inf
    %3263 = vmax.xlane.f32.xlu0 %v3262
    %v3264 = vpop.xlane.xlu0 %3263
    %v3265 = vsel %vm176, %v3261, -inf
    %3266 = vmax.xlane.f32.xlu0 %v3265
    %v3267 = vpop.xlane.xlu0 %3266
    %v3268 = vsub.f32 %v3260, %v3264
    %v3269 = vsub.f32 %v3261, %v3267
    %v3270 = vmul.f32 %v3268, 1.442695
    %v3271 = vpow.pop %v3270
    %v3272 = vmul.f32 %v3269, 1.442695
    %v3273 = vpow.pop %v3272
    %v3274 = vsel %vm176, %v3271, 0.0
    %3275 = vadd.xlane.f32.xlu0 %v3274
    %v3276 = vpop.xlane.xlu0 %3275
    %v3277 = vsel %vm176, %v3273, 0.0
    %3278 = vadd.xlane.f32.xlu0 %v3277
    %v3279 = vpop.xlane.xlu0 %3278
    %v3280 = vrcp.pop %v3276
    %v3281 = vrcp.pop %v3279
    %v3282 = vmul.f32 %v3271, %v3280
    %v3283 = vmul.f32 %v3273, %v3281
    %3284 = vrot.lane.b32.xlu0 %v2805, 40
    %v3285 = vpop.permute.xlu0 %3284
    %v3288 = vsel %vm176, %v3282, 0
    %3290 = vmatpush.msra.mxu0 0.0
    %3291 = vmatpush.msra.mxu0 0.0
    %3292 = vmatpush.msra.mxu0 0.0
    %3293 = vmatpush.msra.mxu0 0.0
    %3294 = vmatpush.msra.mxu0 0.0
    %3295 = vmatpush.msra.mxu0 0.0
    %3296 = vmatpush.msra.mxu0 0.0
    %3297 = vmatpush.msra.mxu0 0.0
    %3298 = vmatpush.msra.mxu0 0.0
    %3299 = vmatpush.msra.mxu0 0.0
    %3300 = vmatpush.msra.mxu0 0.0
    %3301 = vmatpush.msra.mxu0 0.0
    %3302 = vmatpush.msra.mxu0 0.0
    %3303 = vmatpush.msra.mxu0 0.0
    %3304 = vmatpush.msra.mxu0 0.0
    %3305 = vmatpush.msra.mxu0 %v3285
    %3306 = vmatmul.f32.gmra.mxu0 %v3288
    %v3307 = vpop.f32.mrf.mxu0
    %v3308 = vadd.f32 0.0, %v3307
    %3309 = vdwg.mxu0
    %3310 = vrot.lane.b32.xlu0 %v2808, 40
    %v3311 = vpop.permute.xlu0 %3310
    %v3314 = vsel %vm176, %v3283, 0
    %3316 = vmatpush.msra.mxu0 0.0
    %3317 = vmatpush.msra.mxu0 0.0
    %3318 = vmatpush.msra.mxu0 0.0
    %3319 = vmatpush.msra.mxu0 0.0
    %3320 = vmatpush.msra.mxu0 0.0
    %3321 = vmatpush.msra.mxu0 0.0
    %3322 = vmatpush.msra.mxu0 0.0
    %3323 = vmatpush.msra.mxu0 0.0
    %3324 = vmatpush.msra.mxu0 0.0
    %3325 = vmatpush.msra.mxu0 0.0
    %3326 = vmatpush.msra.mxu0 0.0
    %3327 = vmatpush.msra.mxu0 0.0
    %3328 = vmatpush.msra.mxu0 0.0
    %3329 = vmatpush.msra.mxu0 0.0
    %3330 = vmatpush.msra.mxu0 0.0
    %3331 = vmatpush.msra.mxu0 %v3311
    %3332 = vmatmul.f32.gmra.mxu0 %v3314
    %v3333 = vpop.f32.mrf.mxu0
    %v3334 = vadd.f32 0.0, %v3333
    %3335 = vdwg.mxu0
    %3338 = vrot.lane.b32.xlu0 %v3044, 8
    %v3339 = vpop.permute.xlu0 %3338
    %3340 = vrot.lane.b32.xlu0 %v3070, 8
    %v3341 = vpop.permute.xlu0 %3340
    %3346 = vrot.lane.b32.xlu0 %v3176, 16
    %v3347 = vpop.permute.xlu0 %3346
    %3348 = vrot.lane.b32.xlu0 %v3202, 16
    %v3349 = vpop.permute.xlu0 %3348
    %3354 = vrot.lane.b32.xlu0 %v3308, 24
    %v3355 = vpop.permute.xlu0 %3354
    %3356 = vrot.lane.b32.xlu0 %v3334, 24
    %v3357 = vpop.permute.xlu0 %3356
    %v3360 = vsel %vm176, %v2912, %v3339
    %v3361 = vsel %vm176, %v2938, %v3341
    %v3362 = vsel %vm726, %v3360, %v3347
    %v3363 = vsel %vm726, %v3361, %v3349
    %v3364 = vsel %vm729, %v3362, %v3355
    %v3365 = vsel %vm729, %v3363, %v3357
    %v3366 = vld [vmem:[#allocation7 + $0x200] sm:$0xff]
    %v3367 = vld [vmem:[#allocation7 + $0x208] sm:$0xff]
    %v3368 = vld [vmem:[#allocation7 + $0x210] sm:$0xff]
    %v3369 = vld [vmem:[#allocation7 + $0x218] sm:$0xff]
    %v3370 = vld [vmem:[#allocation9 + $0x19] sm:$0x1]
    %v3371 = vperm.slane %v3370, 0
    %v3373 = vsel %vm106, %v3364, 0
    %v3376 = vsel %vm106, %v3365, 0
    %3378 = vmatpush.msra.mxu0 0.0
    %3379 = vmatpush.msra.mxu0 0.0
    %3380 = vmatpush.msra.mxu0 0.0
    %3381 = vmatpush.msra.mxu0 0.0
    %3382 = vmatpush.msra.mxu0 0.0
    %3383 = vmatpush.msra.mxu0 0.0
    %3384 = vmatpush.msra.mxu0 0.0
    %3385 = vmatpush.msra.mxu0 0.0
    %3386 = vmatpush.msra.mxu0 0.0
    %3387 = vmatpush.msra.mxu0 0.0
    %3388 = vmatpush.msra.mxu0 0.0
    %3389 = vmatpush.msra.mxu0 0.0
    %3390 = vmatpush.msra.mxu0 %v3369
    %3391 = vmatpush.msra.mxu0 %v3368
    %3392 = vmatpush.msra.mxu0 %v3367
    %3393 = vmatpush.msra.mxu0 %v3366
    %3394 = vmatmul.f32.gmra.mxu0 %v3373
    %v3395 = vpop.f32.mrf.mxu0
    %v3396 = vadd.f32 %v3371, %v3395
    %3397 = vmatmul.f32.gmra.mxu0 %v3376
    %v3398 = vpop.f32.mrf.mxu0
    %v3399 = vadd.f32 %v3371, %v3398
    %3400 = vdwg.mxu0
    %v3401 = vadd.f32 %v2773, %v3396
    %v3402 = vadd.f32 %v2774, %v3399
    %v3403 = vsel %vm106, %v3401, 0.0
    %3404 = vadd.xlane.f32.xlu0 %v3403
    %v3405 = vpop.xlane.xlu0 %3404
    %v3406 = vsel %vm106, %v3402, 0.0
    %3407 = vadd.xlane.f32.xlu0 %v3406
    %v3408 = vpop.xlane.xlu0 %3407
    %v3409 = vmul.f32 %v3405, %v781
    %v3410 = vmul.f32 %v3408, %v781
    %v3411 = vmul.f32 %v3401, %v3401
    %v3412 = vmul.f32 %v3402, %v3402
    %v3413 = vsel %vm106, %v3411, 0.0
    %3414 = vadd.xlane.f32.xlu0 %v3413
    %v3415 = vpop.xlane.xlu0 %3414
    %v3416 = vsel %vm106, %v3412, 0.0
    %3417 = vadd.xlane.f32.xlu0 %v3416
    %v3418 = vpop.xlane.xlu0 %3417
    %v3419 = vmul.f32 %v3415, %v781
    %v3420 = vmul.f32 %v3418, %v781
    %v3421 = vmul.f32 %v3409, %v3409
    %v3422 = vmul.f32 %v3410, %v3410
    %v3423 = vsub.f32 %v3419, %v3421
    %v3424 = vsub.f32 %v3420, %v3422
    %v3425 = vsub.f32 %v3401, %v3409
    %v3426 = vsub.f32 %v3402, %v3410
    %v3427 = vadd.f32 %v3423, 1e-05
    %v3428 = vadd.f32 %v3424, 1e-05
    %v3429 = vrsqrt.pop %v3427
    %v3430 = vmul.f32 %v3429, %v3427
    %v3431 = vmul.f32 %v3430, %v3429
    %v3432 = vmul.f32 0.5, %v3431
    %v3433 = vsub.f32 1.5, %v3432
    %v3434 = vmul.f32 %v3429, %v3433
    %vm3435 = vweird.f32 %v3427
    %vm3436 = vweird.f32 %v3429
    %vm3437 = vmor %vm3435, %vm3436
    %v3438 = vsel %vm3437, %v3429, %v3434
    %v3439 = vrsqrt.pop %v3428
    %v3440 = vmul.f32 %v3439, %v3428
    %v3441 = vmul.f32 %v3440, %v3439
    %v3442 = vmul.f32 0.5, %v3441
    %v3443 = vsub.f32 1.5, %v3442
    %v3444 = vmul.f32 %v3439, %v3443
    %vm3445 = vweird.f32 %v3428
    %vm3446 = vweird.f32 %v3439
    %vm3447 = vmor %vm3445, %vm3446
    %v3448 = vsel %vm3447, %v3439, %v3444
    %v3449 = vmul.f32 %v3425, %v3438
    %v3450 = vmul.f32 %v3426, %v3448
    %v3451 = vld [vmem:[#allocation9 + $0x1a] sm:$0x1]
    %v3452 = vperm.slane %v3451, 0
    %v3453 = vmul.f32 %v3449, %v3452
    %v3454 = vmul.f32 %v3450, %v3452
    %v3455 = vld [vmem:[#allocation9 + $0x1b] sm:$0x1]
    %v3456 = vperm.slane %v3455, 0
    %v3457 = vadd.f32 %v3453, %v3456
    %v3458 = vadd.f32 %v3454, %v3456
    %v3459 = vld [vmem:[#allocation7 + $0x220] sm:$0xff]
    %v3460 = vld [vmem:[#allocation7 + $0x228] sm:$0xff]
    %v3461 = vld [vmem:[#allocation7 + $0x230] sm:$0xff]
    %v3462 = vld [vmem:[#allocation7 + $0x238] sm:$0xff]
    %v3463 = vld [vmem:[#allocation9 + $0x1c] sm:$0x1]
    %v3464 = vperm.slane %v3463, 0
    %v3466 = vsel %vm106, %v3457, 0
    %v3469 = vsel %vm106, %v3458, 0
    %3471 = vmatpush.msra.mxu0 0.0
    %3472 = vmatpush.msra.mxu0 0.0
    %3473 = vmatpush.msra.mxu0 0.0
    %3474 = vmatpush.msra.mxu0 0.0
    %3475 = vmatpush.msra.mxu0 0.0
    %3476 = vmatpush.msra.mxu0 0.0
    %3477 = vmatpush.msra.mxu0 0.0
    %3478 = vmatpush.msra.mxu0 0.0
    %3479 = vmatpush.msra.mxu0 0.0
    %3480 = vmatpush.msra.mxu0 0.0
    %3481 = vmatpush.msra.mxu0 0.0
    %3482 = vmatpush.msra.mxu0 0.0
    %3483 = vmatpush.msra.mxu0 %v3462
    %3484 = vmatpush.msra.mxu0 %v3461
    %3485 = vmatpush.msra.mxu0 %v3460
    %3486 = vmatpush.msra.mxu0 %v3459
    %3487 = vmatmul.f32.gmra.mxu0 %v3466
    %v3488 = vpop.f32.mrf.mxu0
    %v3489 = vadd.f32 %v3464, %v3488
    %3490 = vmatmul.f32.gmra.mxu0 %v3469
    %v3491 = vpop.f32.mrf.mxu0
    %v3492 = vadd.f32 %v3464, %v3491
    %3493 = vdwg.mxu0
    %v3494 = vmax.f32 %v3489, 0.0
    %v3495 = vmax.f32 %v3492, 0.0
    %v3496 = vld [vmem:[#allocation7 + $0x240] sm:$0xff]
    %v3497 = vld [vmem:[#allocation7 + $0x248] sm:$0xff]
    %v3498 = vld [vmem:[#allocation7 + $0x250] sm:$0xff]
    %v3499 = vld [vmem:[#allocation7 + $0x258] sm:$0xff]
    %v3500 = vld [vmem:[#allocation7 + $0x260] sm:$0xff]
    %v3501 = vld [vmem:[#allocation7 + $0x268] sm:$0xff]
    %v3502 = vld [vmem:[#allocation7 + $0x270] sm:$0xff]
    %v3503 = vld [vmem:[#allocation7 + $0x278] sm:$0xff]
    %v3504 = vld [vmem:[#allocation9 + $0x1d] sm:$0x1]
    %v3505 = vperm.slane %v3504, 0
    %v3507 = vsel %vm879, %v3494, 0
    %v3510 = vsel %vm879, %v3495, 0
    %3512 = vmatpush.msra.mxu0 0.0
    %3513 = vmatpush.msra.mxu0 0.0
    %3514 = vmatpush.msra.mxu0 0.0
    %3515 = vmatpush.msra.mxu0 0.0
    %3516 = vmatpush.msra.mxu0 0.0
    %3517 = vmatpush.msra.mxu0 0.0
    %3518 = vmatpush.msra.mxu0 0.0
    %3519 = vmatpush.msra.mxu0 0.0
    %3520 = vmatpush.msra.mxu0 %v3503
    %3521 = vmatpush.msra.mxu0 %v3502
    %3522 = vmatpush.msra.mxu0 %v3501
    %3523 = vmatpush.msra.mxu0 %v3500
    %3524 = vmatpush.msra.mxu0 %v3499
    %3525 = vmatpush.msra.mxu0 %v3498
    %3526 = vmatpush.msra.mxu0 %v3497
    %3527 = vmatpush.msra.mxu0 %v3496
    %3528 = vmatmul.f32.gmra.mxu0 %v3507
    %v3529 = vpop.f32.mrf.mxu0
    %v3530 = vadd.f32 %v3505, %v3529
    %3531 = vmatmul.f32.gmra.mxu0 %v3510
    %v3532 = vpop.f32.mrf.mxu0
    %v3533 = vadd.f32 %v3505, %v3532
    %3534 = vdwg.mxu0
    %v3535 = vadd.f32 %v3457, %v3530
    %v3536 = vadd.f32 %v3458, %v3533
    %v3537 = vsel %vm106, %v3535, 0.0
    %3538 = vadd.xlane.f32.xlu0 %v3537
    %v3539 = vpop.xlane.xlu0 %3538
    %v3540 = vsel %vm106, %v3536, 0.0
    %3541 = vadd.xlane.f32.xlu0 %v3540
    %v3542 = vpop.xlane.xlu0 %3541
    %v3543 = vmul.f32 %v3539, %v781
    %v3544 = vmul.f32 %v3542, %v781
    %v3545 = vmul.f32 %v3535, %v3535
    %v3546 = vmul.f32 %v3536, %v3536
    %v3547 = vsel %vm106, %v3545, 0.0
    %3548 = vadd.xlane.f32.xlu0 %v3547
    %v3549 = vpop.xlane.xlu0 %3548
    %v3550 = vsel %vm106, %v3546, 0.0
    %3551 = vadd.xlane.f32.xlu0 %v3550
    %v3552 = vpop.xlane.xlu0 %3551
    %v3553 = vmul.f32 %v3549, %v781
    %v3554 = vmul.f32 %v3552, %v781
    %v3555 = vmul.f32 %v3543, %v3543
    %v3556 = vmul.f32 %v3544, %v3544
    %v3557 = vsub.f32 %v3553, %v3555
    %v3558 = vsub.f32 %v3554, %v3556
    %v3559 = vsub.f32 %v3535, %v3543
    %v3560 = vsub.f32 %v3536, %v3544
    %v3561 = vadd.f32 %v3557, 1e-05
    %v3562 = vadd.f32 %v3558, 1e-05
    %v3563 = vrsqrt.pop %v3561
    %v3564 = vmul.f32 %v3563, %v3561
    %v3565 = vmul.f32 %v3564, %v3563
    %v3566 = vmul.f32 0.5, %v3565
    %v3567 = vsub.f32 1.5, %v3566
    %v3568 = vmul.f32 %v3563, %v3567
    %vm3569 = vweird.f32 %v3561
    %vm3570 = vweird.f32 %v3563
    %vm3571 = vmor %vm3569, %vm3570
    %v3572 = vsel %vm3571, %v3563, %v3568
    %v3573 = vrsqrt.pop %v3562
    %v3574 = vmul.f32 %v3573, %v3562
    %v3575 = vmul.f32 %v3574, %v3573
    %v3576 = vmul.f32 0.5, %v3575
    %v3577 = vsub.f32 1.5, %v3576
    %v3578 = vmul.f32 %v3573, %v3577
    %vm3579 = vweird.f32 %v3562
    %vm3580 = vweird.f32 %v3573
    %vm3581 = vmor %vm3579, %vm3580
    %v3582 = vsel %vm3581, %v3573, %v3578
    %v3583 = vmul.f32 %v3559, %v3572
    %v3584 = vmul.f32 %v3560, %v3582
    %v3585 = vld [vmem:[#allocation9 + $0x1e] sm:$0x1]
    %v3586 = vperm.slane %v3585, 0
    %v3587 = vmul.f32 %v3583, %v3586
    %v3588 = vmul.f32 %v3584, %v3586
    %v3589 = vld [vmem:[#allocation9 + $0x1f] sm:$0x1]
    %v3590 = vperm.slane %v3589, 0
    %v3591 = vadd.f32 %v3587, %v3590
    %v3592 = vadd.f32 %v3588, %v3590
    %v3593 = vld [vmem:[#allocation7 + $0x2f0] sm:$0xff]
    %v3594 = vld [vmem:[#allocation7 + $0x2f8] sm:$0xff]
    %v3595 = vld [vmem:[#allocation7 + $0x300] sm:$0xff]
    %v3596 = vld [vmem:[#allocation7 + $0x308] sm:$0xff]
    %v3597 = vld [vmem:[#allocation9 + $0x23] sm:$0x1]
    %v3598 = vperm.slane %v3597, 0
    %v3600 = vsel %vm106, %v3591, 0
    %v3603 = vsel %vm106, %v3592, 0
    %3605 = vmatpush.msra.mxu0 0.0
    %3606 = vmatpush.msra.mxu0 0.0
    %3607 = vmatpush.msra.mxu0 0.0
    %3608 = vmatpush.msra.mxu0 0.0
    %3609 = vmatpush.msra.mxu0 0.0
    %3610 = vmatpush.msra.mxu0 0.0
    %3611 = vmatpush.msra.mxu0 0.0
    %3612 = vmatpush.msra.mxu0 0.0
    %3613 = vmatpush.msra.mxu0 0.0
    %3614 = vmatpush.msra.mxu0 0.0
    %3615 = vmatpush.msra.mxu0 0.0
    %3616 = vmatpush.msra.mxu0 0.0
    %3617 = vmatpush.msra.mxu0 %v3596
    %3618 = vmatpush.msra.mxu0 %v3595
    %3619 = vmatpush.msra.mxu0 %v3594
    %3620 = vmatpush.msra.mxu0 %v3593
    %3621 = vmatmul.f32.gmra.mxu0 %v3600
    %v3622 = vpop.f32.mrf.mxu0
    %v3623 = vadd.f32 %v3598, %v3622
    %3624 = vmatmul.f32.gmra.mxu0 %v3603
    %v3625 = vpop.f32.mrf.mxu0
    %v3626 = vadd.f32 %v3598, %v3625
    %3627 = vdwg.mxu0
    %3628 = vst.msk [vmem:[%s5] sm:$0xff] %vm106, %v3623
    %3629 = vst.msk [vmem:[%s5 + $0x8] sm:$0xff] %vm106, %v3626
    // Predicated region
    $region42: #{_lambda_.1} parent=1 // pred_check
      _
    $region43: #{_lambda_.1} parent=1 // pred_check_branch
      %3631 = sbr.rel (0) target = $region45
    $region44: #{_lambda_.1} parent=1 // pred_region
      _
    $region45: #{_lambda_.1} parent=1 // pred_fallthru
      _
    // Predicated region
    $region46: #{_lambda_.1} parent=1 // pred_check
      _
    $region47: #{_lambda_.1} parent=1 // pred_check_branch
      %3633 = sbr.rel (0) target = $region49
    $region48: #{_lambda_.1} parent=1 // pred_region
      _
    $region49: #{_lambda_.1} parent=1 // pred_fallthru
      _
    %3634 = vsyncpa [#allocation3], 1
    %3635 = vsyncpa [#allocation5], 1
    %3636 = vsyncpa [#allocation8], 1

</llo_original>
